<compile_context>
chip_gen: v5e
topology: v5e:2x2
jax: 0.10.0
libtpu: 0.0.40
codegen_flags: <defaults>
</compile_context>

<pallas_src>
import functools

import jax
import jax.numpy as jnp
from jax.experimental import pallas as pl
from jax.experimental.pallas import tpu as pltpu


def _dwconv_bn_swish_kernel(x_ref, w_ref, g_ref, b_ref, o_ref, xp_ref,
                            *, ksize, stride, pad, eps):
    # x_ref : (N, H, W, Cb)   input block, channels on lanes
    # w_ref : (k*k, Cb)       per-tap depthwise weights
    # g_ref : (1, Cb), b_ref : (1, Cb)
    # o_ref : (N, Ho, Wo, Cb)
    # xp_ref: (N, Hp, Wp, Cb) VMEM scratch for in-kernel zero padding
    N, H, W, Cb = x_ref.shape
    _, Ho, Wo, _ = o_ref.shape

    if pad > 0:
        # In-kernel zero padding: no extra HBM traffic, only a VMEM pass.
        xp_ref[...] = jnp.zeros_like(xp_ref)
        xp_ref[:, pad:pad + H, pad:pad + W, :] = x_ref[...]
        src = xp_ref
    else:
        src = x_ref

    wv = w_ref[...].astype(jnp.float32)  # (k*k, Cb)

    # Depthwise conv: k*k shifted window reads (ref-view slices, shifts are on
    # the N/H/W axes, never on the lane axis), f32 accumulation.
    acc = jnp.zeros((N, Ho, Wo, Cb), jnp.float32)
    for ki in range(ksize):
        for kj in range(ksize):
            if stride == 1:
                patch = src[:, pl.ds(ki, Ho), pl.ds(kj, Wo), :]
            else:
                patch = src[:, pl.ds(ki, Ho, stride), pl.ds(kj, Wo, stride), :]
            tap = ki * ksize + kj
            acc = acc + patch.astype(jnp.float32) * wv[tap:tap + 1, :]

    # BatchNorm2d, training-mode semantics: per-channel mean / biased variance
    # over (N, Ho, Wo).  Fused single pass: sum + sum of squares (per-lane
    # reductions, lane axis = channels).
    # TODO(synk): for very large N*Ho*Wo slabs switch to a shifted/Welford form
    # (E[x^2]-mean^2 loses precision there).
    inv_cnt = 1.0 / float(N * Ho * Wo)
    s1 = jnp.sum(acc, axis=(0, 1, 2), keepdims=True)          # (1,1,1,Cb)
    s2 = jnp.sum(acc * acc, axis=(0, 1, 2), keepdims=True)    # (1,1,1,Cb)
    mean = s1 * inv_cnt
    var = jnp.maximum(s2 * inv_cnt - mean * mean, 0.0)

    gamma = g_ref[...].astype(jnp.float32)                    # (1, Cb)
    beta = b_ref[...].astype(jnp.float32)                     # (1, Cb)
    scale = jax.lax.rsqrt(var + eps) * gamma                  # (1,1,1,Cb)
    shift = beta - mean * scale                               # (1,1,1,Cb)
    y = acc * scale + shift

    # Swish: x * sigmoid(x); sigmoid via tanh so it runs on the EUP slot.
    sig = 0.5 * (jnp.tanh(0.5 * y) + 1.0)
    o_ref[...] = (y * sig).astype(o_ref.dtype)


def depthwise_conv_block(x, w, gamma, beta, *, padding=0, stride=1, eps=1e-5):
    """x: (N, C, H, W); w: (C, k, k) depthwise filters; gamma/beta: (C,)."""
    N, C, H, W = x.shape
    k = w.shape[-1]
    Hp, Wp = H + 2 * padding, W + 2 * padding
    Ho = (Hp - k) // stride + 1
    Wo = (Wp - k) // stride + 1

    # Channels-on-lanes relayout (layout plumbing only; compute stays in-kernel).
    x_nhwc = jnp.transpose(x, (0, 2, 3, 1))                       # (N, H, W, C)
    w_taps = jnp.transpose(w.reshape(C, k * k), (1, 0)).astype(jnp.float32)  # (k*k, C)
    g2 = gamma.reshape(1, C).astype(jnp.float32)
    b2 = beta.reshape(1, C).astype(jnp.float32)

    # Channel block on the lane axis: 128 lanes when possible, else full C
    # (block dims must be multiples of 128 or the full array extent).
    cblk = 128 if (C % 128 == 0) else C
    n_cblk = C // cblk

    # Size VMEM against the actual block footprint (double-buffered in/out +
    # pad scratch + f32 accumulator), capped so it also fits v7x's 64 MiB.
    itemsize = jnp.dtype(x.dtype).itemsize
    in_blk = N * H * W * cblk * itemsize
    out_blk = N * Ho * Wo * cblk * itemsize
    pad_scratch = N * Hp * Wp * cblk * itemsize if padding > 0 else 8 * 128 * 4
    acc_f32 = N * Ho * Wo * cblk * 4
    needed = 2 * (in_blk + out_blk) + pad_scratch + 2 * acc_f32 + (2 << 20)
    vmem_limit = int(min(max(needed, 32 << 20), 64 << 20))

    kernel = functools.partial(
        _dwconv_bn_swish_kernel, ksize=k, stride=stride, pad=padding, eps=eps)

    scratch = (pltpu.VMEM((N, Hp, Wp, cblk), x.dtype) if padding > 0
               else pltpu.VMEM((8, 128), jnp.float32))  # dummy when no pad

    out_nhwc = pl.pallas_call(
        kernel,
        out_shape=jax.ShapeDtypeStruct((N, Ho, Wo, C), x.dtype),
        grid=(n_cblk,),
        in_specs=[
            pl.BlockSpec((N, H, W, cblk), lambda c: (0, 0, 0, c)),
            pl.BlockSpec((k * k, cblk), lambda c: (0, c)),
            pl.BlockSpec((1, cblk), lambda c: (0, c)),
            pl.BlockSpec((1, cblk), lambda c: (0, c)),
        ],
        out_specs=pl.BlockSpec((N, Ho, Wo, cblk), lambda c: (0, 0, 0, c)),
        scratch_shapes=[scratch],
        compiler_params=pltpu.CompilerParams(
            dimension_semantics=("parallel",),   # channel blocks are independent
            vmem_limit_bytes=vmem_limit),
    )(x_nhwc, w_taps, g2, b2)

    return jnp.transpose(out_nhwc, (0, 3, 1, 2))                  # back to NCHW


def _reference(x, w, gamma, beta, *, padding, stride, eps=1e-5):
    C, k, _ = w.shape
    out = jax.lax.conv_general_dilated(
        x, w.reshape(C, 1, k, k),
        window_strides=(stride, stride),
        padding=[(padding, padding), (padding, padding)],
        dimension_numbers=("NCHW", "OIHW", "NCHW"),
        feature_group_count=C)
    mean = out.mean(axis=(0, 2, 3), keepdims=True)
    var = ((out - mean) ** 2).mean(axis=(0, 2, 3), keepdims=True)
    y = (out - mean) * jax.lax.rsqrt(var + eps) * gamma.reshape(1, -1, 1, 1) \
        + beta.reshape(1, -1, 1, 1)
    return y * jax.nn.sigmoid(y)


if __name__ == "__main__":
    key = jax.random.PRNGKey(0)
    kx, kw = jax.random.split(key)

    N, C, H, W = 2, 4, 16, 16
    ksize, padding, stride = 3, 1, 1

    x = jax.random.normal(kx, (N, C, H, W), dtype=jnp.float32)
    # nn.Conv2d(groups=C) depthwise weight is (C, 1, k, k); squeezed to (C, k, k)
    w = 0.1 * jax.random.normal(kw, (C, ksize, ksize), dtype=jnp.float32)
    gamma = jnp.ones((C,), jnp.float32)   # BatchNorm2d default affine init
    beta = jnp.zeros((C,), jnp.float32)

    out = depthwise_conv_block(x, w, gamma, beta, padding=padding, stride=stride)
    out = jax.block_until_ready(out)

    ref = _reference(x, w, gamma, beta, padding=padding, stride=stride)
    assert out.shape == ref.shape == (N, C, H, W)
    assert jnp.allclose(out, ref, rtol=1e-4, atol=1e-5), \
        f"max abs diff {jnp.max(jnp.abs(out - ref))}"

    print("KERNEL_OK")
</pallas_src>

<mosaic_0001>
module attributes {stable_mosaic.version = 11 : i64} {
  func.func @_dwconv_bn_swish_kernel(%arg0: i32, %arg1: memref<2x16x16x4xf32, #tpu.memory_space<vmem>>, %arg2: memref<9x4xf32, #tpu.memory_space<vmem>>, %arg3: memref<1x4xf32, #tpu.memory_space<vmem>>, %arg4: memref<1x4xf32, #tpu.memory_space<vmem>>, %arg5: memref<2x16x16x4xf32, #tpu.memory_space<vmem>>, %arg6: memref<2x18x18x4xf32, #tpu.memory_space<vmem>>) attributes {dimension_semantics = [#tpu.dimension_semantics<parallel>], iteration_bounds = array<i64: 1>, scalar_prefetch = 0 : i64, scratch_operands = 1 : i64, tpu.core_type = #tpu.core_type<tc>, window_params = [{transform_indices = @transform_0, window_bounds = array<i64: 2, 16, 16, 4>}, {transform_indices = @transform_1, window_bounds = array<i64: 9, 4>}, {transform_indices = @transform_2, window_bounds = array<i64: 1, 4>}, {transform_indices = @transform_3, window_bounds = array<i64: 1, 4>}, {transform_indices = @transform_4, window_bounds = array<i64: 2, 16, 16, 4>}]} {
    %cst = arith.constant 0.000000e+00 : f32
    %0 = vector.broadcast %cst : f32 to vector<2x18x18x4xf32>
    %c0 = arith.constant 0 : index
    %c0_0 = arith.constant 0 : index
    %c0_1 = arith.constant 0 : index
    %c0_2 = arith.constant 0 : index
    %1 = vector.load %arg6[%c0, %c0_0, %c0_1, %c0_2] : memref<2x18x18x4xf32, #tpu.memory_space<vmem>>, vector<2x18x18x4xf32>
    tpu.vector_store %arg6[%c0, %c0_0, %c0_1, %c0_2], %0 {strides = array<i32>} : memref<2x18x18x4xf32, #tpu.memory_space<vmem>>, vector<2x18x18x4xf32>,
    %c0_3 = arith.constant 0 : index
    %c0_4 = arith.constant 0 : index
    %c0_5 = arith.constant 0 : index
    %c0_6 = arith.constant 0 : index
    %2 = vector.load %arg1[%c0_3, %c0_4, %c0_5, %c0_6] : memref<2x16x16x4xf32, #tpu.memory_space<vmem>>, vector<2x16x16x4xf32>
    %c0_7 = arith.constant 0 : index
    %c1 = arith.constant 1 : index
    %c1_8 = arith.constant 1 : index
    %c0_9 = arith.constant 0 : index
    %3 = vector.load %arg6[%c0_7, %c1, %c1_8, %c0_9] : memref<2x18x18x4xf32, #tpu.memory_space<vmem>>, vector<2x16x16x4xf32>
    tpu.vector_store %arg6[%c0_7, %c1, %c1_8, %c0_9], %2 {strides = array<i32>} : memref<2x18x18x4xf32, #tpu.memory_space<vmem>>, vector<2x16x16x4xf32>,
    %c0_10 = arith.constant 0 : index
    %c0_11 = arith.constant 0 : index
    %4 = vector.load %arg2[%c0_10, %c0_11] : memref<9x4xf32, #tpu.memory_space<vmem>>, vector<9x4xf32>
    %cst_12 = arith.constant 0.000000e+00 : f32
    %5 = vector.broadcast %cst_12 : f32 to vector<2x16x16x4xf32>
    %c0_13 = arith.constant 0 : index
    %c0_14 = arith.constant 0 : index
    %c0_15 = arith.constant 0 : index
    %c0_16 = arith.constant 0 : index
    %6 = vector.load %arg6[%c0_13, %c0_14, %c0_15, %c0_16] : memref<2x18x18x4xf32, #tpu.memory_space<vmem>>, vector<2x16x16x4xf32>
    %7 = vector.extract_strided_slice %4 {offsets = [0, 0], sizes = [1, 4], strides = [1, 1]} : vector<9x4xf32> to vector<1x4xf32>
    %8 = vector.shape_cast %7 : vector<1x4xf32> to vector<1x1x1x4xf32>
    %9 = vector.broadcast %8 : vector<1x1x1x4xf32> to vector<2x16x16x4xf32>
    %10 = arith.mulf %6, %9 : vector<2x16x16x4xf32>
    %11 = arith.addf %5, %10 : vector<2x16x16x4xf32>
    %c0_17 = arith.constant 0 : index
    %c0_18 = arith.constant 0 : index
    %c1_19 = arith.constant 1 : index
    %c0_20 = arith.constant 0 : index
    %12 = vector.load %arg6[%c0_17, %c0_18, %c1_19, %c0_20] : memref<2x18x18x4xf32, #tpu.memory_space<vmem>>, vector<2x16x16x4xf32>
    %13 = vector.extract_strided_slice %4 {offsets = [1, 0], sizes = [1, 4], strides = [1, 1]} : vector<9x4xf32> to vector<1x4xf32>
    %14 = vector.shape_cast %13 : vector<1x4xf32> to vector<1x1x1x4xf32>
    %15 = vector.broadcast %14 : vector<1x1x1x4xf32> to vector<2x16x16x4xf32>
    %16 = arith.mulf %12, %15 : vector<2x16x16x4xf32>
    %17 = arith.addf %11, %16 : vector<2x16x16x4xf32>
    %c0_21 = arith.constant 0 : index
    %c0_22 = arith.constant 0 : index
    %c2 = arith.constant 2 : index
    %c0_23 = arith.constant 0 : index
    %18 = vector.load %arg6[%c0_21, %c0_22, %c2, %c0_23] : memref<2x18x18x4xf32, #tpu.memory_space<vmem>>, vector<2x16x16x4xf32>
    %19 = vector.extract_strided_slice %4 {offsets = [2, 0], sizes = [1, 4], strides = [1, 1]} : vector<9x4xf32> to vector<1x4xf32>
    %20 = vector.shape_cast %19 : vector<1x4xf32> to vector<1x1x1x4xf32>
    %21 = vector.broadcast %20 : vector<1x1x1x4xf32> to vector<2x16x16x4xf32>
    %22 = arith.mulf %18, %21 : vector<2x16x16x4xf32>
    %23 = arith.addf %17, %22 : vector<2x16x16x4xf32>
    %c0_24 = arith.constant 0 : index
    %c1_25 = arith.constant 1 : index
    %c0_26 = arith.constant 0 : index
    %c0_27 = arith.constant 0 : index
    %24 = vector.load %arg6[%c0_24, %c1_25, %c0_26, %c0_27] : memref<2x18x18x4xf32, #tpu.memory_space<vmem>>, vector<2x16x16x4xf32>
    %25 = vector.extract_strided_slice %4 {offsets = [3, 0], sizes = [1, 4], strides = [1, 1]} : vector<9x4xf32> to vector<1x4xf32>
    %26 = vector.shape_cast %25 : vector<1x4xf32> to vector<1x1x1x4xf32>
    %27 = vector.broadcast %26 : vector<1x1x1x4xf32> to vector<2x16x16x4xf32>
    %28 = arith.mulf %24, %27 : vector<2x16x16x4xf32>
    %29 = arith.addf %23, %28 : vector<2x16x16x4xf32>
    %c0_28 = arith.constant 0 : index
    %c1_29 = arith.constant 1 : index
    %c1_30 = arith.constant 1 : index
    %c0_31 = arith.constant 0 : index
    %30 = vector.load %arg6[%c0_28, %c1_29, %c1_30, %c0_31] : memref<2x18x18x4xf32, #tpu.memory_space<vmem>>, vector<2x16x16x4xf32>
    %31 = vector.extract_strided_slice %4 {offsets = [4, 0], sizes = [1, 4], strides = [1, 1]} : vector<9x4xf32> to vector<1x4xf32>
    %32 = vector.shape_cast %31 : vector<1x4xf32> to vector<1x1x1x4xf32>
    %33 = vector.broadcast %32 : vector<1x1x1x4xf32> to vector<2x16x16x4xf32>
    %34 = arith.mulf %30, %33 : vector<2x16x16x4xf32>
    %35 = arith.addf %29, %34 : vector<2x16x16x4xf32>
    %c0_32 = arith.constant 0 : index
    %c1_33 = arith.constant 1 : index
    %c2_34 = arith.constant 2 : index
    %c0_35 = arith.constant 0 : index
    %36 = vector.load %arg6[%c0_32, %c1_33, %c2_34, %c0_35] : memref<2x18x18x4xf32, #tpu.memory_space<vmem>>, vector<2x16x16x4xf32>
    %37 = vector.extract_strided_slice %4 {offsets = [5, 0], sizes = [1, 4], strides = [1, 1]} : vector<9x4xf32> to vector<1x4xf32>
    %38 = vector.shape_cast %37 : vector<1x4xf32> to vector<1x1x1x4xf32>
    %39 = vector.broadcast %38 : vector<1x1x1x4xf32> to vector<2x16x16x4xf32>
    %40 = arith.mulf %36, %39 : vector<2x16x16x4xf32>
    %41 = arith.addf %35, %40 : vector<2x16x16x4xf32>
    %c0_36 = arith.constant 0 : index
    %c2_37 = arith.constant 2 : index
    %c0_38 = arith.constant 0 : index
    %c0_39 = arith.constant 0 : index
    %42 = vector.load %arg6[%c0_36, %c2_37, %c0_38, %c0_39] : memref<2x18x18x4xf32, #tpu.memory_space<vmem>>, vector<2x16x16x4xf32>
    %43 = vector.extract_strided_slice %4 {offsets = [6, 0], sizes = [1, 4], strides = [1, 1]} : vector<9x4xf32> to vector<1x4xf32>
    %44 = vector.shape_cast %43 : vector<1x4xf32> to vector<1x1x1x4xf32>
    %45 = vector.broadcast %44 : vector<1x1x1x4xf32> to vector<2x16x16x4xf32>
    %46 = arith.mulf %42, %45 : vector<2x16x16x4xf32>
    %47 = arith.addf %41, %46 : vector<2x16x16x4xf32>
    %c0_40 = arith.constant 0 : index
    %c2_41 = arith.constant 2 : index
    %c1_42 = arith.constant 1 : index
    %c0_43 = arith.constant 0 : index
    %48 = vector.load %arg6[%c0_40, %c2_41, %c1_42, %c0_43] : memref<2x18x18x4xf32, #tpu.memory_space<vmem>>, vector<2x16x16x4xf32>
    %49 = vector.extract_strided_slice %4 {offsets = [7, 0], sizes = [1, 4], strides = [1, 1]} : vector<9x4xf32> to vector<1x4xf32>
    %50 = vector.shape_cast %49 : vector<1x4xf32> to vector<1x1x1x4xf32>
    %51 = vector.broadcast %50 : vector<1x1x1x4xf32> to vector<2x16x16x4xf32>
    %52 = arith.mulf %48, %51 : vector<2x16x16x4xf32>
    %53 = arith.addf %47, %52 : vector<2x16x16x4xf32>
    %c0_44 = arith.constant 0 : index
    %c2_45 = arith.constant 2 : index
    %c2_46 = arith.constant 2 : index
    %c0_47 = arith.constant 0 : index
    %54 = vector.load %arg6[%c0_44, %c2_45, %c2_46, %c0_47] : memref<2x18x18x4xf32, #tpu.memory_space<vmem>>, vector<2x16x16x4xf32>
    %55 = vector.extract_strided_slice %4 {offsets = [8, 0], sizes = [1, 4], strides = [1, 1]} : vector<9x4xf32> to vector<1x4xf32>
    %56 = vector.shape_cast %55 : vector<1x4xf32> to vector<1x1x1x4xf32>
    %57 = vector.broadcast %56 : vector<1x1x1x4xf32> to vector<2x16x16x4xf32>
    %58 = arith.mulf %54, %57 : vector<2x16x16x4xf32>
    %59 = arith.addf %53, %58 : vector<2x16x16x4xf32>
    %cst_48 = arith.constant dense<0.000000e+00> : vector<4xf32>
    %60 = vector.multi_reduction <add>, %59, %cst_48 [0, 1, 2] : vector<2x16x16x4xf32> to vector<4xf32>
    %61 = vector.shape_cast %60 : vector<4xf32> to vector<1x1x1x4xf32>
    %62 = arith.mulf %59, %59 : vector<2x16x16x4xf32>
    %cst_49 = arith.constant dense<0.000000e+00> : vector<4xf32>
    %63 = vector.multi_reduction <add>, %62, %cst_49 [0, 1, 2] : vector<2x16x16x4xf32> to vector<4xf32>
    %64 = vector.shape_cast %63 : vector<4xf32> to vector<1x1x1x4xf32>
    %cst_50 = arith.constant 0.001953125 : f32
    %65 = vector.broadcast %cst_50 : f32 to vector<1x1x1x4xf32>
    %66 = arith.mulf %61, %65 : vector<1x1x1x4xf32>
    %cst_51 = arith.constant 0.001953125 : f32
    %67 = vector.broadcast %cst_51 : f32 to vector<1x1x1x4xf32>
    %68 = arith.mulf %64, %67 : vector<1x1x1x4xf32>
    %69 = arith.mulf %66, %66 : vector<1x1x1x4xf32>
    %70 = arith.subf %68, %69 : vector<1x1x1x4xf32>
    %cst_52 = arith.constant 0.000000e+00 : f32
    %71 = vector.broadcast %cst_52 : f32 to vector<1x1x1x4xf32>
    %72 = arith.maximumf %70, %71 : vector<1x1x1x4xf32>
    %c0_53 = arith.constant 0 : index
    %c0_54 = arith.constant 0 : index
    %73 = vector.load %arg3[%c0_53, %c0_54] : memref<1x4xf32, #tpu.memory_space<vmem>>, vector<1x4xf32>
    %c0_55 = arith.constant 0 : index
    %c0_56 = arith.constant 0 : index
    %74 = vector.load %arg4[%c0_55, %c0_56] : memref<1x4xf32, #tpu.memory_space<vmem>>, vector<1x4xf32>
    %cst_57 = arith.constant 9.99999974E-6 : f32
    %75 = vector.broadcast %cst_57 : f32 to vector<1x1x1x4xf32>
    %76 = arith.addf %72, %75 : vector<1x1x1x4xf32>
    %77 = math.rsqrt %76 : vector<1x1x1x4xf32>
    %78 = vector.shape_cast %73 : vector<1x4xf32> to vector<1x1x1x4xf32>
    %79 = arith.mulf %77, %78 : vector<1x1x1x4xf32>
    %80 = arith.mulf %66, %79 : vector<1x1x1x4xf32>
    %81 = vector.shape_cast %74 : vector<1x4xf32> to vector<1x1x1x4xf32>
    %82 = arith.subf %81, %80 : vector<1x1x1x4xf32>
    %83 = vector.broadcast %79 : vector<1x1x1x4xf32> to vector<2x16x16x4xf32>
    %84 = arith.mulf %59, %83 : vector<2x16x16x4xf32>
    %85 = vector.broadcast %82 : vector<1x1x1x4xf32> to vector<2x16x16x4xf32>
    %86 = arith.addf %84, %85 : vector<2x16x16x4xf32>
    %cst_58 = arith.constant 5.000000e-01 : f32
    %87 = vector.broadcast %cst_58 : f32 to vector<2x16x16x4xf32>
    %88 = arith.mulf %87, %86 : vector<2x16x16x4xf32>
    %89 = math.tanh %88 : vector<2x16x16x4xf32>
    %cst_59 = arith.constant 1.000000e+00 : f32
    %90 = vector.broadcast %cst_59 : f32 to vector<2x16x16x4xf32>
    %91 = arith.addf %89, %90 : vector<2x16x16x4xf32>
    %cst_60 = arith.constant 5.000000e-01 : f32
    %92 = vector.broadcast %cst_60 : f32 to vector<2x16x16x4xf32>
    %93 = arith.mulf %92, %91 : vector<2x16x16x4xf32>
    %94 = arith.mulf %86, %93 : vector<2x16x16x4xf32>
    %c0_61 = arith.constant 0 : index
    %c0_62 = arith.constant 0 : index
    %c0_63 = arith.constant 0 : index
    %c0_64 = arith.constant 0 : index
    %95 = vector.load %arg5[%c0_61, %c0_62, %c0_63, %c0_64] : memref<2x16x16x4xf32, #tpu.memory_space<vmem>>, vector<2x16x16x4xf32>
    tpu.vector_store %arg5[%c0_61, %c0_62, %c0_63, %c0_64], %94 {strides = array<i32>} : memref<2x16x16x4xf32, #tpu.memory_space<vmem>>, vector<2x16x16x4xf32>,
    return
  }
  func.func @transform_0(%arg0: i32) -> (i32, i32, i32, i32) {
    %c0_i32 = arith.constant 0 : i32
    %c0_i32_0 = arith.constant 0 : i32
    %c0_i32_1 = arith.constant 0 : i32
    %c0_i32_2 = arith.constant 0 : i32
    return %c0_i32, %c0_i32_0, %c0_i32_1, %arg0 : i32, i32, i32, i32
  }
  func.func @transform_1(%arg0: i32) -> (i32, i32) {
    %c0_i32 = arith.constant 0 : i32
    %c0_i32_0 = arith.constant 0 : i32
    return %c0_i32, %arg0 : i32, i32
  }
  func.func @transform_2(%arg0: i32) -> (i32, i32) {
    %c0_i32 = arith.constant 0 : i32
    %c0_i32_0 = arith.constant 0 : i32
    return %c0_i32, %arg0 : i32, i32
  }
  func.func @transform_3(%arg0: i32) -> (i32, i32) {
    %c0_i32 = arith.constant 0 : i32
    %c0_i32_0 = arith.constant 0 : i32
    return %c0_i32, %arg0 : i32, i32
  }
  func.func @transform_4(%arg0: i32) -> (i32, i32, i32, i32) {
    %c0_i32 = arith.constant 0 : i32
    %c0_i32_0 = arith.constant 0 : i32
    %c0_i32_1 = arith.constant 0 : i32
    %c0_i32_2 = arith.constant 0 : i32
    return %c0_i32, %c0_i32_0, %c0_i32_1, %arg0 : i32, i32, i32, i32
  }
}

</mosaic_0001>

<llo_original>
// kernel: tpu_custom_call.1
$region0: #{tpu_custom_call.1}
  #allocation0 [shape = 'u32[]', space=smem, size = 0x4, offset = 0x4, fixed_abs, tag = 'smem constant byte address 0x4 - core index']
  #allocation1 [shape = 'u32[72,128]{1,0:T(1,128)}', space=vmem, size = 0x9000, scoped, tag = 'internal scratch']
  #allocation2 [shape = 'f32[2,18,18,4]{3,2,1,0:T(8,128)}', space=vmem, size = 0x6c000, scoped, tag = 'scratch operand']
  %s0 = inlined_call_operand.vmem [shape: f32[2,16,16,4], index: 0, kind: input, shape index: {}]
  %s1 = inlined_call_operand.vmem [shape: f32[9,4], index: 1, kind: input, shape index: {}]
  %s2 = inlined_call_operand.vmem [shape: f32[1,4], index: 2, kind: input, shape index: {}]
  %s3 = inlined_call_operand.vmem [shape: f32[1,4], index: 3, kind: input, shape index: {}]
  %s4 = inlined_call_operand.vmem [shape: f32[2,16,16,4], index: 4, kind: output, shape index: {}]
  %s5 = sld [smem:[#allocation0]]
  $region26: #{tpu_custom_call.1} parent=0
    _
  %s7 = ssub.s32 1, %s5
  %s8 = scalar_select 0, %s7, %s5
  // Predicated region
  $region2: #{tpu_custom_call.1} parent=0 // pred_check
    _
  $region3: #{tpu_custom_call.1} parent=0 // pred_check_branch
    %10 = sbr.rel (0) target = $region5
  $region4: #{tpu_custom_call.1} parent=0 // pred_region
    _
  $region5: #{tpu_custom_call.1} parent=0 // pred_fallthru
    _
  // Predicated region
  $region6: #{tpu_custom_call.1} parent=0 // pred_check
    _
  $region7: #{tpu_custom_call.1} parent=0 // pred_check_branch
    %12 = sbr.rel (0) target = $region9
  $region8: #{tpu_custom_call.1} parent=0 // pred_region
    _
  $region9: #{tpu_custom_call.1} parent=0 // pred_fallthru
    _
  // Predicated region
  $region10: #{tpu_custom_call.1} parent=0 // pred_check
    _
  $region11: #{tpu_custom_call.1} parent=0 // pred_check_branch
    %14 = sbr.rel (0) target = $region13
  $region12: #{tpu_custom_call.1} parent=0 // pred_region
    _
  $region13: #{tpu_custom_call.1} parent=0 // pred_fallthru
    _
  // Predicated region
  $region14: #{tpu_custom_call.1} parent=0 // pred_check
    _
  $region15: #{tpu_custom_call.1} parent=0 // pred_check_branch
    %16 = sbr.rel (0) target = $region17
  $region16: #{tpu_custom_call.1} parent=0 // pred_region
    _
  $region17: #{tpu_custom_call.1} parent=0 // pred_fallthru
    _
  %vm17 = vcmask 31744
  %18 = vst.msk [vmem:[#allocation2] sm:$0xff] %vm17, 0.0
  %19 = vst.msk [vmem:[#allocation2 + $0x8] sm:$0xff] %vm17, 0.0
  %vm20 = vcmask 25600
  %21 = vst.msk [vmem:[#allocation2 + $0x10] sm:$0x3] %vm20, 0.0
  %22 = vst.msk [vmem:[#allocation2 + $0x18] sm:$0xff] %vm17, 0.0
  %23 = vst.msk [vmem:[#allocation2 + $0x20] sm:$0xff] %vm17, 0.0
  %24 = vst.msk [vmem:[#allocation2 + $0x28] sm:$0x3] %vm20, 0.0
  %25 = vst.msk [vmem:[#allocation2 + $0x30] sm:$0xff] %vm17, 0.0
  %26 = vst.msk [vmem:[#allocation2 + $0x38] sm:$0xff] %vm17, 0.0
  %27 = vst.msk [vmem:[#allocation2 + $0x40] sm:$0x3] %vm20, 0.0
  %28 = vst.msk [vmem:[#allocation2 + $0x48] sm:$0xff] %vm17, 0.0
  %29 = vst.msk [vmem:[#allocation2 + $0x50] sm:$0xff] %vm17, 0.0
  %30 = vst.msk [vmem:[#allocation2 + $0x58] sm:$0x3] %vm20, 0.0
  %31 = vst.msk [vmem:[#allocation2 + $0x60] sm:$0xff] %vm17, 0.0
  %32 = vst.msk [vmem:[#allocation2 + $0x68] sm:$0xff] %vm17, 0.0
  %33 = vst.msk [vmem:[#allocation2 + $0x70] sm:$0x3] %vm20, 0.0
  %34 = vst.msk [vmem:[#allocation2 + $0x78] sm:$0xff] %vm17, 0.0
  %35 = vst.msk [vmem:[#allocation2 + $0x80] sm:$0xff] %vm17, 0.0
  %36 = vst.msk [vmem:[#allocation2 + $0x88] sm:$0x3] %vm20, 0.0
  %37 = vst.msk [vmem:[#allocation2 + $0x90] sm:$0xff] %vm17, 0.0
  %38 = vst.msk [vmem:[#allocation2 + $0x98] sm:$0xff] %vm17, 0.0
  %39 = vst.msk [vmem:[#allocation2 + $0xa0] sm:$0x3] %vm20, 0.0
  %40 = vst.msk [vmem:[#allocation2 + $0xa8] sm:$0xff] %vm17, 0.0
  %41 = vst.msk [vmem:[#allocation2 + $0xb0] sm:$0xff] %vm17, 0.0
  %42 = vst.msk [vmem:[#allocation2 + $0xb8] sm:$0x3] %vm20, 0.0
  %43 = vst.msk [vmem:[#allocation2 + $0xc0] sm:$0xff] %vm17, 0.0
  %44 = vst.msk [vmem:[#allocation2 + $0xc8] sm:$0xff] %vm17, 0.0
  %45 = vst.msk [vmem:[#allocation2 + $0xd0] sm:$0x3] %vm20, 0.0
  %46 = vst.msk [vmem:[#allocation2 + $0xd8] sm:$0xff] %vm17, 0.0
  %47 = vst.msk [vmem:[#allocation2 + $0xe0] sm:$0xff] %vm17, 0.0
  %48 = vst.msk [vmem:[#allocation2 + $0xe8] sm:$0x3] %vm20, 0.0
  %49 = vst.msk [vmem:[#allocation2 + $0xf0] sm:$0xff] %vm17, 0.0
  %50 = vst.msk [vmem:[#allocation2 + $0xf8] sm:$0xff] %vm17, 0.0
  %51 = vst.msk [vmem:[#allocation2 + $0x100] sm:$0x3] %vm20, 0.0
  %52 = vst.msk [vmem:[#allocation2 + $0x108] sm:$0xff] %vm17, 0.0
  %53 = vst.msk [vmem:[#allocation2 + $0x110] sm:$0xff] %vm17, 0.0
  %54 = vst.msk [vmem:[#allocation2 + $0x118] sm:$0x3] %vm20, 0.0
  %55 = vst.msk [vmem:[#allocation2 + $0x120] sm:$0xff] %vm17, 0.0
  %56 = vst.msk [vmem:[#allocation2 + $0x128] sm:$0xff] %vm17, 0.0
  %57 = vst.msk [vmem:[#allocation2 + $0x130] sm:$0x3] %vm20, 0.0
  %58 = vst.msk [vmem:[#allocation2 + $0x138] sm:$0xff] %vm17, 0.0
  %59 = vst.msk [vmem:[#allocation2 + $0x140] sm:$0xff] %vm17, 0.0
  %60 = vst.msk [vmem:[#allocation2 + $0x148] sm:$0x3] %vm20, 0.0
  %61 = vst.msk [vmem:[#allocation2 + $0x150] sm:$0xff] %vm17, 0.0
  %62 = vst.msk [vmem:[#allocation2 + $0x158] sm:$0xff] %vm17, 0.0
  %63 = vst.msk [vmem:[#allocation2 + $0x160] sm:$0x3] %vm20, 0.0
  %64 = vst.msk [vmem:[#allocation2 + $0x168] sm:$0xff] %vm17, 0.0
  %65 = vst.msk [vmem:[#allocation2 + $0x170] sm:$0xff] %vm17, 0.0
  %66 = vst.msk [vmem:[#allocation2 + $0x178] sm:$0x3] %vm20, 0.0
  %67 = vst.msk [vmem:[#allocation2 + $0x180] sm:$0xff] %vm17, 0.0
  %68 = vst.msk [vmem:[#allocation2 + $0x188] sm:$0xff] %vm17, 0.0
  %69 = vst.msk [vmem:[#allocation2 + $0x190] sm:$0x3] %vm20, 0.0
  %70 = vst.msk [vmem:[#allocation2 + $0x198] sm:$0xff] %vm17, 0.0
  %71 = vst.msk [vmem:[#allocation2 + $0x1a0] sm:$0xff] %vm17, 0.0
  %72 = vst.msk [vmem:[#allocation2 + $0x1a8] sm:$0x3] %vm20, 0.0
  %73 = vst.msk [vmem:[#allocation2 + $0x1b0] sm:$0xff] %vm17, 0.0
  %74 = vst.msk [vmem:[#allocation2 + $0x1b8] sm:$0xff] %vm17, 0.0
  %75 = vst.msk [vmem:[#allocation2 + $0x1c0] sm:$0x3] %vm20, 0.0
  %76 = vst.msk [vmem:[#allocation2 + $0x1c8] sm:$0xff] %vm17, 0.0
  %77 = vst.msk [vmem:[#allocation2 + $0x1d0] sm:$0xff] %vm17, 0.0
  %78 = vst.msk [vmem:[#allocation2 + $0x1d8] sm:$0x3] %vm20, 0.0
  %79 = vst.msk [vmem:[#allocation2 + $0x1e0] sm:$0xff] %vm17, 0.0
  %80 = vst.msk [vmem:[#allocation2 + $0x1e8] sm:$0xff] %vm17, 0.0
  %81 = vst.msk [vmem:[#allocation2 + $0x1f0] sm:$0x3] %vm20, 0.0
  %82 = vst.msk [vmem:[#allocation2 + $0x1f8] sm:$0xff] %vm17, 0.0
  %83 = vst.msk [vmem:[#allocation2 + $0x200] sm:$0xff] %vm17, 0.0
  %84 = vst.msk [vmem:[#allocation2 + $0x208] sm:$0x3] %vm20, 0.0
  %85 = vst.msk [vmem:[#allocation2 + $0x210] sm:$0xff] %vm17, 0.0
  %86 = vst.msk [vmem:[#allocation2 + $0x218] sm:$0xff] %vm17, 0.0
  %87 = vst.msk [vmem:[#allocation2 + $0x220] sm:$0x3] %vm20, 0.0
  %88 = vst.msk [vmem:[#allocation2 + $0x228] sm:$0xff] %vm17, 0.0
  %89 = vst.msk [vmem:[#allocation2 + $0x230] sm:$0xff] %vm17, 0.0
  %90 = vst.msk [vmem:[#allocation2 + $0x238] sm:$0x3] %vm20, 0.0
  %91 = vst.msk [vmem:[#allocation2 + $0x240] sm:$0xff] %vm17, 0.0
  %92 = vst.msk [vmem:[#allocation2 + $0x248] sm:$0xff] %vm17, 0.0
  %93 = vst.msk [vmem:[#allocation2 + $0x250] sm:$0x3] %vm20, 0.0
  %94 = vst.msk [vmem:[#allocation2 + $0x258] sm:$0xff] %vm17, 0.0
  %95 = vst.msk [vmem:[#allocation2 + $0x260] sm:$0xff] %vm17, 0.0
  %96 = vst.msk [vmem:[#allocation2 + $0x268] sm:$0x3] %vm20, 0.0
  %97 = vst.msk [vmem:[#allocation2 + $0x270] sm:$0xff] %vm17, 0.0
  %98 = vst.msk [vmem:[#allocation2 + $0x278] sm:$0xff] %vm17, 0.0
  %99 = vst.msk [vmem:[#allocation2 + $0x280] sm:$0x3] %vm20, 0.0
  %100 = vst.msk [vmem:[#allocation2 + $0x288] sm:$0xff] %vm17, 0.0
  %101 = vst.msk [vmem:[#allocation2 + $0x290] sm:$0xff] %vm17, 0.0
  %102 = vst.msk [vmem:[#allocation2 + $0x298] sm:$0x3] %vm20, 0.0
  %103 = vst.msk [vmem:[#allocation2 + $0x2a0] sm:$0xff] %vm17, 0.0
  %104 = vst.msk [vmem:[#allocation2 + $0x2a8] sm:$0xff] %vm17, 0.0
  %105 = vst.msk [vmem:[#allocation2 + $0x2b0] sm:$0x3] %vm20, 0.0
  %106 = vst.msk [vmem:[#allocation2 + $0x2b8] sm:$0xff] %vm17, 0.0
  %107 = vst.msk [vmem:[#allocation2 + $0x2c0] sm:$0xff] %vm17, 0.0
  %108 = vst.msk [vmem:[#allocation2 + $0x2c8] sm:$0x3] %vm20, 0.0
  %109 = vst.msk [vmem:[#allocation2 + $0x2d0] sm:$0xff] %vm17, 0.0
  %110 = vst.msk [vmem:[#allocation2 + $0x2d8] sm:$0xff] %vm17, 0.0
  %111 = vst.msk [vmem:[#allocation2 + $0x2e0] sm:$0x3] %vm20, 0.0
  %112 = vst.msk [vmem:[#allocation2 + $0x2e8] sm:$0xff] %vm17, 0.0
  %113 = vst.msk [vmem:[#allocation2 + $0x2f0] sm:$0xff] %vm17, 0.0
  %114 = vst.msk [vmem:[#allocation2 + $0x2f8] sm:$0x3] %vm20, 0.0
  %115 = vst.msk [vmem:[#allocation2 + $0x300] sm:$0xff] %vm17, 0.0
  %116 = vst.msk [vmem:[#allocation2 + $0x308] sm:$0xff] %vm17, 0.0
  %117 = vst.msk [vmem:[#allocation2 + $0x310] sm:$0x3] %vm20, 0.0
  %118 = vst.msk [vmem:[#allocation2 + $0x318] sm:$0xff] %vm17, 0.0
  %119 = vst.msk [vmem:[#allocation2 + $0x320] sm:$0xff] %vm17, 0.0
  %120 = vst.msk [vmem:[#allocation2 + $0x328] sm:$0x3] %vm20, 0.0
  %121 = vst.msk [vmem:[#allocation2 + $0x330] sm:$0xff] %vm17, 0.0
  %122 = vst.msk [vmem:[#allocation2 + $0x338] sm:$0xff] %vm17, 0.0
  %123 = vst.msk [vmem:[#allocation2 + $0x340] sm:$0x3] %vm20, 0.0
  %124 = vst.msk [vmem:[#allocation2 + $0x348] sm:$0xff] %vm17, 0.0
  %125 = vst.msk [vmem:[#allocation2 + $0x350] sm:$0xff] %vm17, 0.0
  %126 = vst.msk [vmem:[#allocation2 + $0x358] sm:$0x3] %vm20, 0.0
  %v127 = vld [vmem:[%s0] sm:$0xff]
  %v128 = vld [vmem:[%s0 + $0x8] sm:$0xff]
  %v129 = vld [vmem:[%s0 + $0x10] sm:$0xff]
  %v130 = vld [vmem:[%s0 + $0x18] sm:$0xff]
  %v131 = vld [vmem:[%s0 + $0x20] sm:$0xff]
  %v132 = vld [vmem:[%s0 + $0x28] sm:$0xff]
  %v133 = vld [vmem:[%s0 + $0x30] sm:$0xff]
  %v134 = vld [vmem:[%s0 + $0x38] sm:$0xff]
  %v135 = vld [vmem:[%s0 + $0x40] sm:$0xff]
  %v136 = vld [vmem:[%s0 + $0x48] sm:$0xff]
  %v137 = vld [vmem:[%s0 + $0x50] sm:$0xff]
  %v138 = vld [vmem:[%s0 + $0x58] sm:$0xff]
  %v139 = vld [vmem:[%s0 + $0x60] sm:$0xff]
  %v140 = vld [vmem:[%s0 + $0x68] sm:$0xff]
  %v141 = vld [vmem:[%s0 + $0x70] sm:$0xff]
  %v142 = vld [vmem:[%s0 + $0x78] sm:$0xff]
  %v143 = vld [vmem:[%s0 + $0x80] sm:$0xff]
  %v144 = vld [vmem:[%s0 + $0x88] sm:$0xff]
  %v145 = vld [vmem:[%s0 + $0x90] sm:$0xff]
  %v146 = vld [vmem:[%s0 + $0x98] sm:$0xff]
  %v147 = vld [vmem:[%s0 + $0xa0] sm:$0xff]
  %v148 = vld [vmem:[%s0 + $0xa8] sm:$0xff]
  %v149 = vld [vmem:[%s0 + $0xb0] sm:$0xff]
  %v150 = vld [vmem:[%s0 + $0xb8] sm:$0xff]
  %v151 = vld [vmem:[%s0 + $0xc0] sm:$0xff]
  %v152 = vld [vmem:[%s0 + $0xc8] sm:$0xff]
  %v153 = vld [vmem:[%s0 + $0xd0] sm:$0xff]
  %v154 = vld [vmem:[%s0 + $0xd8] sm:$0xff]
  %v155 = vld [vmem:[%s0 + $0xe0] sm:$0xff]
  %v156 = vld [vmem:[%s0 + $0xe8] sm:$0xff]
  %v157 = vld [vmem:[%s0 + $0xf0] sm:$0xff]
  %v158 = vld [vmem:[%s0 + $0xf8] sm:$0xff]
  %v159 = vld [vmem:[%s0 + $0x100] sm:$0xff]
  %v160 = vld [vmem:[%s0 + $0x108] sm:$0xff]
  %v161 = vld [vmem:[%s0 + $0x110] sm:$0xff]
  %v162 = vld [vmem:[%s0 + $0x118] sm:$0xff]
  %v163 = vld [vmem:[%s0 + $0x120] sm:$0xff]
  %v164 = vld [vmem:[%s0 + $0x128] sm:$0xff]
  %v165 = vld [vmem:[%s0 + $0x130] sm:$0xff]
  %v166 = vld [vmem:[%s0 + $0x138] sm:$0xff]
  %v167 = vld [vmem:[%s0 + $0x140] sm:$0xff]
  %v168 = vld [vmem:[%s0 + $0x148] sm:$0xff]
  %v169 = vld [vmem:[%s0 + $0x150] sm:$0xff]
  %v170 = vld [vmem:[%s0 + $0x158] sm:$0xff]
  %v171 = vld [vmem:[%s0 + $0x160] sm:$0xff]
  %v172 = vld [vmem:[%s0 + $0x168] sm:$0xff]
  %v173 = vld [vmem:[%s0 + $0x170] sm:$0xff]
  %v174 = vld [vmem:[%s0 + $0x178] sm:$0xff]
  %v175 = vld [vmem:[%s0 + $0x180] sm:$0xff]
  %v176 = vld [vmem:[%s0 + $0x188] sm:$0xff]
  %v177 = vld [vmem:[%s0 + $0x190] sm:$0xff]
  %v178 = vld [vmem:[%s0 + $0x198] sm:$0xff]
  %v179 = vld [vmem:[%s0 + $0x1a0] sm:$0xff]
  %v180 = vld [vmem:[%s0 + $0x1a8] sm:$0xff]
  %v181 = vld [vmem:[%s0 + $0x1b0] sm:$0xff]
  %v182 = vld [vmem:[%s0 + $0x1b8] sm:$0xff]
  %v183 = vld [vmem:[%s0 + $0x1c0] sm:$0xff]
  %v184 = vld [vmem:[%s0 + $0x1c8] sm:$0xff]
  %v185 = vld [vmem:[%s0 + $0x1d0] sm:$0xff]
  %v186 = vld [vmem:[%s0 + $0x1d8] sm:$0xff]
  %v187 = vld [vmem:[%s0 + $0x1e0] sm:$0xff]
  %v188 = vld [vmem:[%s0 + $0x1e8] sm:$0xff]
  %v189 = vld [vmem:[%s0 + $0x1f0] sm:$0xff]
  %v190 = vld [vmem:[%s0 + $0x1f8] sm:$0xff]
  %s191 = scalar_lea.vmem [#allocation2], 24
  %192 = vst.msk [vmem:[%s191 + $0x1] sm:$0xff] %vm17, %v127
  %193 = vst.msk [vmem:[%s191 + $0x9] sm:$0xff] %vm17, %v128
  %194 = vst.msk [vmem:[%s191 + $0x19] sm:$0xff] %vm17, %v129
  %195 = vst.msk [vmem:[%s191 + $0x21] sm:$0xff] %vm17, %v130
  %196 = vst.msk [vmem:[%s191 + $0x31] sm:$0xff] %vm17, %v131
  %197 = vst.msk [vmem:[%s191 + $0x39] sm:$0xff] %vm17, %v132
  %198 = vst.msk [vmem:[%s191 + $0x49] sm:$0xff] %vm17, %v133
  %199 = vst.msk [vmem:[%s191 + $0x51] sm:$0xff] %vm17, %v134
  %200 = vst.msk [vmem:[%s191 + $0x61] sm:$0xff] %vm17, %v135
  %201 = vst.msk [vmem:[%s191 + $0x69] sm:$0xff] %vm17, %v136
  %202 = vst.msk [vmem:[%s191 + $0x79] sm:$0xff] %vm17, %v137
  %203 = vst.msk [vmem:[%s191 + $0x81] sm:$0xff] %vm17, %v138
  %204 = vst.msk [vmem:[%s191 + $0x91] sm:$0xff] %vm17, %v139
  %205 = vst.msk [vmem:[%s191 + $0x99] sm:$0xff] %vm17, %v140
  %206 = vst.msk [vmem:[%s191 + $0xa9] sm:$0xff] %vm17, %v141
  %207 = vst.msk [vmem:[%s191 + $0xb1] sm:$0xff] %vm17, %v142
  %208 = vst.msk [vmem:[%s191 + $0xc1] sm:$0xff] %vm17, %v143
  %209 = vst.msk [vmem:[%s191 + $0xc9] sm:$0xff] %vm17, %v144
  %210 = vst.msk [vmem:[%s191 + $0xd9] sm:$0xff] %vm17, %v145
  %211 = vst.msk [vmem:[%s191 + $0xe1] sm:$0xff] %vm17, %v146
  %212 = vst.msk [vmem:[%s191 + $0xf1] sm:$0xff] %vm17, %v147
  %213 = vst.msk [vmem:[%s191 + $0xf9] sm:$0xff] %vm17, %v148
  %214 = vst.msk [vmem:[%s191 + $0x109] sm:$0xff] %vm17, %v149
  %215 = vst.msk [vmem:[%s191 + $0x111] sm:$0xff] %vm17, %v150
  %216 = vst.msk [vmem:[%s191 + $0x121] sm:$0xff] %vm17, %v151
  %217 = vst.msk [vmem:[%s191 + $0x129] sm:$0xff] %vm17, %v152
  %218 = vst.msk [vmem:[%s191 + $0x139] sm:$0xff] %vm17, %v153
  %219 = vst.msk [vmem:[%s191 + $0x141] sm:$0xff] %vm17, %v154
  %220 = vst.msk [vmem:[%s191 + $0x151] sm:$0xff] %vm17, %v155
  %221 = vst.msk [vmem:[%s191 + $0x159] sm:$0xff] %vm17, %v156
  %222 = vst.msk [vmem:[%s191 + $0x169] sm:$0xff] %vm17, %v157
  %223 = vst.msk [vmem:[%s191 + $0x171] sm:$0xff] %vm17, %v158
  %224 = vst.msk [vmem:[%s191 + $0x1b1] sm:$0xff] %vm17, %v159
  %225 = vst.msk [vmem:[%s191 + $0x1b9] sm:$0xff] %vm17, %v160
  %226 = vst.msk [vmem:[%s191 + $0x1c9] sm:$0xff] %vm17, %v161
  %227 = vst.msk [vmem:[%s191 + $0x1d1] sm:$0xff] %vm17, %v162
  %228 = vst.msk [vmem:[%s191 + $0x1e1] sm:$0xff] %vm17, %v163
  %229 = vst.msk [vmem:[%s191 + $0x1e9] sm:$0xff] %vm17, %v164
  %230 = vst.msk [vmem:[%s191 + $0x1f9] sm:$0xff] %vm17, %v165
  %231 = vst.msk [vmem:[%s191 + $0x201] sm:$0xff] %vm17, %v166
  %232 = vst.msk [vmem:[%s191 + $0x211] sm:$0xff] %vm17, %v167
  %233 = vst.msk [vmem:[%s191 + $0x219] sm:$0xff] %vm17, %v168
  %234 = vst.msk [vmem:[%s191 + $0x229] sm:$0xff] %vm17, %v169
  %235 = vst.msk [vmem:[%s191 + $0x231] sm:$0xff] %vm17, %v170
  %236 = vst.msk [vmem:[%s191 + $0x241] sm:$0xff] %vm17, %v171
  %237 = vst.msk [vmem:[%s191 + $0x249] sm:$0xff] %vm17, %v172
  %238 = vst.msk [vmem:[%s191 + $0x259] sm:$0xff] %vm17, %v173
  %239 = vst.msk [vmem:[%s191 + $0x261] sm:$0xff] %vm17, %v174
  %240 = vst.msk [vmem:[%s191 + $0x271] sm:$0xff] %vm17, %v175
  %241 = vst.msk [vmem:[%s191 + $0x279] sm:$0xff] %vm17, %v176
  %242 = vst.msk [vmem:[%s191 + $0x289] sm:$0xff] %vm17, %v177
  %243 = vst.msk [vmem:[%s191 + $0x291] sm:$0xff] %vm17, %v178
  %244 = vst.msk [vmem:[%s191 + $0x2a1] sm:$0xff] %vm17, %v179
  %245 = vst.msk [vmem:[%s191 + $0x2a9] sm:$0xff] %vm17, %v180
  %246 = vst.msk [vmem:[%s191 + $0x2b9] sm:$0xff] %vm17, %v181
  %247 = vst.msk [vmem:[%s191 + $0x2c1] sm:$0xff] %vm17, %v182
  %248 = vst.msk [vmem:[%s191 + $0x2d1] sm:$0xff] %vm17, %v183
  %249 = vst.msk [vmem:[%s191 + $0x2d9] sm:$0xff] %vm17, %v184
  %250 = vst.msk [vmem:[%s191 + $0x2e9] sm:$0xff] %vm17, %v185
  %251 = vst.msk [vmem:[%s191 + $0x2f1] sm:$0xff] %vm17, %v186
  %252 = vst.msk [vmem:[%s191 + $0x301] sm:$0xff] %vm17, %v187
  %253 = vst.msk [vmem:[%s191 + $0x309] sm:$0xff] %vm17, %v188
  %254 = vst.msk [vmem:[%s191 + $0x319] sm:$0xff] %vm17, %v189
  %255 = vst.msk [vmem:[%s191 + $0x321] sm:$0xff] %vm17, %v190
  %v256 = vld [vmem:[%s1] sm:$0xff]
  %v257 = vld [vmem:[%s1 + $0x8] sm:$0x1]
  %v258 = vld [vmem:[#allocation2] sm:$0xff]
  %v259 = vld [vmem:[#allocation2 + $0x8] sm:$0xff]
  %v260 = vld [vmem:[#allocation2 + $0x18] sm:$0xff]
  %v261 = vld [vmem:[#allocation2 + $0x20] sm:$0xff]
  %v262 = vld [vmem:[#allocation2 + $0x30] sm:$0xff]
  %v263 = vld [vmem:[#allocation2 + $0x38] sm:$0xff]
  %v264 = vld [vmem:[#allocation2 + $0x48] sm:$0xff]
  %v265 = vld [vmem:[#allocation2 + $0x50] sm:$0xff]
  %v266 = vld [vmem:[#allocation2 + $0x60] sm:$0xff]
  %v267 = vld [vmem:[#allocation2 + $0x68] sm:$0xff]
  %v268 = vld [vmem:[#allocation2 + $0x78] sm:$0xff]
  %v269 = vld [vmem:[#allocation2 + $0x80] sm:$0xff]
  %v270 = vld [vmem:[#allocation2 + $0x90] sm:$0xff]
  %v271 = vld [vmem:[#allocation2 + $0x98] sm:$0xff]
  %v272 = vld [vmem:[#allocation2 + $0xa8] sm:$0xff]
  %v273 = vld [vmem:[#allocation2 + $0xb0] sm:$0xff]
  %v274 = vld [vmem:[#allocation2 + $0xc0] sm:$0xff]
  %v275 = vld [vmem:[#allocation2 + $0xc8] sm:$0xff]
  %v276 = vld [vmem:[#allocation2 + $0xd8] sm:$0xff]
  %v277 = vld [vmem:[#allocation2 + $0xe0] sm:$0xff]
  %v278 = vld [vmem:[#allocation2 + $0xf0] sm:$0xff]
  %v279 = vld [vmem:[#allocation2 + $0xf8] sm:$0xff]
  %v280 = vld [vmem:[#allocation2 + $0x108] sm:$0xff]
  %v281 = vld [vmem:[#allocation2 + $0x110] sm:$0xff]
  %v282 = vld [vmem:[#allocation2 + $0x120] sm:$0xff]
  %v283 = vld [vmem:[#allocation2 + $0x128] sm:$0xff]
  %v284 = vld [vmem:[#allocation2 + $0x138] sm:$0xff]
  %v285 = vld [vmem:[#allocation2 + $0x140] sm:$0xff]
  %v286 = vld [vmem:[#allocation2 + $0x150] sm:$0xff]
  %v287 = vld [vmem:[#allocation2 + $0x158] sm:$0xff]
  %v288 = vld [vmem:[#allocation2 + $0x168] sm:$0xff]
  %v289 = vld [vmem:[#allocation2 + $0x170] sm:$0xff]
  %v290 = vld [vmem:[#allocation2 + $0x1b0] sm:$0xff]
  %v291 = vld [vmem:[#allocation2 + $0x1b8] sm:$0xff]
  %v292 = vld [vmem:[#allocation2 + $0x1c8] sm:$0xff]
  %v293 = vld [vmem:[#allocation2 + $0x1d0] sm:$0xff]
  %v294 = vld [vmem:[#allocation2 + $0x1e0] sm:$0xff]
  %v295 = vld [vmem:[#allocation2 + $0x1e8] sm:$0xff]
  %v296 = vld [vmem:[#allocation2 + $0x1f8] sm:$0xff]
  %v297 = vld [vmem:[#allocation2 + $0x200] sm:$0xff]
  %v298 = vld [vmem:[#allocation2 + $0x210] sm:$0xff]
  %v299 = vld [vmem:[#allocation2 + $0x218] sm:$0xff]
  %v300 = vld [vmem:[#allocation2 + $0x228] sm:$0xff]
  %v301 = vld [vmem:[#allocation2 + $0x230] sm:$0xff]
  %v302 = vld [vmem:[#allocation2 + $0x240] sm:$0xff]
  %v303 = vld [vmem:[#allocation2 + $0x248] sm:$0xff]
  %v304 = vld [vmem:[#allocation2 + $0x258] sm:$0xff]
  %v305 = vld [vmem:[#allocation2 + $0x260] sm:$0xff]
  %v306 = vld [vmem:[#allocation2 + $0x270] sm:$0xff]
  %v307 = vld [vmem:[#allocation2 + $0x278] sm:$0xff]
  %v308 = vld [vmem:[#allocation2 + $0x288] sm:$0xff]
  %v309 = vld [vmem:[#allocation2 + $0x290] sm:$0xff]
  %v310 = vld [vmem:[#allocation2 + $0x2a0] sm:$0xff]
  %v311 = vld [vmem:[#allocation2 + $0x2a8] sm:$0xff]
  %v312 = vld [vmem:[#allocation2 + $0x2b8] sm:$0xff]
  %v313 = vld [vmem:[#allocation2 + $0x2c0] sm:$0xff]
  %v314 = vld [vmem:[#allocation2 + $0x2d0] sm:$0xff]
  %v315 = vld [vmem:[#allocation2 + $0x2d8] sm:$0xff]
  %v316 = vld [vmem:[#allocation2 + $0x2e8] sm:$0xff]
  %v317 = vld [vmem:[#allocation2 + $0x2f0] sm:$0xff]
  %v318 = vld [vmem:[#allocation2 + $0x300] sm:$0xff]
  %v319 = vld [vmem:[#allocation2 + $0x308] sm:$0xff]
  %v320 = vld [vmem:[#allocation2 + $0x318] sm:$0xff]
  %v321 = vld [vmem:[#allocation2 + $0x320] sm:$0xff]
  %v322 = vperm.slane %v256, 0
  %v323 = vmul.f32 %v258, %v322
  %v324 = vmul.f32 %v259, %v322
  %v325 = vmul.f32 %v260, %v322
  %v326 = vmul.f32 %v261, %v322
  %v327 = vmul.f32 %v262, %v322
  %v328 = vmul.f32 %v263, %v322
  %v329 = vmul.f32 %v264, %v322
  %v330 = vmul.f32 %v265, %v322
  %v331 = vmul.f32 %v266, %v322
  %v332 = vmul.f32 %v267, %v322
  %v333 = vmul.f32 %v268, %v322
  %v334 = vmul.f32 %v269, %v322
  %v335 = vmul.f32 %v270, %v322
  %v336 = vmul.f32 %v271, %v322
  %v337 = vmul.f32 %v272, %v322
  %v338 = vmul.f32 %v273, %v322
  %v339 = vmul.f32 %v274, %v322
  %v340 = vmul.f32 %v275, %v322
  %v341 = vmul.f32 %v276, %v322
  %v342 = vmul.f32 %v277, %v322
  %v343 = vmul.f32 %v278, %v322
  %v344 = vmul.f32 %v279, %v322
  %v345 = vmul.f32 %v280, %v322
  %v346 = vmul.f32 %v281, %v322
  %v347 = vmul.f32 %v282, %v322
  %v348 = vmul.f32 %v283, %v322
  %v349 = vmul.f32 %v284, %v322
  %v350 = vmul.f32 %v285, %v322
  %v351 = vmul.f32 %v286, %v322
  %v352 = vmul.f32 %v287, %v322
  %v353 = vmul.f32 %v288, %v322
  %v354 = vmul.f32 %v289, %v322
  %v355 = vmul.f32 %v290, %v322
  %v356 = vmul.f32 %v291, %v322
  %v357 = vmul.f32 %v292, %v322
  %v358 = vmul.f32 %v293, %v322
  %v359 = vmul.f32 %v294, %v322
  %v360 = vmul.f32 %v295, %v322
  %v361 = vmul.f32 %v296, %v322
  %v362 = vmul.f32 %v297, %v322
  %v363 = vmul.f32 %v298, %v322
  %v364 = vmul.f32 %v299, %v322
  %v365 = vmul.f32 %v300, %v322
  %v366 = vmul.f32 %v301, %v322
  %v367 = vmul.f32 %v302, %v322
  %v368 = vmul.f32 %v303, %v322
  %v369 = vmul.f32 %v304, %v322
  %v370 = vmul.f32 %v305, %v322
  %v371 = vmul.f32 %v306, %v322
  %v372 = vmul.f32 %v307, %v322
  %v373 = vmul.f32 %v308, %v322
  %v374 = vmul.f32 %v309, %v322
  %v375 = vmul.f32 %v310, %v322
  %v376 = vmul.f32 %v311, %v322
  %v377 = vmul.f32 %v312, %v322
  %v378 = vmul.f32 %v313, %v322
  %v379 = vmul.f32 %v314, %v322
  %v380 = vmul.f32 %v315, %v322
  %v381 = vmul.f32 %v316, %v322
  %v382 = vmul.f32 %v317, %v322
  %v383 = vmul.f32 %v318, %v322
  %v384 = vmul.f32 %v319, %v322
  %v385 = vmul.f32 %v320, %v322
  %v386 = vmul.f32 %v321, %v322
  %v387 = vadd.f32 %v323, 0.0
  %v388 = vadd.f32 %v324, 0.0
  %v389 = vadd.f32 %v325, 0.0
  %v390 = vadd.f32 %v326, 0.0
  %v391 = vadd.f32 %v327, 0.0
  %v392 = vadd.f32 %v328, 0.0
  %v393 = vadd.f32 %v329, 0.0
  %v394 = vadd.f32 %v330, 0.0
  %v395 = vadd.f32 %v331, 0.0
  %v396 = vadd.f32 %v332, 0.0
  %v397 = vadd.f32 %v333, 0.0
  %v398 = vadd.f32 %v334, 0.0
  %v399 = vadd.f32 %v335, 0.0
  %v400 = vadd.f32 %v336, 0.0
  %v401 = vadd.f32 %v337, 0.0
  %v402 = vadd.f32 %v338, 0.0
  %v403 = vadd.f32 %v339, 0.0
  %v404 = vadd.f32 %v340, 0.0
  %v405 = vadd.f32 %v341, 0.0
  %v406 = vadd.f32 %v342, 0.0
  %v407 = vadd.f32 %v343, 0.0
  %v408 = vadd.f32 %v344, 0.0
  %v409 = vadd.f32 %v345, 0.0
  %v410 = vadd.f32 %v346, 0.0
  %v411 = vadd.f32 %v347, 0.0
  %v412 = vadd.f32 %v348, 0.0
  %v413 = vadd.f32 %v349, 0.0
  %v414 = vadd.f32 %v350, 0.0
  %v415 = vadd.f32 %v351, 0.0
  %v416 = vadd.f32 %v352, 0.0
  %v417 = vadd.f32 %v353, 0.0
  %v418 = vadd.f32 %v354, 0.0
  %v419 = vadd.f32 %v355, 0.0
  %v420 = vadd.f32 %v356, 0.0
  %v421 = vadd.f32 %v357, 0.0
  %v422 = vadd.f32 %v358, 0.0
  %v423 = vadd.f32 %v359, 0.0
  %v424 = vadd.f32 %v360, 0.0
  %v425 = vadd.f32 %v361, 0.0
  %v426 = vadd.f32 %v362, 0.0
  %v427 = vadd.f32 %v363, 0.0
  %v428 = vadd.f32 %v364, 0.0
  %v429 = vadd.f32 %v365, 0.0
  %v430 = vadd.f32 %v366, 0.0
  %v431 = vadd.f32 %v367, 0.0
  %v432 = vadd.f32 %v368, 0.0
  %v433 = vadd.f32 %v369, 0.0
  %v434 = vadd.f32 %v370, 0.0
  %v435 = vadd.f32 %v371, 0.0
  %v436 = vadd.f32 %v372, 0.0
  %v437 = vadd.f32 %v373, 0.0
  %v438 = vadd.f32 %v374, 0.0
  %v439 = vadd.f32 %v375, 0.0
  %v440 = vadd.f32 %v376, 0.0
  %v441 = vadd.f32 %v377, 0.0
  %v442 = vadd.f32 %v378, 0.0
  %v443 = vadd.f32 %v379, 0.0
  %v444 = vadd.f32 %v380, 0.0
  %v445 = vadd.f32 %v381, 0.0
  %v446 = vadd.f32 %v382, 0.0
  %v447 = vadd.f32 %v383, 0.0
  %v448 = vadd.f32 %v384, 0.0
  %v449 = vadd.f32 %v385, 0.0
  %v450 = vadd.f32 %v386, 0.0
  %v451 = vld [vmem:[#allocation2 + $0x1] sm:$0xff]
  %v452 = vld [vmem:[#allocation2 + $0x9] sm:$0xff]
  %v453 = vld [vmem:[#allocation2 + $0x19] sm:$0xff]
  %v454 = vld [vmem:[#allocation2 + $0x21] sm:$0xff]
  %v455 = vld [vmem:[#allocation2 + $0x31] sm:$0xff]
  %v456 = vld [vmem:[#allocation2 + $0x39] sm:$0xff]
  %v457 = vld [vmem:[#allocation2 + $0x49] sm:$0xff]
  %v458 = vld [vmem:[#allocation2 + $0x51] sm:$0xff]
  %v459 = vld [vmem:[#allocation2 + $0x61] sm:$0xff]
  %v460 = vld [vmem:[#allocation2 + $0x69] sm:$0xff]
  %v461 = vld [vmem:[#allocation2 + $0x79] sm:$0xff]
  %v462 = vld [vmem:[#allocation2 + $0x81] sm:$0xff]
  %v463 = vld [vmem:[#allocation2 + $0x91] sm:$0xff]
  %v464 = vld [vmem:[#allocation2 + $0x99] sm:$0xff]
  %v465 = vld [vmem:[#allocation2 + $0xa9] sm:$0xff]
  %v466 = vld [vmem:[#allocation2 + $0xb1] sm:$0xff]
  %v467 = vld [vmem:[#allocation2 + $0xc1] sm:$0xff]
  %v468 = vld [vmem:[#allocation2 + $0xc9] sm:$0xff]
  %v469 = vld [vmem:[#allocation2 + $0xd9] sm:$0xff]
  %v470 = vld [vmem:[#allocation2 + $0xe1] sm:$0xff]
  %v471 = vld [vmem:[#allocation2 + $0xf1] sm:$0xff]
  %v472 = vld [vmem:[#allocation2 + $0xf9] sm:$0xff]
  %v473 = vld [vmem:[#allocation2 + $0x109] sm:$0xff]
  %v474 = vld [vmem:[#allocation2 + $0x111] sm:$0xff]
  %v475 = vld [vmem:[#allocation2 + $0x121] sm:$0xff]
  %v476 = vld [vmem:[#allocation2 + $0x129] sm:$0xff]
  %v477 = vld [vmem:[#allocation2 + $0x139] sm:$0xff]
  %v478 = vld [vmem:[#allocation2 + $0x141] sm:$0xff]
  %v479 = vld [vmem:[#allocation2 + $0x151] sm:$0xff]
  %v480 = vld [vmem:[#allocation2 + $0x159] sm:$0xff]
  %v481 = vld [vmem:[#allocation2 + $0x169] sm:$0xff]
  %v482 = vld [vmem:[#allocation2 + $0x171] sm:$0xff]
  %v483 = vld [vmem:[#allocation2 + $0x1b1] sm:$0xff]
  %v484 = vld [vmem:[#allocation2 + $0x1b9] sm:$0xff]
  %v485 = vld [vmem:[#allocation2 + $0x1c9] sm:$0xff]
  %v486 = vld [vmem:[#allocation2 + $0x1d1] sm:$0xff]
  %v487 = vld [vmem:[#allocation2 + $0x1e1] sm:$0xff]
  %v488 = vld [vmem:[#allocation2 + $0x1e9] sm:$0xff]
  %v489 = vld [vmem:[#allocation2 + $0x1f9] sm:$0xff]
  %v490 = vld [vmem:[#allocation2 + $0x201] sm:$0xff]
  %v491 = vld [vmem:[#allocation2 + $0x211] sm:$0xff]
  %v492 = vld [vmem:[#allocation2 + $0x219] sm:$0xff]
  %v493 = vld [vmem:[#allocation2 + $0x229] sm:$0xff]
  %v494 = vld [vmem:[#allocation2 + $0x231] sm:$0xff]
  %v495 = vld [vmem:[#allocation2 + $0x241] sm:$0xff]
  %v496 = vld [vmem:[#allocation2 + $0x249] sm:$0xff]
  %v497 = vld [vmem:[#allocation2 + $0x259] sm:$0xff]
  %v498 = vld [vmem:[#allocation2 + $0x261] sm:$0xff]
  %v499 = vld [vmem:[#allocation2 + $0x271] sm:$0xff]
  %v500 = vld [vmem:[#allocation2 + $0x279] sm:$0xff]
  %v501 = vld [vmem:[#allocation2 + $0x289] sm:$0xff]
  %v502 = vld [vmem:[#allocation2 + $0x291] sm:$0xff]
  %v503 = vld [vmem:[#allocation2 + $0x2a1] sm:$0xff]
  %v504 = vld [vmem:[#allocation2 + $0x2a9] sm:$0xff]
  %v505 = vld [vmem:[#allocation2 + $0x2b9] sm:$0xff]
  %v506 = vld [vmem:[#allocation2 + $0x2c1] sm:$0xff]
  %v507 = vld [vmem:[#allocation2 + $0x2d1] sm:$0xff]
  %v508 = vld [vmem:[#allocation2 + $0x2d9] sm:$0xff]
  %v509 = vld [vmem:[#allocation2 + $0x2e9] sm:$0xff]
  %v510 = vld [vmem:[#allocation2 + $0x2f1] sm:$0xff]
  %v511 = vld [vmem:[#allocation2 + $0x301] sm:$0xff]
  %v512 = vld [vmem:[#allocation2 + $0x309] sm:$0xff]
  %v513 = vld [vmem:[#allocation2 + $0x319] sm:$0xff]
  %v514 = vld [vmem:[#allocation2 + $0x321] sm:$0xff]
  %v515 = vperm.slane %v256, 1
  %v516 = vmul.f32 %v451, %v515
  %v517 = vmul.f32 %v452, %v515
  %v518 = vmul.f32 %v453, %v515
  %v519 = vmul.f32 %v454, %v515
  %v520 = vmul.f32 %v455, %v515
  %v521 = vmul.f32 %v456, %v515
  %v522 = vmul.f32 %v457, %v515
  %v523 = vmul.f32 %v458, %v515
  %v524 = vmul.f32 %v459, %v515
  %v525 = vmul.f32 %v460, %v515
  %v526 = vmul.f32 %v461, %v515
  %v527 = vmul.f32 %v462, %v515
  %v528 = vmul.f32 %v463, %v515
  %v529 = vmul.f32 %v464, %v515
  %v530 = vmul.f32 %v465, %v515
  %v531 = vmul.f32 %v466, %v515
  %v532 = vmul.f32 %v467, %v515
  %v533 = vmul.f32 %v468, %v515
  %v534 = vmul.f32 %v469, %v515
  %v535 = vmul.f32 %v470, %v515
  %v536 = vmul.f32 %v471, %v515
  %v537 = vmul.f32 %v472, %v515
  %v538 = vmul.f32 %v473, %v515
  %v539 = vmul.f32 %v474, %v515
  %v540 = vmul.f32 %v475, %v515
  %v541 = vmul.f32 %v476, %v515
  %v542 = vmul.f32 %v477, %v515
  %v543 = vmul.f32 %v478, %v515
  %v544 = vmul.f32 %v479, %v515
  %v545 = vmul.f32 %v480, %v515
  %v546 = vmul.f32 %v481, %v515
  %v547 = vmul.f32 %v482, %v515
  %v548 = vmul.f32 %v483, %v515
  %v549 = vmul.f32 %v484, %v515
  %v550 = vmul.f32 %v485, %v515
  %v551 = vmul.f32 %v486, %v515
  %v552 = vmul.f32 %v487, %v515
  %v553 = vmul.f32 %v488, %v515
  %v554 = vmul.f32 %v489, %v515
  %v555 = vmul.f32 %v490, %v515
  %v556 = vmul.f32 %v491, %v515
  %v557 = vmul.f32 %v492, %v515
  %v558 = vmul.f32 %v493, %v515
  %v559 = vmul.f32 %v494, %v515
  %v560 = vmul.f32 %v495, %v515
  %v561 = vmul.f32 %v496, %v515
  %v562 = vmul.f32 %v497, %v515
  %v563 = vmul.f32 %v498, %v515
  %v564 = vmul.f32 %v499, %v515
  %v565 = vmul.f32 %v500, %v515
  %v566 = vmul.f32 %v501, %v515
  %v567 = vmul.f32 %v502, %v515
  %v568 = vmul.f32 %v503, %v515
  %v569 = vmul.f32 %v504, %v515
  %v570 = vmul.f32 %v505, %v515
  %v571 = vmul.f32 %v506, %v515
  %v572 = vmul.f32 %v507, %v515
  %v573 = vmul.f32 %v508, %v515
  %v574 = vmul.f32 %v509, %v515
  %v575 = vmul.f32 %v510, %v515
  %v576 = vmul.f32 %v511, %v515
  %v577 = vmul.f32 %v512, %v515
  %v578 = vmul.f32 %v513, %v515
  %v579 = vmul.f32 %v514, %v515
  %v580 = vadd.f32 %v387, %v516
  %v581 = vadd.f32 %v388, %v517
  %v582 = vadd.f32 %v389, %v518
  %v583 = vadd.f32 %v390, %v519
  %v584 = vadd.f32 %v391, %v520
  %v585 = vadd.f32 %v392, %v521
  %v586 = vadd.f32 %v393, %v522
  %v587 = vadd.f32 %v394, %v523
  %v588 = vadd.f32 %v395, %v524
  %v589 = vadd.f32 %v396, %v525
  %v590 = vadd.f32 %v397, %v526
  %v591 = vadd.f32 %v398, %v527
  %v592 = vadd.f32 %v399, %v528
  %v593 = vadd.f32 %v400, %v529
  %v594 = vadd.f32 %v401, %v530
  %v595 = vadd.f32 %v402, %v531
  %v596 = vadd.f32 %v403, %v532
  %v597 = vadd.f32 %v404, %v533
  %v598 = vadd.f32 %v405, %v534
  %v599 = vadd.f32 %v406, %v535
  %v600 = vadd.f32 %v407, %v536
  %v601 = vadd.f32 %v408, %v537
  %v602 = vadd.f32 %v409, %v538
  %v603 = vadd.f32 %v410, %v539
  %v604 = vadd.f32 %v411, %v540
  %v605 = vadd.f32 %v412, %v541
  %v606 = vadd.f32 %v413, %v542
  %v607 = vadd.f32 %v414, %v543
  %v608 = vadd.f32 %v415, %v544
  %v609 = vadd.f32 %v416, %v545
  %v610 = vadd.f32 %v417, %v546
  %v611 = vadd.f32 %v418, %v547
  %v612 = vadd.f32 %v419, %v548
  %v613 = vadd.f32 %v420, %v549
  %v614 = vadd.f32 %v421, %v550
  %v615 = vadd.f32 %v422, %v551
  %v616 = vadd.f32 %v423, %v552
  %v617 = vadd.f32 %v424, %v553
  %v618 = vadd.f32 %v425, %v554
  %v619 = vadd.f32 %v426, %v555
  %v620 = vadd.f32 %v427, %v556
  %v621 = vadd.f32 %v428, %v557
  %v622 = vadd.f32 %v429, %v558
  %v623 = vadd.f32 %v430, %v559
  %v624 = vadd.f32 %v431, %v560
  %v625 = vadd.f32 %v432, %v561
  %v626 = vadd.f32 %v433, %v562
  %v627 = vadd.f32 %v434, %v563
  %v628 = vadd.f32 %v435, %v564
  %v629 = vadd.f32 %v436, %v565
  %v630 = vadd.f32 %v437, %v566
  %v631 = vadd.f32 %v438, %v567
  %v632 = vadd.f32 %v439, %v568
  %v633 = vadd.f32 %v440, %v569
  %v634 = vadd.f32 %v441, %v570
  %v635 = vadd.f32 %v442, %v571
  %v636 = vadd.f32 %v443, %v572
  %v637 = vadd.f32 %v444, %v573
  %v638 = vadd.f32 %v445, %v574
  %v639 = vadd.f32 %v446, %v575
  %v640 = vadd.f32 %v447, %v576
  %v641 = vadd.f32 %v448, %v577
  %v642 = vadd.f32 %v449, %v578
  %v643 = vadd.f32 %v450, %v579
  %v644 = vld [vmem:[#allocation2 + $0x2] sm:$0xff]
  %v645 = vld [vmem:[#allocation2 + $0xa] sm:$0xff]
  %v646 = vld [vmem:[#allocation2 + $0x1a] sm:$0xff]
  %v647 = vld [vmem:[#allocation2 + $0x22] sm:$0xff]
  %v648 = vld [vmem:[#allocation2 + $0x32] sm:$0xff]
  %v649 = vld [vmem:[#allocation2 + $0x3a] sm:$0xff]
  %v650 = vld [vmem:[#allocation2 + $0x4a] sm:$0xff]
  %v651 = vld [vmem:[#allocation2 + $0x52] sm:$0xff]
  %v652 = vld [vmem:[#allocation2 + $0x62] sm:$0xff]
  %v653 = vld [vmem:[#allocation2 + $0x6a] sm:$0xff]
  %v654 = vld [vmem:[#allocation2 + $0x7a] sm:$0xff]
  %v655 = vld [vmem:[#allocation2 + $0x82] sm:$0xff]
  %v656 = vld [vmem:[#allocation2 + $0x92] sm:$0xff]
  %v657 = vld [vmem:[#allocation2 + $0x9a] sm:$0xff]
  %v658 = vld [vmem:[#allocation2 + $0xaa] sm:$0xff]
  %v659 = vld [vmem:[#allocation2 + $0xb2] sm:$0xff]
  %v660 = vld [vmem:[#allocation2 + $0xc2] sm:$0xff]
  %v661 = vld [vmem:[#allocation2 + $0xca] sm:$0xff]
  %v662 = vld [vmem:[#allocation2 + $0xda] sm:$0xff]
  %v663 = vld [vmem:[#allocation2 + $0xe2] sm:$0xff]
  %v664 = vld [vmem:[#allocation2 + $0xf2] sm:$0xff]
  %v665 = vld [vmem:[#allocation2 + $0xfa] sm:$0xff]
  %v666 = vld [vmem:[#allocation2 + $0x10a] sm:$0xff]
  %v667 = vld [vmem:[#allocation2 + $0x112] sm:$0xff]
  %v668 = vld [vmem:[#allocation2 + $0x122] sm:$0xff]
  %v669 = vld [vmem:[#allocation2 + $0x12a] sm:$0xff]
  %v670 = vld [vmem:[#allocation2 + $0x13a] sm:$0xff]
  %v671 = vld [vmem:[#allocation2 + $0x142] sm:$0xff]
  %v672 = vld [vmem:[#allocation2 + $0x152] sm:$0xff]
  %v673 = vld [vmem:[#allocation2 + $0x15a] sm:$0xff]
  %v674 = vld [vmem:[#allocation2 + $0x16a] sm:$0xff]
  %v675 = vld [vmem:[#allocation2 + $0x172] sm:$0xff]
  %v676 = vld [vmem:[#allocation2 + $0x1b2] sm:$0xff]
  %v677 = vld [vmem:[#allocation2 + $0x1ba] sm:$0xff]
  %v678 = vld [vmem:[#allocation2 + $0x1ca] sm:$0xff]
  %v679 = vld [vmem:[#allocation2 + $0x1d2] sm:$0xff]
  %v680 = vld [vmem:[#allocation2 + $0x1e2] sm:$0xff]
  %v681 = vld [vmem:[#allocation2 + $0x1ea] sm:$0xff]
  %v682 = vld [vmem:[#allocation2 + $0x1fa] sm:$0xff]
  %v683 = vld [vmem:[#allocation2 + $0x202] sm:$0xff]
  %v684 = vld [vmem:[#allocation2 + $0x212] sm:$0xff]
  %v685 = vld [vmem:[#allocation2 + $0x21a] sm:$0xff]
  %v686 = vld [vmem:[#allocation2 + $0x22a] sm:$0xff]
  %v687 = vld [vmem:[#allocation2 + $0x232] sm:$0xff]
  %v688 = vld [vmem:[#allocation2 + $0x242] sm:$0xff]
  %v689 = vld [vmem:[#allocation2 + $0x24a] sm:$0xff]
  %v690 = vld [vmem:[#allocation2 + $0x25a] sm:$0xff]
  %v691 = vld [vmem:[#allocation2 + $0x262] sm:$0xff]
  %v692 = vld [vmem:[#allocation2 + $0x272] sm:$0xff]
  %v693 = vld [vmem:[#allocation2 + $0x27a] sm:$0xff]
  %v694 = vld [vmem:[#allocation2 + $0x28a] sm:$0xff]
  %v695 = vld [vmem:[#allocation2 + $0x292] sm:$0xff]
  %v696 = vld [vmem:[#allocation2 + $0x2a2] sm:$0xff]
  %v697 = vld [vmem:[#allocation2 + $0x2aa] sm:$0xff]
  %v698 = vld [vmem:[#allocation2 + $0x2ba] sm:$0xff]
  %v699 = vld [vmem:[#allocation2 + $0x2c2] sm:$0xff]
  %v700 = vld [vmem:[#allocation2 + $0x2d2] sm:$0xff]
  %v701 = vld [vmem:[#allocation2 + $0x2da] sm:$0xff]
  %v702 = vld [vmem:[#allocation2 + $0x2ea] sm:$0xff]
  %v703 = vld [vmem:[#allocation2 + $0x2f2] sm:$0xff]
  %v704 = vld [vmem:[#allocation2 + $0x302] sm:$0xff]
  %v705 = vld [vmem:[#allocation2 + $0x30a] sm:$0xff]
  %v706 = vld [vmem:[#allocation2 + $0x31a] sm:$0xff]
  %v707 = vld [vmem:[#allocation2 + $0x322] sm:$0xff]
  %v708 = vperm.slane %v256, 2
  %v709 = vmul.f32 %v644, %v708
  %v710 = vmul.f32 %v645, %v708
  %v711 = vmul.f32 %v646, %v708
  %v712 = vmul.f32 %v647, %v708
  %v713 = vmul.f32 %v648, %v708
  %v714 = vmul.f32 %v649, %v708
  %v715 = vmul.f32 %v650, %v708
  %v716 = vmul.f32 %v651, %v708
  %v717 = vmul.f32 %v652, %v708
  %v718 = vmul.f32 %v653, %v708
  %v719 = vmul.f32 %v654, %v708
  %v720 = vmul.f32 %v655, %v708
  %v721 = vmul.f32 %v656, %v708
  %v722 = vmul.f32 %v657, %v708
  %v723 = vmul.f32 %v658, %v708
  %v724 = vmul.f32 %v659, %v708
  %v725 = vmul.f32 %v660, %v708
  %v726 = vmul.f32 %v661, %v708
  %v727 = vmul.f32 %v662, %v708
  %v728 = vmul.f32 %v663, %v708
  %v729 = vmul.f32 %v664, %v708
  %v730 = vmul.f32 %v665, %v708
  %v731 = vmul.f32 %v666, %v708
  %v732 = vmul.f32 %v667, %v708
  %v733 = vmul.f32 %v668, %v708
  %v734 = vmul.f32 %v669, %v708
  %v735 = vmul.f32 %v670, %v708
  %v736 = vmul.f32 %v671, %v708
  %v737 = vmul.f32 %v672, %v708
  %v738 = vmul.f32 %v673, %v708
  %v739 = vmul.f32 %v674, %v708
  %v740 = vmul.f32 %v675, %v708
  %v741 = vmul.f32 %v676, %v708
  %v742 = vmul.f32 %v677, %v708
  %v743 = vmul.f32 %v678, %v708
  %v744 = vmul.f32 %v679, %v708
  %v745 = vmul.f32 %v680, %v708
  %v746 = vmul.f32 %v681, %v708
  %v747 = vmul.f32 %v682, %v708
  %v748 = vmul.f32 %v683, %v708
  %v749 = vmul.f32 %v684, %v708
  %v750 = vmul.f32 %v685, %v708
  %v751 = vmul.f32 %v686, %v708
  %v752 = vmul.f32 %v687, %v708
  %v753 = vmul.f32 %v688, %v708
  %v754 = vmul.f32 %v689, %v708
  %v755 = vmul.f32 %v690, %v708
  %v756 = vmul.f32 %v691, %v708
  %v757 = vmul.f32 %v692, %v708
  %v758 = vmul.f32 %v693, %v708
  %v759 = vmul.f32 %v694, %v708
  %v760 = vmul.f32 %v695, %v708
  %v761 = vmul.f32 %v696, %v708
  %v762 = vmul.f32 %v697, %v708
  %v763 = vmul.f32 %v698, %v708
  %v764 = vmul.f32 %v699, %v708
  %v765 = vmul.f32 %v700, %v708
  %v766 = vmul.f32 %v701, %v708
  %v767 = vmul.f32 %v702, %v708
  %v768 = vmul.f32 %v703, %v708
  %v769 = vmul.f32 %v704, %v708
  %v770 = vmul.f32 %v705, %v708
  %v771 = vmul.f32 %v706, %v708
  %v772 = vmul.f32 %v707, %v708
  %v773 = vadd.f32 %v580, %v709
  %v774 = vadd.f32 %v581, %v710
  %v775 = vadd.f32 %v582, %v711
  %v776 = vadd.f32 %v583, %v712
  %v777 = vadd.f32 %v584, %v713
  %v778 = vadd.f32 %v585, %v714
  %v779 = vadd.f32 %v586, %v715
  %v780 = vadd.f32 %v587, %v716
  %v781 = vadd.f32 %v588, %v717
  %v782 = vadd.f32 %v589, %v718
  %v783 = vadd.f32 %v590, %v719
  %v784 = vadd.f32 %v591, %v720
  %v785 = vadd.f32 %v592, %v721
  %v786 = vadd.f32 %v593, %v722
  %v787 = vadd.f32 %v594, %v723
  %v788 = vadd.f32 %v595, %v724
  %v789 = vadd.f32 %v596, %v725
  %v790 = vadd.f32 %v597, %v726
  %v791 = vadd.f32 %v598, %v727
  %v792 = vadd.f32 %v599, %v728
  %v793 = vadd.f32 %v600, %v729
  %v794 = vadd.f32 %v601, %v730
  %v795 = vadd.f32 %v602, %v731
  %v796 = vadd.f32 %v603, %v732
  %v797 = vadd.f32 %v604, %v733
  %v798 = vadd.f32 %v605, %v734
  %v799 = vadd.f32 %v606, %v735
  %v800 = vadd.f32 %v607, %v736
  %v801 = vadd.f32 %v608, %v737
  %v802 = vadd.f32 %v609, %v738
  %v803 = vadd.f32 %v610, %v739
  %v804 = vadd.f32 %v611, %v740
  %v805 = vadd.f32 %v612, %v741
  %v806 = vadd.f32 %v613, %v742
  %v807 = vadd.f32 %v614, %v743
  %v808 = vadd.f32 %v615, %v744
  %v809 = vadd.f32 %v616, %v745
  %v810 = vadd.f32 %v617, %v746
  %v811 = vadd.f32 %v618, %v747
  %v812 = vadd.f32 %v619, %v748
  %v813 = vadd.f32 %v620, %v749
  %v814 = vadd.f32 %v621, %v750
  %v815 = vadd.f32 %v622, %v751
  %v816 = vadd.f32 %v623, %v752
  %v817 = vadd.f32 %v624, %v753
  %v818 = vadd.f32 %v625, %v754
  %v819 = vadd.f32 %v626, %v755
  %v820 = vadd.f32 %v627, %v756
  %v821 = vadd.f32 %v628, %v757
  %v822 = vadd.f32 %v629, %v758
  %v823 = vadd.f32 %v630, %v759
  %v824 = vadd.f32 %v631, %v760
  %v825 = vadd.f32 %v632, %v761
  %v826 = vadd.f32 %v633, %v762
  %v827 = vadd.f32 %v634, %v763
  %v828 = vadd.f32 %v635, %v764
  %v829 = vadd.f32 %v636, %v765
  %v830 = vadd.f32 %v637, %v766
  %v831 = vadd.f32 %v638, %v767
  %v832 = vadd.f32 %v639, %v768
  %v833 = vadd.f32 %v640, %v769
  %v834 = vadd.f32 %v641, %v770
  %v835 = vadd.f32 %v642, %v771
  %v836 = vadd.f32 %v643, %v772
  %v837 = vld [vmem:[%s191] sm:$0xff]
  %v838 = vld [vmem:[%s191 + $0x8] sm:$0xff]
  %v839 = vld [vmem:[%s191 + $0x18] sm:$0xff]
  %v840 = vld [vmem:[%s191 + $0x20] sm:$0xff]
  %v841 = vld [vmem:[%s191 + $0x30] sm:$0xff]
  %v842 = vld [vmem:[%s191 + $0x38] sm:$0xff]
  %v843 = vld [vmem:[%s191 + $0x48] sm:$0xff]
  %v844 = vld [vmem:[%s191 + $0x50] sm:$0xff]
  %v845 = vld [vmem:[%s191 + $0x60] sm:$0xff]
  %v846 = vld [vmem:[%s191 + $0x68] sm:$0xff]
  %v847 = vld [vmem:[%s191 + $0x78] sm:$0xff]
  %v848 = vld [vmem:[%s191 + $0x80] sm:$0xff]
  %v849 = vld [vmem:[%s191 + $0x90] sm:$0xff]
  %v850 = vld [vmem:[%s191 + $0x98] sm:$0xff]
  %v851 = vld [vmem:[%s191 + $0xa8] sm:$0xff]
  %v852 = vld [vmem:[%s191 + $0xb0] sm:$0xff]
  %v853 = vld [vmem:[%s191 + $0xc0] sm:$0xff]
  %v854 = vld [vmem:[%s191 + $0xc8] sm:$0xff]
  %v855 = vld [vmem:[%s191 + $0xd8] sm:$0xff]
  %v856 = vld [vmem:[%s191 + $0xe0] sm:$0xff]
  %v857 = vld [vmem:[%s191 + $0xf0] sm:$0xff]
  %v858 = vld [vmem:[%s191 + $0xf8] sm:$0xff]
  %v859 = vld [vmem:[%s191 + $0x108] sm:$0xff]
  %v860 = vld [vmem:[%s191 + $0x110] sm:$0xff]
  %v861 = vld [vmem:[%s191 + $0x120] sm:$0xff]
  %v862 = vld [vmem:[%s191 + $0x128] sm:$0xff]
  %v863 = vld [vmem:[%s191 + $0x138] sm:$0xff]
  %v864 = vld [vmem:[%s191 + $0x140] sm:$0xff]
  %v865 = vld [vmem:[%s191 + $0x150] sm:$0xff]
  %v866 = vld [vmem:[%s191 + $0x158] sm:$0xff]
  %v867 = vld [vmem:[%s191 + $0x168] sm:$0xff]
  %v868 = vld [vmem:[%s191 + $0x170] sm:$0xff]
  %v869 = vld [vmem:[%s191 + $0x1b0] sm:$0xff]
  %v870 = vld [vmem:[%s191 + $0x1b8] sm:$0xff]
  %v871 = vld [vmem:[%s191 + $0x1c8] sm:$0xff]
  %v872 = vld [vmem:[%s191 + $0x1d0] sm:$0xff]
  %v873 = vld [vmem:[%s191 + $0x1e0] sm:$0xff]
  %v874 = vld [vmem:[%s191 + $0x1e8] sm:$0xff]
  %v875 = vld [vmem:[%s191 + $0x1f8] sm:$0xff]
  %v876 = vld [vmem:[%s191 + $0x200] sm:$0xff]
  %v877 = vld [vmem:[%s191 + $0x210] sm:$0xff]
  %v878 = vld [vmem:[%s191 + $0x218] sm:$0xff]
  %v879 = vld [vmem:[%s191 + $0x228] sm:$0xff]
  %v880 = vld [vmem:[%s191 + $0x230] sm:$0xff]
  %v881 = vld [vmem:[%s191 + $0x240] sm:$0xff]
  %v882 = vld [vmem:[%s191 + $0x248] sm:$0xff]
  %v883 = vld [vmem:[%s191 + $0x258] sm:$0xff]
  %v884 = vld [vmem:[%s191 + $0x260] sm:$0xff]
  %v885 = vld [vmem:[%s191 + $0x270] sm:$0xff]
  %v886 = vld [vmem:[%s191 + $0x278] sm:$0xff]
  %v887 = vld [vmem:[%s191 + $0x288] sm:$0xff]
  %v888 = vld [vmem:[%s191 + $0x290] sm:$0xff]
  %v889 = vld [vmem:[%s191 + $0x2a0] sm:$0xff]
  %v890 = vld [vmem:[%s191 + $0x2a8] sm:$0xff]
  %v891 = vld [vmem:[%s191 + $0x2b8] sm:$0xff]
  %v892 = vld [vmem:[%s191 + $0x2c0] sm:$0xff]
  %v893 = vld [vmem:[%s191 + $0x2d0] sm:$0xff]
  %v894 = vld [vmem:[%s191 + $0x2d8] sm:$0xff]
  %v895 = vld [vmem:[%s191 + $0x2e8] sm:$0xff]
  %v896 = vld [vmem:[%s191 + $0x2f0] sm:$0xff]
  %v897 = vld [vmem:[%s191 + $0x300] sm:$0xff]
  %v898 = vld [vmem:[%s191 + $0x308] sm:$0xff]
  %v899 = vld [vmem:[%s191 + $0x318] sm:$0xff]
  %v900 = vld [vmem:[%s191 + $0x320] sm:$0xff]
  %v901 = vperm.slane %v256, 3
  %v902 = vmul.f32 %v837, %v901
  %v903 = vmul.f32 %v838, %v901
  %v904 = vmul.f32 %v839, %v901
  %v905 = vmul.f32 %v840, %v901
  %v906 = vmul.f32 %v841, %v901
  %v907 = vmul.f32 %v842, %v901
  %v908 = vmul.f32 %v843, %v901
  %v909 = vmul.f32 %v844, %v901
  %v910 = vmul.f32 %v845, %v901
  %v911 = vmul.f32 %v846, %v901
  %v912 = vmul.f32 %v847, %v901
  %v913 = vmul.f32 %v848, %v901
  %v914 = vmul.f32 %v849, %v901
  %v915 = vmul.f32 %v850, %v901
  %v916 = vmul.f32 %v851, %v901
  %v917 = vmul.f32 %v852, %v901
  %v918 = vmul.f32 %v853, %v901
  %v919 = vmul.f32 %v854, %v901
  %v920 = vmul.f32 %v855, %v901
  %v921 = vmul.f32 %v856, %v901
  %v922 = vmul.f32 %v857, %v901
  %v923 = vmul.f32 %v858, %v901
  %v924 = vmul.f32 %v859, %v901
  %v925 = vmul.f32 %v860, %v901
  %v926 = vmul.f32 %v861, %v901
  %v927 = vmul.f32 %v862, %v901
  %v928 = vmul.f32 %v863, %v901
  %v929 = vmul.f32 %v864, %v901
  %v930 = vmul.f32 %v865, %v901
  %v931 = vmul.f32 %v866, %v901
  %v932 = vmul.f32 %v867, %v901
  %v933 = vmul.f32 %v868, %v901
  %v934 = vmul.f32 %v869, %v901
  %v935 = vmul.f32 %v870, %v901
  %v936 = vmul.f32 %v871, %v901
  %v937 = vmul.f32 %v872, %v901
  %v938 = vmul.f32 %v873, %v901
  %v939 = vmul.f32 %v874, %v901
  %v940 = vmul.f32 %v875, %v901
  %v941 = vmul.f32 %v876, %v901
  %v942 = vmul.f32 %v877, %v901
  %v943 = vmul.f32 %v878, %v901
  %v944 = vmul.f32 %v879, %v901
  %v945 = vmul.f32 %v880, %v901
  %v946 = vmul.f32 %v881, %v901
  %v947 = vmul.f32 %v882, %v901
  %v948 = vmul.f32 %v883, %v901
  %v949 = vmul.f32 %v884, %v901
  %v950 = vmul.f32 %v885, %v901
  %v951 = vmul.f32 %v886, %v901
  %v952 = vmul.f32 %v887, %v901
  %v953 = vmul.f32 %v888, %v901
  %v954 = vmul.f32 %v889, %v901
  %v955 = vmul.f32 %v890, %v901
  %v956 = vmul.f32 %v891, %v901
  %v957 = vmul.f32 %v892, %v901
  %v958 = vmul.f32 %v893, %v901
  %v959 = vmul.f32 %v894, %v901
  %v960 = vmul.f32 %v895, %v901
  %v961 = vmul.f32 %v896, %v901
  %v962 = vmul.f32 %v897, %v901
  %v963 = vmul.f32 %v898, %v901
  %v964 = vmul.f32 %v899, %v901
  %v965 = vmul.f32 %v900, %v901
  %v966 = vadd.f32 %v773, %v902
  %v967 = vadd.f32 %v774, %v903
  %v968 = vadd.f32 %v775, %v904
  %v969 = vadd.f32 %v776, %v905
  %v970 = vadd.f32 %v777, %v906
  %v971 = vadd.f32 %v778, %v907
  %v972 = vadd.f32 %v779, %v908
  %v973 = vadd.f32 %v780, %v909
  %v974 = vadd.f32 %v781, %v910
  %v975 = vadd.f32 %v782, %v911
  %v976 = vadd.f32 %v783, %v912
  %v977 = vadd.f32 %v784, %v913
  %v978 = vadd.f32 %v785, %v914
  %v979 = vadd.f32 %v786, %v915
  %v980 = vadd.f32 %v787, %v916
  %v981 = vadd.f32 %v788, %v917
  %v982 = vadd.f32 %v789, %v918
  %v983 = vadd.f32 %v790, %v919
  %v984 = vadd.f32 %v791, %v920
  %v985 = vadd.f32 %v792, %v921
  %v986 = vadd.f32 %v793, %v922
  %v987 = vadd.f32 %v794, %v923
  %v988 = vadd.f32 %v795, %v924
  %v989 = vadd.f32 %v796, %v925
  %v990 = vadd.f32 %v797, %v926
  %v991 = vadd.f32 %v798, %v927
  %v992 = vadd.f32 %v799, %v928
  %v993 = vadd.f32 %v800, %v929
  %v994 = vadd.f32 %v801, %v930
  %v995 = vadd.f32 %v802, %v931
  %v996 = vadd.f32 %v803, %v932
  %v997 = vadd.f32 %v804, %v933
  %v998 = vadd.f32 %v805, %v934
  %v999 = vadd.f32 %v806, %v935
  %v1000 = vadd.f32 %v807, %v936
  %v1001 = vadd.f32 %v808, %v937
  %v1002 = vadd.f32 %v809, %v938
  %v1003 = vadd.f32 %v810, %v939
  %v1004 = vadd.f32 %v811, %v940
  %v1005 = vadd.f32 %v812, %v941
  %v1006 = vadd.f32 %v813, %v942
  %v1007 = vadd.f32 %v814, %v943
  %v1008 = vadd.f32 %v815, %v944
  %v1009 = vadd.f32 %v816, %v945
  %v1010 = vadd.f32 %v817, %v946
  %v1011 = vadd.f32 %v818, %v947
  %v1012 = vadd.f32 %v819, %v948
  %v1013 = vadd.f32 %v820, %v949
  %v1014 = vadd.f32 %v821, %v950
  %v1015 = vadd.f32 %v822, %v951
  %v1016 = vadd.f32 %v823, %v952
  %v1017 = vadd.f32 %v824, %v953
  %v1018 = vadd.f32 %v825, %v954
  %v1019 = vadd.f32 %v826, %v955
  %v1020 = vadd.f32 %v827, %v956
  %v1021 = vadd.f32 %v828, %v957
  %v1022 = vadd.f32 %v829, %v958
  %v1023 = vadd.f32 %v830, %v959
  %v1024 = vadd.f32 %v831, %v960
  %v1025 = vadd.f32 %v832, %v961
  %v1026 = vadd.f32 %v833, %v962
  %v1027 = vadd.f32 %v834, %v963
  %v1028 = vadd.f32 %v835, %v964
  %v1029 = vadd.f32 %v836, %v965
  %v1030 = vld [vmem:[%s191 + $0x1] sm:$0xff]
  %v1031 = vld [vmem:[%s191 + $0x9] sm:$0xff]
  %v1032 = vld [vmem:[%s191 + $0x19] sm:$0xff]
  %v1033 = vld [vmem:[%s191 + $0x21] sm:$0xff]
  %v1034 = vld [vmem:[%s191 + $0x31] sm:$0xff]
  %v1035 = vld [vmem:[%s191 + $0x39] sm:$0xff]
  %v1036 = vld [vmem:[%s191 + $0x49] sm:$0xff]
  %v1037 = vld [vmem:[%s191 + $0x51] sm:$0xff]
  %v1038 = vld [vmem:[%s191 + $0x61] sm:$0xff]
  %v1039 = vld [vmem:[%s191 + $0x69] sm:$0xff]
  %v1040 = vld [vmem:[%s191 + $0x79] sm:$0xff]
  %v1041 = vld [vmem:[%s191 + $0x81] sm:$0xff]
  %v1042 = vld [vmem:[%s191 + $0x91] sm:$0xff]
  %v1043 = vld [vmem:[%s191 + $0x99] sm:$0xff]
  %v1044 = vld [vmem:[%s191 + $0xa9] sm:$0xff]
  %v1045 = vld [vmem:[%s191 + $0xb1] sm:$0xff]
  %v1046 = vld [vmem:[%s191 + $0xc1] sm:$0xff]
  %v1047 = vld [vmem:[%s191 + $0xc9] sm:$0xff]
  %v1048 = vld [vmem:[%s191 + $0xd9] sm:$0xff]
  %v1049 = vld [vmem:[%s191 + $0xe1] sm:$0xff]
  %v1050 = vld [vmem:[%s191 + $0xf1] sm:$0xff]
  %v1051 = vld [vmem:[%s191 + $0xf9] sm:$0xff]
  %v1052 = vld [vmem:[%s191 + $0x109] sm:$0xff]
  %v1053 = vld [vmem:[%s191 + $0x111] sm:$0xff]
  %v1054 = vld [vmem:[%s191 + $0x121] sm:$0xff]
  %v1055 = vld [vmem:[%s191 + $0x129] sm:$0xff]
  %v1056 = vld [vmem:[%s191 + $0x139] sm:$0xff]
  %v1057 = vld [vmem:[%s191 + $0x141] sm:$0xff]
  %v1058 = vld [vmem:[%s191 + $0x151] sm:$0xff]
  %v1059 = vld [vmem:[%s191 + $0x159] sm:$0xff]
  %v1060 = vld [vmem:[%s191 + $0x169] sm:$0xff]
  %v1061 = vld [vmem:[%s191 + $0x171] sm:$0xff]
  %v1062 = vld [vmem:[%s191 + $0x1b1] sm:$0xff]
  %v1063 = vld [vmem:[%s191 + $0x1b9] sm:$0xff]
  %v1064 = vld [vmem:[%s191 + $0x1c9] sm:$0xff]
  %v1065 = vld [vmem:[%s191 + $0x1d1] sm:$0xff]
  %v1066 = vld [vmem:[%s191 + $0x1e1] sm:$0xff]
  %v1067 = vld [vmem:[%s191 + $0x1e9] sm:$0xff]
  %v1068 = vld [vmem:[%s191 + $0x1f9] sm:$0xff]
  %v1069 = vld [vmem:[%s191 + $0x201] sm:$0xff]
  %v1070 = vld [vmem:[%s191 + $0x211] sm:$0xff]
  %v1071 = vld [vmem:[%s191 + $0x219] sm:$0xff]
  %v1072 = vld [vmem:[%s191 + $0x229] sm:$0xff]
  %v1073 = vld [vmem:[%s191 + $0x231] sm:$0xff]
  %v1074 = vld [vmem:[%s191 + $0x241] sm:$0xff]
  %v1075 = vld [vmem:[%s191 + $0x249] sm:$0xff]
  %v1076 = vld [vmem:[%s191 + $0x259] sm:$0xff]
  %v1077 = vld [vmem:[%s191 + $0x261] sm:$0xff]
  %v1078 = vld [vmem:[%s191 + $0x271] sm:$0xff]
  %v1079 = vld [vmem:[%s191 + $0x279] sm:$0xff]
  %v1080 = vld [vmem:[%s191 + $0x289] sm:$0xff]
  %v1081 = vld [vmem:[%s191 + $0x291] sm:$0xff]
  %v1082 = vld [vmem:[%s191 + $0x2a1] sm:$0xff]
  %v1083 = vld [vmem:[%s191 + $0x2a9] sm:$0xff]
  %v1084 = vld [vmem:[%s191 + $0x2b9] sm:$0xff]
  %v1085 = vld [vmem:[%s191 + $0x2c1] sm:$0xff]
  %v1086 = vld [vmem:[%s191 + $0x2d1] sm:$0xff]
  %v1087 = vld [vmem:[%s191 + $0x2d9] sm:$0xff]
  %v1088 = vld [vmem:[%s191 + $0x2e9] sm:$0xff]
  %v1089 = vld [vmem:[%s191 + $0x2f1] sm:$0xff]
  %v1090 = vld [vmem:[%s191 + $0x301] sm:$0xff]
  %v1091 = vld [vmem:[%s191 + $0x309] sm:$0xff]
  %v1092 = vld [vmem:[%s191 + $0x319] sm:$0xff]
  %v1093 = vld [vmem:[%s191 + $0x321] sm:$0xff]
  %v1094 = vperm.slane %v256, 4
  %v1095 = vmul.f32 %v1030, %v1094
  %v1096 = vmul.f32 %v1031, %v1094
  %v1097 = vmul.f32 %v1032, %v1094
  %v1098 = vmul.f32 %v1033, %v1094
  %v1099 = vmul.f32 %v1034, %v1094
  %v1100 = vmul.f32 %v1035, %v1094
  %v1101 = vmul.f32 %v1036, %v1094
  %v1102 = vmul.f32 %v1037, %v1094
  %v1103 = vmul.f32 %v1038, %v1094
  %v1104 = vmul.f32 %v1039, %v1094
  %v1105 = vmul.f32 %v1040, %v1094
  %v1106 = vmul.f32 %v1041, %v1094
  %v1107 = vmul.f32 %v1042, %v1094
  %v1108 = vmul.f32 %v1043, %v1094
  %v1109 = vmul.f32 %v1044, %v1094
  %v1110 = vmul.f32 %v1045, %v1094
  %v1111 = vmul.f32 %v1046, %v1094
  %v1112 = vmul.f32 %v1047, %v1094
  %v1113 = vmul.f32 %v1048, %v1094
  %v1114 = vmul.f32 %v1049, %v1094
  %v1115 = vmul.f32 %v1050, %v1094
  %v1116 = vmul.f32 %v1051, %v1094
  %v1117 = vmul.f32 %v1052, %v1094
  %v1118 = vmul.f32 %v1053, %v1094
  %v1119 = vmul.f32 %v1054, %v1094
  %v1120 = vmul.f32 %v1055, %v1094
  %v1121 = vmul.f32 %v1056, %v1094
  %v1122 = vmul.f32 %v1057, %v1094
  %v1123 = vmul.f32 %v1058, %v1094
  %v1124 = vmul.f32 %v1059, %v1094
  %v1125 = vmul.f32 %v1060, %v1094
  %v1126 = vmul.f32 %v1061, %v1094
  %v1127 = vmul.f32 %v1062, %v1094
  %v1128 = vmul.f32 %v1063, %v1094
  %v1129 = vmul.f32 %v1064, %v1094
  %v1130 = vmul.f32 %v1065, %v1094
  %v1131 = vmul.f32 %v1066, %v1094
  %v1132 = vmul.f32 %v1067, %v1094
  %v1133 = vmul.f32 %v1068, %v1094
  %v1134 = vmul.f32 %v1069, %v1094
  %v1135 = vmul.f32 %v1070, %v1094
  %v1136 = vmul.f32 %v1071, %v1094
  %v1137 = vmul.f32 %v1072, %v1094
  %v1138 = vmul.f32 %v1073, %v1094
  %v1139 = vmul.f32 %v1074, %v1094
  %v1140 = vmul.f32 %v1075, %v1094
  %v1141 = vmul.f32 %v1076, %v1094
  %v1142 = vmul.f32 %v1077, %v1094
  %v1143 = vmul.f32 %v1078, %v1094
  %v1144 = vmul.f32 %v1079, %v1094
  %v1145 = vmul.f32 %v1080, %v1094
  %v1146 = vmul.f32 %v1081, %v1094
  %v1147 = vmul.f32 %v1082, %v1094
  %v1148 = vmul.f32 %v1083, %v1094
  %v1149 = vmul.f32 %v1084, %v1094
  %v1150 = vmul.f32 %v1085, %v1094
  %v1151 = vmul.f32 %v1086, %v1094
  %v1152 = vmul.f32 %v1087, %v1094
  %v1153 = vmul.f32 %v1088, %v1094
  %v1154 = vmul.f32 %v1089, %v1094
  %v1155 = vmul.f32 %v1090, %v1094
  %v1156 = vmul.f32 %v1091, %v1094
  %v1157 = vmul.f32 %v1092, %v1094
  %v1158 = vmul.f32 %v1093, %v1094
  %v1159 = vadd.f32 %v966, %v1095
  %v1160 = vadd.f32 %v967, %v1096
  %v1161 = vadd.f32 %v968, %v1097
  %v1162 = vadd.f32 %v969, %v1098
  %v1163 = vadd.f32 %v970, %v1099
  %v1164 = vadd.f32 %v971, %v1100
  %v1165 = vadd.f32 %v972, %v1101
  %v1166 = vadd.f32 %v973, %v1102
  %v1167 = vadd.f32 %v974, %v1103
  %v1168 = vadd.f32 %v975, %v1104
  %v1169 = vadd.f32 %v976, %v1105
  %v1170 = vadd.f32 %v977, %v1106
  %v1171 = vadd.f32 %v978, %v1107
  %v1172 = vadd.f32 %v979, %v1108
  %v1173 = vadd.f32 %v980, %v1109
  %v1174 = vadd.f32 %v981, %v1110
  %v1175 = vadd.f32 %v982, %v1111
  %v1176 = vadd.f32 %v983, %v1112
  %v1177 = vadd.f32 %v984, %v1113
  %v1178 = vadd.f32 %v985, %v1114
  %v1179 = vadd.f32 %v986, %v1115
  %v1180 = vadd.f32 %v987, %v1116
  %v1181 = vadd.f32 %v988, %v1117
  %v1182 = vadd.f32 %v989, %v1118
  %v1183 = vadd.f32 %v990, %v1119
  %v1184 = vadd.f32 %v991, %v1120
  %v1185 = vadd.f32 %v992, %v1121
  %v1186 = vadd.f32 %v993, %v1122
  %v1187 = vadd.f32 %v994, %v1123
  %v1188 = vadd.f32 %v995, %v1124
  %v1189 = vadd.f32 %v996, %v1125
  %v1190 = vadd.f32 %v997, %v1126
  %v1191 = vadd.f32 %v998, %v1127
  %v1192 = vadd.f32 %v999, %v1128
  %v1193 = vadd.f32 %v1000, %v1129
  %v1194 = vadd.f32 %v1001, %v1130
  %v1195 = vadd.f32 %v1002, %v1131
  %v1196 = vadd.f32 %v1003, %v1132
  %v1197 = vadd.f32 %v1004, %v1133
  %v1198 = vadd.f32 %v1005, %v1134
  %v1199 = vadd.f32 %v1006, %v1135
  %v1200 = vadd.f32 %v1007, %v1136
  %v1201 = vadd.f32 %v1008, %v1137
  %v1202 = vadd.f32 %v1009, %v1138
  %v1203 = vadd.f32 %v1010, %v1139
  %v1204 = vadd.f32 %v1011, %v1140
  %v1205 = vadd.f32 %v1012, %v1141
  %v1206 = vadd.f32 %v1013, %v1142
  %v1207 = vadd.f32 %v1014, %v1143
  %v1208 = vadd.f32 %v1015, %v1144
  %v1209 = vadd.f32 %v1016, %v1145
  %v1210 = vadd.f32 %v1017, %v1146
  %v1211 = vadd.f32 %v1018, %v1147
  %v1212 = vadd.f32 %v1019, %v1148
  %v1213 = vadd.f32 %v1020, %v1149
  %v1214 = vadd.f32 %v1021, %v1150
  %v1215 = vadd.f32 %v1022, %v1151
  %v1216 = vadd.f32 %v1023, %v1152
  %v1217 = vadd.f32 %v1024, %v1153
  %v1218 = vadd.f32 %v1025, %v1154
  %v1219 = vadd.f32 %v1026, %v1155
  %v1220 = vadd.f32 %v1027, %v1156
  %v1221 = vadd.f32 %v1028, %v1157
  %v1222 = vadd.f32 %v1029, %v1158
  %v1223 = vld [vmem:[%s191 + $0x2] sm:$0xff]
  %v1224 = vld [vmem:[%s191 + $0xa] sm:$0xff]
  %v1225 = vld [vmem:[%s191 + $0x1a] sm:$0xff]
  %v1226 = vld [vmem:[%s191 + $0x22] sm:$0xff]
  %v1227 = vld [vmem:[%s191 + $0x32] sm:$0xff]
  %v1228 = vld [vmem:[%s191 + $0x3a] sm:$0xff]
  %v1229 = vld [vmem:[%s191 + $0x4a] sm:$0xff]
  %v1230 = vld [vmem:[%s191 + $0x52] sm:$0xff]
  %v1231 = vld [vmem:[%s191 + $0x62] sm:$0xff]
  %v1232 = vld [vmem:[%s191 + $0x6a] sm:$0xff]
  %v1233 = vld [vmem:[%s191 + $0x7a] sm:$0xff]
  %v1234 = vld [vmem:[%s191 + $0x82] sm:$0xff]
  %v1235 = vld [vmem:[%s191 + $0x92] sm:$0xff]
  %v1236 = vld [vmem:[%s191 + $0x9a] sm:$0xff]
  %v1237 = vld [vmem:[%s191 + $0xaa] sm:$0xff]
  %v1238 = vld [vmem:[%s191 + $0xb2] sm:$0xff]
  %v1239 = vld [vmem:[%s191 + $0xc2] sm:$0xff]
  %v1240 = vld [vmem:[%s191 + $0xca] sm:$0xff]
  %v1241 = vld [vmem:[%s191 + $0xda] sm:$0xff]
  %v1242 = vld [vmem:[%s191 + $0xe2] sm:$0xff]
  %v1243 = vld [vmem:[%s191 + $0xf2] sm:$0xff]
  %v1244 = vld [vmem:[%s191 + $0xfa] sm:$0xff]
  %v1245 = vld [vmem:[%s191 + $0x10a] sm:$0xff]
  %v1246 = vld [vmem:[%s191 + $0x112] sm:$0xff]
  %v1247 = vld [vmem:[%s191 + $0x122] sm:$0xff]
  %v1248 = vld [vmem:[%s191 + $0x12a] sm:$0xff]
  %v1249 = vld [vmem:[%s191 + $0x13a] sm:$0xff]
  %v1250 = vld [vmem:[%s191 + $0x142] sm:$0xff]
  %v1251 = vld [vmem:[%s191 + $0x152] sm:$0xff]
  %v1252 = vld [vmem:[%s191 + $0x15a] sm:$0xff]
  %v1253 = vld [vmem:[%s191 + $0x16a] sm:$0xff]
  %v1254 = vld [vmem:[%s191 + $0x172] sm:$0xff]
  %v1255 = vld [vmem:[%s191 + $0x1b2] sm:$0xff]
  %v1256 = vld [vmem:[%s191 + $0x1ba] sm:$0xff]
  %v1257 = vld [vmem:[%s191 + $0x1ca] sm:$0xff]
  %v1258 = vld [vmem:[%s191 + $0x1d2] sm:$0xff]
  %v1259 = vld [vmem:[%s191 + $0x1e2] sm:$0xff]
  %v1260 = vld [vmem:[%s191 + $0x1ea] sm:$0xff]
  %v1261 = vld [vmem:[%s191 + $0x1fa] sm:$0xff]
  %v1262 = vld [vmem:[%s191 + $0x202] sm:$0xff]
  %v1263 = vld [vmem:[%s191 + $0x212] sm:$0xff]
  %v1264 = vld [vmem:[%s191 + $0x21a] sm:$0xff]
  %v1265 = vld [vmem:[%s191 + $0x22a] sm:$0xff]
  %v1266 = vld [vmem:[%s191 + $0x232] sm:$0xff]
  %v1267 = vld [vmem:[%s191 + $0x242] sm:$0xff]
  %v1268 = vld [vmem:[%s191 + $0x24a] sm:$0xff]
  %v1269 = vld [vmem:[%s191 + $0x25a] sm:$0xff]
  %v1270 = vld [vmem:[%s191 + $0x262] sm:$0xff]
  %v1271 = vld [vmem:[%s191 + $0x272] sm:$0xff]
  %v1272 = vld [vmem:[%s191 + $0x27a] sm:$0xff]
  %v1273 = vld [vmem:[%s191 + $0x28a] sm:$0xff]
  %v1274 = vld [vmem:[%s191 + $0x292] sm:$0xff]
  %v1275 = vld [vmem:[%s191 + $0x2a2] sm:$0xff]
  %v1276 = vld [vmem:[%s191 + $0x2aa] sm:$0xff]
  %v1277 = vld [vmem:[%s191 + $0x2ba] sm:$0xff]
  %v1278 = vld [vmem:[%s191 + $0x2c2] sm:$0xff]
  %v1279 = vld [vmem:[%s191 + $0x2d2] sm:$0xff]
  %v1280 = vld [vmem:[%s191 + $0x2da] sm:$0xff]
  %v1281 = vld [vmem:[%s191 + $0x2ea] sm:$0xff]
  %v1282 = vld [vmem:[%s191 + $0x2f2] sm:$0xff]
  %v1283 = vld [vmem:[%s191 + $0x302] sm:$0xff]
  %v1284 = vld [vmem:[%s191 + $0x30a] sm:$0xff]
  %v1285 = vld [vmem:[%s191 + $0x31a] sm:$0xff]
  %v1286 = vld [vmem:[%s191 + $0x322] sm:$0xff]
  %v1287 = vperm.slane %v256, 5
  %v1288 = vmul.f32 %v1223, %v1287
  %v1289 = vmul.f32 %v1224, %v1287
  %v1290 = vmul.f32 %v1225, %v1287
  %v1291 = vmul.f32 %v1226, %v1287
  %v1292 = vmul.f32 %v1227, %v1287
  %v1293 = vmul.f32 %v1228, %v1287
  %v1294 = vmul.f32 %v1229, %v1287
  %v1295 = vmul.f32 %v1230, %v1287
  %v1296 = vmul.f32 %v1231, %v1287
  %v1297 = vmul.f32 %v1232, %v1287
  %v1298 = vmul.f32 %v1233, %v1287
  %v1299 = vmul.f32 %v1234, %v1287
  %v1300 = vmul.f32 %v1235, %v1287
  %v1301 = vmul.f32 %v1236, %v1287
  %v1302 = vmul.f32 %v1237, %v1287
  %v1303 = vmul.f32 %v1238, %v1287
  %v1304 = vmul.f32 %v1239, %v1287
  %v1305 = vmul.f32 %v1240, %v1287
  %v1306 = vmul.f32 %v1241, %v1287
  %v1307 = vmul.f32 %v1242, %v1287
  %v1308 = vmul.f32 %v1243, %v1287
  %v1309 = vmul.f32 %v1244, %v1287
  %v1310 = vmul.f32 %v1245, %v1287
  %v1311 = vmul.f32 %v1246, %v1287
  %v1312 = vmul.f32 %v1247, %v1287
  %v1313 = vmul.f32 %v1248, %v1287
  %v1314 = vmul.f32 %v1249, %v1287
  %v1315 = vmul.f32 %v1250, %v1287
  %v1316 = vmul.f32 %v1251, %v1287
  %v1317 = vmul.f32 %v1252, %v1287
  %v1318 = vmul.f32 %v1253, %v1287
  %v1319 = vmul.f32 %v1254, %v1287
  %v1320 = vmul.f32 %v1255, %v1287
  %v1321 = vmul.f32 %v1256, %v1287
  %v1322 = vmul.f32 %v1257, %v1287
  %v1323 = vmul.f32 %v1258, %v1287
  %v1324 = vmul.f32 %v1259, %v1287
  %v1325 = vmul.f32 %v1260, %v1287
  %v1326 = vmul.f32 %v1261, %v1287
  %v1327 = vmul.f32 %v1262, %v1287
  %v1328 = vmul.f32 %v1263, %v1287
  %v1329 = vmul.f32 %v1264, %v1287
  %v1330 = vmul.f32 %v1265, %v1287
  %v1331 = vmul.f32 %v1266, %v1287
  %v1332 = vmul.f32 %v1267, %v1287
  %v1333 = vmul.f32 %v1268, %v1287
  %v1334 = vmul.f32 %v1269, %v1287
  %v1335 = vmul.f32 %v1270, %v1287
  %v1336 = vmul.f32 %v1271, %v1287
  %v1337 = vmul.f32 %v1272, %v1287
  %v1338 = vmul.f32 %v1273, %v1287
  %v1339 = vmul.f32 %v1274, %v1287
  %v1340 = vmul.f32 %v1275, %v1287
  %v1341 = vmul.f32 %v1276, %v1287
  %v1342 = vmul.f32 %v1277, %v1287
  %v1343 = vmul.f32 %v1278, %v1287
  %v1344 = vmul.f32 %v1279, %v1287
  %v1345 = vmul.f32 %v1280, %v1287
  %v1346 = vmul.f32 %v1281, %v1287
  %v1347 = vmul.f32 %v1282, %v1287
  %v1348 = vmul.f32 %v1283, %v1287
  %v1349 = vmul.f32 %v1284, %v1287
  %v1350 = vmul.f32 %v1285, %v1287
  %v1351 = vmul.f32 %v1286, %v1287
  %v1352 = vadd.f32 %v1159, %v1288
  %v1353 = vadd.f32 %v1160, %v1289
  %v1354 = vadd.f32 %v1161, %v1290
  %v1355 = vadd.f32 %v1162, %v1291
  %v1356 = vadd.f32 %v1163, %v1292
  %v1357 = vadd.f32 %v1164, %v1293
  %v1358 = vadd.f32 %v1165, %v1294
  %v1359 = vadd.f32 %v1166, %v1295
  %v1360 = vadd.f32 %v1167, %v1296
  %v1361 = vadd.f32 %v1168, %v1297
  %v1362 = vadd.f32 %v1169, %v1298
  %v1363 = vadd.f32 %v1170, %v1299
  %v1364 = vadd.f32 %v1171, %v1300
  %v1365 = vadd.f32 %v1172, %v1301
  %v1366 = vadd.f32 %v1173, %v1302
  %v1367 = vadd.f32 %v1174, %v1303
  %v1368 = vadd.f32 %v1175, %v1304
  %v1369 = vadd.f32 %v1176, %v1305
  %v1370 = vadd.f32 %v1177, %v1306
  %v1371 = vadd.f32 %v1178, %v1307
  %v1372 = vadd.f32 %v1179, %v1308
  %v1373 = vadd.f32 %v1180, %v1309
  %v1374 = vadd.f32 %v1181, %v1310
  %v1375 = vadd.f32 %v1182, %v1311
  %v1376 = vadd.f32 %v1183, %v1312
  %v1377 = vadd.f32 %v1184, %v1313
  %v1378 = vadd.f32 %v1185, %v1314
  %v1379 = vadd.f32 %v1186, %v1315
  %v1380 = vadd.f32 %v1187, %v1316
  %v1381 = vadd.f32 %v1188, %v1317
  %v1382 = vadd.f32 %v1189, %v1318
  %v1383 = vadd.f32 %v1190, %v1319
  %v1384 = vadd.f32 %v1191, %v1320
  %v1385 = vadd.f32 %v1192, %v1321
  %v1386 = vadd.f32 %v1193, %v1322
  %v1387 = vadd.f32 %v1194, %v1323
  %v1388 = vadd.f32 %v1195, %v1324
  %v1389 = vadd.f32 %v1196, %v1325
  %v1390 = vadd.f32 %v1197, %v1326
  %v1391 = vadd.f32 %v1198, %v1327
  %v1392 = vadd.f32 %v1199, %v1328
  %v1393 = vadd.f32 %v1200, %v1329
  %v1394 = vadd.f32 %v1201, %v1330
  %v1395 = vadd.f32 %v1202, %v1331
  %v1396 = vadd.f32 %v1203, %v1332
  %v1397 = vadd.f32 %v1204, %v1333
  %v1398 = vadd.f32 %v1205, %v1334
  %v1399 = vadd.f32 %v1206, %v1335
  %v1400 = vadd.f32 %v1207, %v1336
  %v1401 = vadd.f32 %v1208, %v1337
  %v1402 = vadd.f32 %v1209, %v1338
  %v1403 = vadd.f32 %v1210, %v1339
  %v1404 = vadd.f32 %v1211, %v1340
  %v1405 = vadd.f32 %v1212, %v1341
  %v1406 = vadd.f32 %v1213, %v1342
  %v1407 = vadd.f32 %v1214, %v1343
  %v1408 = vadd.f32 %v1215, %v1344
  %v1409 = vadd.f32 %v1216, %v1345
  %v1410 = vadd.f32 %v1217, %v1346
  %v1411 = vadd.f32 %v1218, %v1347
  %v1412 = vadd.f32 %v1219, %v1348
  %v1413 = vadd.f32 %v1220, %v1349
  %v1414 = vadd.f32 %v1221, %v1350
  %v1415 = vadd.f32 %v1222, %v1351
  %s1416 = scalar_lea.vmem [#allocation2], 48
  %v1417 = vld [vmem:[%s1416] sm:$0xff]
  %v1418 = vld [vmem:[%s1416 + $0x8] sm:$0xff]
  %v1419 = vld [vmem:[%s1416 + $0x18] sm:$0xff]
  %v1420 = vld [vmem:[%s1416 + $0x20] sm:$0xff]
  %v1421 = vld [vmem:[%s1416 + $0x30] sm:$0xff]
  %v1422 = vld [vmem:[%s1416 + $0x38] sm:$0xff]
  %v1423 = vld [vmem:[%s1416 + $0x48] sm:$0xff]
  %v1424 = vld [vmem:[%s1416 + $0x50] sm:$0xff]
  %v1425 = vld [vmem:[%s1416 + $0x60] sm:$0xff]
  %v1426 = vld [vmem:[%s1416 + $0x68] sm:$0xff]
  %v1427 = vld [vmem:[%s1416 + $0x78] sm:$0xff]
  %v1428 = vld [vmem:[%s1416 + $0x80] sm:$0xff]
  %v1429 = vld [vmem:[%s1416 + $0x90] sm:$0xff]
  %v1430 = vld [vmem:[%s1416 + $0x98] sm:$0xff]
  %v1431 = vld [vmem:[%s1416 + $0xa8] sm:$0xff]
  %v1432 = vld [vmem:[%s1416 + $0xb0] sm:$0xff]
  %v1433 = vld [vmem:[%s1416 + $0xc0] sm:$0xff]
  %v1434 = vld [vmem:[%s1416 + $0xc8] sm:$0xff]
  %v1435 = vld [vmem:[%s1416 + $0xd8] sm:$0xff]
  %v1436 = vld [vmem:[%s1416 + $0xe0] sm:$0xff]
  %v1437 = vld [vmem:[%s1416 + $0xf0] sm:$0xff]
  %v1438 = vld [vmem:[%s1416 + $0xf8] sm:$0xff]
  %v1439 = vld [vmem:[%s1416 + $0x108] sm:$0xff]
  %v1440 = vld [vmem:[%s1416 + $0x110] sm:$0xff]
  %v1441 = vld [vmem:[%s1416 + $0x120] sm:$0xff]
  %v1442 = vld [vmem:[%s1416 + $0x128] sm:$0xff]
  %v1443 = vld [vmem:[%s1416 + $0x138] sm:$0xff]
  %v1444 = vld [vmem:[%s1416 + $0x140] sm:$0xff]
  %v1445 = vld [vmem:[%s1416 + $0x150] sm:$0xff]
  %v1446 = vld [vmem:[%s1416 + $0x158] sm:$0xff]
  %v1447 = vld [vmem:[%s1416 + $0x168] sm:$0xff]
  %v1448 = vld [vmem:[%s1416 + $0x170] sm:$0xff]
  %v1449 = vld [vmem:[%s1416 + $0x1b0] sm:$0xff]
  %v1450 = vld [vmem:[%s1416 + $0x1b8] sm:$0xff]
  %v1451 = vld [vmem:[%s1416 + $0x1c8] sm:$0xff]
  %v1452 = vld [vmem:[%s1416 + $0x1d0] sm:$0xff]
  %v1453 = vld [vmem:[%s1416 + $0x1e0] sm:$0xff]
  %v1454 = vld [vmem:[%s1416 + $0x1e8] sm:$0xff]
  %v1455 = vld [vmem:[%s1416 + $0x1f8] sm:$0xff]
  %v1456 = vld [vmem:[%s1416 + $0x200] sm:$0xff]
  %v1457 = vld [vmem:[%s1416 + $0x210] sm:$0xff]
  %v1458 = vld [vmem:[%s1416 + $0x218] sm:$0xff]
  %v1459 = vld [vmem:[%s1416 + $0x228] sm:$0xff]
  %v1460 = vld [vmem:[%s1416 + $0x230] sm:$0xff]
  %v1461 = vld [vmem:[%s1416 + $0x240] sm:$0xff]
  %v1462 = vld [vmem:[%s1416 + $0x248] sm:$0xff]
  %v1463 = vld [vmem:[%s1416 + $0x258] sm:$0xff]
  %v1464 = vld [vmem:[%s1416 + $0x260] sm:$0xff]
  %v1465 = vld [vmem:[%s1416 + $0x270] sm:$0xff]
  %v1466 = vld [vmem:[%s1416 + $0x278] sm:$0xff]
  %v1467 = vld [vmem:[%s1416 + $0x288] sm:$0xff]
  %v1468 = vld [vmem:[%s1416 + $0x290] sm:$0xff]
  %v1469 = vld [vmem:[%s1416 + $0x2a0] sm:$0xff]
  %v1470 = vld [vmem:[%s1416 + $0x2a8] sm:$0xff]
  %v1471 = vld [vmem:[%s1416 + $0x2b8] sm:$0xff]
  %v1472 = vld [vmem:[%s1416 + $0x2c0] sm:$0xff]
  %v1473 = vld [vmem:[%s1416 + $0x2d0] sm:$0xff]
  %v1474 = vld [vmem:[%s1416 + $0x2d8] sm:$0xff]
  %v1475 = vld [vmem:[%s1416 + $0x2e8] sm:$0xff]
  %v1476 = vld [vmem:[%s1416 + $0x2f0] sm:$0xff]
  %v1477 = vld [vmem:[%s1416 + $0x300] sm:$0xff]
  %v1478 = vld [vmem:[%s1416 + $0x308] sm:$0xff]
  %v1479 = vld [vmem:[%s1416 + $0x318] sm:$0xff]
  %v1480 = vld [vmem:[%s1416 + $0x320] sm:$0xff]
  %v1481 = vperm.slane %v256, 6
  %v1482 = vmul.f32 %v1417, %v1481
  %v1483 = vmul.f32 %v1418, %v1481
  %v1484 = vmul.f32 %v1419, %v1481
  %v1485 = vmul.f32 %v1420, %v1481
  %v1486 = vmul.f32 %v1421, %v1481
  %v1487 = vmul.f32 %v1422, %v1481
  %v1488 = vmul.f32 %v1423, %v1481
  %v1489 = vmul.f32 %v1424, %v1481
  %v1490 = vmul.f32 %v1425, %v1481
  %v1491 = vmul.f32 %v1426, %v1481
  %v1492 = vmul.f32 %v1427, %v1481
  %v1493 = vmul.f32 %v1428, %v1481
  %v1494 = vmul.f32 %v1429, %v1481
  %v1495 = vmul.f32 %v1430, %v1481
  %v1496 = vmul.f32 %v1431, %v1481
  %v1497 = vmul.f32 %v1432, %v1481
  %v1498 = vmul.f32 %v1433, %v1481
  %v1499 = vmul.f32 %v1434, %v1481
  %v1500 = vmul.f32 %v1435, %v1481
  %v1501 = vmul.f32 %v1436, %v1481
  %v1502 = vmul.f32 %v1437, %v1481
  %v1503 = vmul.f32 %v1438, %v1481
  %v1504 = vmul.f32 %v1439, %v1481
  %v1505 = vmul.f32 %v1440, %v1481
  %v1506 = vmul.f32 %v1441, %v1481
  %v1507 = vmul.f32 %v1442, %v1481
  %v1508 = vmul.f32 %v1443, %v1481
  %v1509 = vmul.f32 %v1444, %v1481
  %v1510 = vmul.f32 %v1445, %v1481
  %v1511 = vmul.f32 %v1446, %v1481
  %v1512 = vmul.f32 %v1447, %v1481
  %v1513 = vmul.f32 %v1448, %v1481
  %v1514 = vmul.f32 %v1449, %v1481
  %v1515 = vmul.f32 %v1450, %v1481
  %v1516 = vmul.f32 %v1451, %v1481
  %v1517 = vmul.f32 %v1452, %v1481
  %v1518 = vmul.f32 %v1453, %v1481
  %v1519 = vmul.f32 %v1454, %v1481
  %v1520 = vmul.f32 %v1455, %v1481
  %v1521 = vmul.f32 %v1456, %v1481
  %v1522 = vmul.f32 %v1457, %v1481
  %v1523 = vmul.f32 %v1458, %v1481
  %v1524 = vmul.f32 %v1459, %v1481
  %v1525 = vmul.f32 %v1460, %v1481
  %v1526 = vmul.f32 %v1461, %v1481
  %v1527 = vmul.f32 %v1462, %v1481
  %v1528 = vmul.f32 %v1463, %v1481
  %v1529 = vmul.f32 %v1464, %v1481
  %v1530 = vmul.f32 %v1465, %v1481
  %v1531 = vmul.f32 %v1466, %v1481
  %v1532 = vmul.f32 %v1467, %v1481
  %v1533 = vmul.f32 %v1468, %v1481
  %v1534 = vmul.f32 %v1469, %v1481
  %v1535 = vmul.f32 %v1470, %v1481
  %v1536 = vmul.f32 %v1471, %v1481
  %v1537 = vmul.f32 %v1472, %v1481
  %v1538 = vmul.f32 %v1473, %v1481
  %v1539 = vmul.f32 %v1474, %v1481
  %v1540 = vmul.f32 %v1475, %v1481
  %v1541 = vmul.f32 %v1476, %v1481
  %v1542 = vmul.f32 %v1477, %v1481
  %v1543 = vmul.f32 %v1478, %v1481
  %v1544 = vmul.f32 %v1479, %v1481
  %v1545 = vmul.f32 %v1480, %v1481
  %v1546 = vadd.f32 %v1352, %v1482
  %v1547 = vadd.f32 %v1353, %v1483
  %v1548 = vadd.f32 %v1354, %v1484
  %v1549 = vadd.f32 %v1355, %v1485
  %v1550 = vadd.f32 %v1356, %v1486
  %v1551 = vadd.f32 %v1357, %v1487
  %v1552 = vadd.f32 %v1358, %v1488
  %v1553 = vadd.f32 %v1359, %v1489
  %v1554 = vadd.f32 %v1360, %v1490
  %v1555 = vadd.f32 %v1361, %v1491
  %v1556 = vadd.f32 %v1362, %v1492
  %v1557 = vadd.f32 %v1363, %v1493
  %v1558 = vadd.f32 %v1364, %v1494
  %v1559 = vadd.f32 %v1365, %v1495
  %v1560 = vadd.f32 %v1366, %v1496
  %v1561 = vadd.f32 %v1367, %v1497
  %v1562 = vadd.f32 %v1368, %v1498
  %v1563 = vadd.f32 %v1369, %v1499
  %v1564 = vadd.f32 %v1370, %v1500
  %v1565 = vadd.f32 %v1371, %v1501
  %v1566 = vadd.f32 %v1372, %v1502
  %v1567 = vadd.f32 %v1373, %v1503
  %v1568 = vadd.f32 %v1374, %v1504
  %v1569 = vadd.f32 %v1375, %v1505
  %v1570 = vadd.f32 %v1376, %v1506
  %v1571 = vadd.f32 %v1377, %v1507
  %v1572 = vadd.f32 %v1378, %v1508
  %v1573 = vadd.f32 %v1379, %v1509
  %v1574 = vadd.f32 %v1380, %v1510
  %v1575 = vadd.f32 %v1381, %v1511
  %v1576 = vadd.f32 %v1382, %v1512
  %v1577 = vadd.f32 %v1383, %v1513
  %v1578 = vadd.f32 %v1384, %v1514
  %v1579 = vadd.f32 %v1385, %v1515
  %v1580 = vadd.f32 %v1386, %v1516
  %v1581 = vadd.f32 %v1387, %v1517
  %v1582 = vadd.f32 %v1388, %v1518
  %v1583 = vadd.f32 %v1389, %v1519
  %v1584 = vadd.f32 %v1390, %v1520
  %v1585 = vadd.f32 %v1391, %v1521
  %v1586 = vadd.f32 %v1392, %v1522
  %v1587 = vadd.f32 %v1393, %v1523
  %v1588 = vadd.f32 %v1394, %v1524
  %v1589 = vadd.f32 %v1395, %v1525
  %v1590 = vadd.f32 %v1396, %v1526
  %v1591 = vadd.f32 %v1397, %v1527
  %v1592 = vadd.f32 %v1398, %v1528
  %v1593 = vadd.f32 %v1399, %v1529
  %v1594 = vadd.f32 %v1400, %v1530
  %v1595 = vadd.f32 %v1401, %v1531
  %v1596 = vadd.f32 %v1402, %v1532
  %v1597 = vadd.f32 %v1403, %v1533
  %v1598 = vadd.f32 %v1404, %v1534
  %v1599 = vadd.f32 %v1405, %v1535
  %v1600 = vadd.f32 %v1406, %v1536
  %v1601 = vadd.f32 %v1407, %v1537
  %v1602 = vadd.f32 %v1408, %v1538
  %v1603 = vadd.f32 %v1409, %v1539
  %v1604 = vadd.f32 %v1410, %v1540
  %v1605 = vadd.f32 %v1411, %v1541
  %v1606 = vadd.f32 %v1412, %v1542
  %v1607 = vadd.f32 %v1413, %v1543
  %v1608 = vadd.f32 %v1414, %v1544
  %v1609 = vadd.f32 %v1415, %v1545
  %v1610 = vld [vmem:[%s1416 + $0x1] sm:$0xff]
  %v1611 = vld [vmem:[%s1416 + $0x9] sm:$0xff]
  %v1612 = vld [vmem:[%s1416 + $0x19] sm:$0xff]
  %v1613 = vld [vmem:[%s1416 + $0x21] sm:$0xff]
  %v1614 = vld [vmem:[%s1416 + $0x31] sm:$0xff]
  %v1615 = vld [vmem:[%s1416 + $0x39] sm:$0xff]
  %v1616 = vld [vmem:[%s1416 + $0x49] sm:$0xff]
  %v1617 = vld [vmem:[%s1416 + $0x51] sm:$0xff]
  %v1618 = vld [vmem:[%s1416 + $0x61] sm:$0xff]
  %v1619 = vld [vmem:[%s1416 + $0x69] sm:$0xff]
  %v1620 = vld [vmem:[%s1416 + $0x79] sm:$0xff]
  %v1621 = vld [vmem:[%s1416 + $0x81] sm:$0xff]
  %v1622 = vld [vmem:[%s1416 + $0x91] sm:$0xff]
  %v1623 = vld [vmem:[%s1416 + $0x99] sm:$0xff]
  %v1624 = vld [vmem:[%s1416 + $0xa9] sm:$0xff]
  %v1625 = vld [vmem:[%s1416 + $0xb1] sm:$0xff]
  %v1626 = vld [vmem:[%s1416 + $0xc1] sm:$0xff]
  %v1627 = vld [vmem:[%s1416 + $0xc9] sm:$0xff]
  %v1628 = vld [vmem:[%s1416 + $0xd9] sm:$0xff]
  %v1629 = vld [vmem:[%s1416 + $0xe1] sm:$0xff]
  %v1630 = vld [vmem:[%s1416 + $0xf1] sm:$0xff]
  %v1631 = vld [vmem:[%s1416 + $0xf9] sm:$0xff]
  %v1632 = vld [vmem:[%s1416 + $0x109] sm:$0xff]
  %v1633 = vld [vmem:[%s1416 + $0x111] sm:$0xff]
  %v1634 = vld [vmem:[%s1416 + $0x121] sm:$0xff]
  %v1635 = vld [vmem:[%s1416 + $0x129] sm:$0xff]
  %v1636 = vld [vmem:[%s1416 + $0x139] sm:$0xff]
  %v1637 = vld [vmem:[%s1416 + $0x141] sm:$0xff]
  %v1638 = vld [vmem:[%s1416 + $0x151] sm:$0xff]
  %v1639 = vld [vmem:[%s1416 + $0x159] sm:$0xff]
  %v1640 = vld [vmem:[%s1416 + $0x169] sm:$0xff]
  %v1641 = vld [vmem:[%s1416 + $0x171] sm:$0xff]
  %v1642 = vld [vmem:[%s1416 + $0x1b1] sm:$0xff]
  %v1643 = vld [vmem:[%s1416 + $0x1b9] sm:$0xff]
  %v1644 = vld [vmem:[%s1416 + $0x1c9] sm:$0xff]
  %v1645 = vld [vmem:[%s1416 + $0x1d1] sm:$0xff]
  %v1646 = vld [vmem:[%s1416 + $0x1e1] sm:$0xff]
  %v1647 = vld [vmem:[%s1416 + $0x1e9] sm:$0xff]
  %v1648 = vld [vmem:[%s1416 + $0x1f9] sm:$0xff]
  %v1649 = vld [vmem:[%s1416 + $0x201] sm:$0xff]
  %v1650 = vld [vmem:[%s1416 + $0x211] sm:$0xff]
  %v1651 = vld [vmem:[%s1416 + $0x219] sm:$0xff]
  %v1652 = vld [vmem:[%s1416 + $0x229] sm:$0xff]
  %v1653 = vld [vmem:[%s1416 + $0x231] sm:$0xff]
  %v1654 = vld [vmem:[%s1416 + $0x241] sm:$0xff]
  %v1655 = vld [vmem:[%s1416 + $0x249] sm:$0xff]
  %v1656 = vld [vmem:[%s1416 + $0x259] sm:$0xff]
  %v1657 = vld [vmem:[%s1416 + $0x261] sm:$0xff]
  %v1658 = vld [vmem:[%s1416 + $0x271] sm:$0xff]
  %v1659 = vld [vmem:[%s1416 + $0x279] sm:$0xff]
  %v1660 = vld [vmem:[%s1416 + $0x289] sm:$0xff]
  %v1661 = vld [vmem:[%s1416 + $0x291] sm:$0xff]
  %v1662 = vld [vmem:[%s1416 + $0x2a1] sm:$0xff]
  %v1663 = vld [vmem:[%s1416 + $0x2a9] sm:$0xff]
  %v1664 = vld [vmem:[%s1416 + $0x2b9] sm:$0xff]
  %v1665 = vld [vmem:[%s1416 + $0x2c1] sm:$0xff]
  %v1666 = vld [vmem:[%s1416 + $0x2d1] sm:$0xff]
  %v1667 = vld [vmem:[%s1416 + $0x2d9] sm:$0xff]
  %v1668 = vld [vmem:[%s1416 + $0x2e9] sm:$0xff]
  %v1669 = vld [vmem:[%s1416 + $0x2f1] sm:$0xff]
  %v1670 = vld [vmem:[%s1416 + $0x301] sm:$0xff]
  %v1671 = vld [vmem:[%s1416 + $0x309] sm:$0xff]
  %v1672 = vld [vmem:[%s1416 + $0x319] sm:$0xff]
  %v1673 = vld [vmem:[%s1416 + $0x321] sm:$0xff]
  %v1674 = vperm.slane %v256, 7
  %v1675 = vmul.f32 %v1610, %v1674
  %v1676 = vmul.f32 %v1611, %v1674
  %v1677 = vmul.f32 %v1612, %v1674
  %v1678 = vmul.f32 %v1613, %v1674
  %v1679 = vmul.f32 %v1614, %v1674
  %v1680 = vmul.f32 %v1615, %v1674
  %v1681 = vmul.f32 %v1616, %v1674
  %v1682 = vmul.f32 %v1617, %v1674
  %v1683 = vmul.f32 %v1618, %v1674
  %v1684 = vmul.f32 %v1619, %v1674
  %v1685 = vmul.f32 %v1620, %v1674
  %v1686 = vmul.f32 %v1621, %v1674
  %v1687 = vmul.f32 %v1622, %v1674
  %v1688 = vmul.f32 %v1623, %v1674
  %v1689 = vmul.f32 %v1624, %v1674
  %v1690 = vmul.f32 %v1625, %v1674
  %v1691 = vmul.f32 %v1626, %v1674
  %v1692 = vmul.f32 %v1627, %v1674
  %v1693 = vmul.f32 %v1628, %v1674
  %v1694 = vmul.f32 %v1629, %v1674
  %v1695 = vmul.f32 %v1630, %v1674
  %v1696 = vmul.f32 %v1631, %v1674
  %v1697 = vmul.f32 %v1632, %v1674
  %v1698 = vmul.f32 %v1633, %v1674
  %v1699 = vmul.f32 %v1634, %v1674
  %v1700 = vmul.f32 %v1635, %v1674
  %v1701 = vmul.f32 %v1636, %v1674
  %v1702 = vmul.f32 %v1637, %v1674
  %v1703 = vmul.f32 %v1638, %v1674
  %v1704 = vmul.f32 %v1639, %v1674
  %v1705 = vmul.f32 %v1640, %v1674
  %v1706 = vmul.f32 %v1641, %v1674
  %v1707 = vmul.f32 %v1642, %v1674
  %v1708 = vmul.f32 %v1643, %v1674
  %v1709 = vmul.f32 %v1644, %v1674
  %v1710 = vmul.f32 %v1645, %v1674
  %v1711 = vmul.f32 %v1646, %v1674
  %v1712 = vmul.f32 %v1647, %v1674
  %v1713 = vmul.f32 %v1648, %v1674
  %v1714 = vmul.f32 %v1649, %v1674
  %v1715 = vmul.f32 %v1650, %v1674
  %v1716 = vmul.f32 %v1651, %v1674
  %v1717 = vmul.f32 %v1652, %v1674
  %v1718 = vmul.f32 %v1653, %v1674
  %v1719 = vmul.f32 %v1654, %v1674
  %v1720 = vmul.f32 %v1655, %v1674
  %v1721 = vmul.f32 %v1656, %v1674
  %v1722 = vmul.f32 %v1657, %v1674
  %v1723 = vmul.f32 %v1658, %v1674
  %v1724 = vmul.f32 %v1659, %v1674
  %v1725 = vmul.f32 %v1660, %v1674
  %v1726 = vmul.f32 %v1661, %v1674
  %v1727 = vmul.f32 %v1662, %v1674
  %v1728 = vmul.f32 %v1663, %v1674
  %v1729 = vmul.f32 %v1664, %v1674
  %v1730 = vmul.f32 %v1665, %v1674
  %v1731 = vmul.f32 %v1666, %v1674
  %v1732 = vmul.f32 %v1667, %v1674
  %v1733 = vmul.f32 %v1668, %v1674
  %v1734 = vmul.f32 %v1669, %v1674
  %v1735 = vmul.f32 %v1670, %v1674
  %v1736 = vmul.f32 %v1671, %v1674
  %v1737 = vmul.f32 %v1672, %v1674
  %v1738 = vmul.f32 %v1673, %v1674
  %v1739 = vadd.f32 %v1546, %v1675
  %v1740 = vadd.f32 %v1547, %v1676
  %v1741 = vadd.f32 %v1548, %v1677
  %v1742 = vadd.f32 %v1549, %v1678
  %v1743 = vadd.f32 %v1550, %v1679
  %v1744 = vadd.f32 %v1551, %v1680
  %v1745 = vadd.f32 %v1552, %v1681
  %v1746 = vadd.f32 %v1553, %v1682
  %v1747 = vadd.f32 %v1554, %v1683
  %v1748 = vadd.f32 %v1555, %v1684
  %v1749 = vadd.f32 %v1556, %v1685
  %v1750 = vadd.f32 %v1557, %v1686
  %v1751 = vadd.f32 %v1558, %v1687
  %v1752 = vadd.f32 %v1559, %v1688
  %v1753 = vadd.f32 %v1560, %v1689
  %v1754 = vadd.f32 %v1561, %v1690
  %v1755 = vadd.f32 %v1562, %v1691
  %v1756 = vadd.f32 %v1563, %v1692
  %v1757 = vadd.f32 %v1564, %v1693
  %v1758 = vadd.f32 %v1565, %v1694
  %v1759 = vadd.f32 %v1566, %v1695
  %v1760 = vadd.f32 %v1567, %v1696
  %v1761 = vadd.f32 %v1568, %v1697
  %v1762 = vadd.f32 %v1569, %v1698
  %v1763 = vadd.f32 %v1570, %v1699
  %v1764 = vadd.f32 %v1571, %v1700
  %v1765 = vadd.f32 %v1572, %v1701
  %v1766 = vadd.f32 %v1573, %v1702
  %v1767 = vadd.f32 %v1574, %v1703
  %v1768 = vadd.f32 %v1575, %v1704
  %v1769 = vadd.f32 %v1576, %v1705
  %v1770 = vadd.f32 %v1577, %v1706
  %v1771 = vadd.f32 %v1578, %v1707
  %v1772 = vadd.f32 %v1579, %v1708
  %v1773 = vadd.f32 %v1580, %v1709
  %v1774 = vadd.f32 %v1581, %v1710
  %v1775 = vadd.f32 %v1582, %v1711
  %v1776 = vadd.f32 %v1583, %v1712
  %v1777 = vadd.f32 %v1584, %v1713
  %v1778 = vadd.f32 %v1585, %v1714
  %v1779 = vadd.f32 %v1586, %v1715
  %v1780 = vadd.f32 %v1587, %v1716
  %v1781 = vadd.f32 %v1588, %v1717
  %v1782 = vadd.f32 %v1589, %v1718
  %v1783 = vadd.f32 %v1590, %v1719
  %v1784 = vadd.f32 %v1591, %v1720
  %v1785 = vadd.f32 %v1592, %v1721
  %v1786 = vadd.f32 %v1593, %v1722
  %v1787 = vadd.f32 %v1594, %v1723
  %v1788 = vadd.f32 %v1595, %v1724
  %v1789 = vadd.f32 %v1596, %v1725
  %v1790 = vadd.f32 %v1597, %v1726
  %v1791 = vadd.f32 %v1598, %v1727
  %v1792 = vadd.f32 %v1599, %v1728
  %v1793 = vadd.f32 %v1600, %v1729
  %v1794 = vadd.f32 %v1601, %v1730
  %v1795 = vadd.f32 %v1602, %v1731
  %v1796 = vadd.f32 %v1603, %v1732
  %v1797 = vadd.f32 %v1604, %v1733
  %v1798 = vadd.f32 %v1605, %v1734
  %v1799 = vadd.f32 %v1606, %v1735
  %v1800 = vadd.f32 %v1607, %v1736
  %v1801 = vadd.f32 %v1608, %v1737
  %v1802 = vadd.f32 %v1609, %v1738
  %v1803 = vld [vmem:[%s1416 + $0x2] sm:$0xff]
  %v1804 = vld [vmem:[%s1416 + $0xa] sm:$0xff]
  %v1805 = vld [vmem:[%s1416 + $0x1a] sm:$0xff]
  %v1806 = vld [vmem:[%s1416 + $0x22] sm:$0xff]
  %v1807 = vld [vmem:[%s1416 + $0x32] sm:$0xff]
  %v1808 = vld [vmem:[%s1416 + $0x3a] sm:$0xff]
  %v1809 = vld [vmem:[%s1416 + $0x4a] sm:$0xff]
  %v1810 = vld [vmem:[%s1416 + $0x52] sm:$0xff]
  %v1811 = vld [vmem:[%s1416 + $0x62] sm:$0xff]
  %v1812 = vld [vmem:[%s1416 + $0x6a] sm:$0xff]
  %v1813 = vld [vmem:[%s1416 + $0x7a] sm:$0xff]
  %v1814 = vld [vmem:[%s1416 + $0x82] sm:$0xff]
  %v1815 = vld [vmem:[%s1416 + $0x92] sm:$0xff]
  %v1816 = vld [vmem:[%s1416 + $0x9a] sm:$0xff]
  %v1817 = vld [vmem:[%s1416 + $0xaa] sm:$0xff]
  %v1818 = vld [vmem:[%s1416 + $0xb2] sm:$0xff]
  %v1819 = vld [vmem:[%s1416 + $0xc2] sm:$0xff]
  %v1820 = vld [vmem:[%s1416 + $0xca] sm:$0xff]
  %v1821 = vld [vmem:[%s1416 + $0xda] sm:$0xff]
  %v1822 = vld [vmem:[%s1416 + $0xe2] sm:$0xff]
  %v1823 = vld [vmem:[%s1416 + $0xf2] sm:$0xff]
  %v1824 = vld [vmem:[%s1416 + $0xfa] sm:$0xff]
  %v1825 = vld [vmem:[%s1416 + $0x10a] sm:$0xff]
  %v1826 = vld [vmem:[%s1416 + $0x112] sm:$0xff]
  %v1827 = vld [vmem:[%s1416 + $0x122] sm:$0xff]
  %v1828 = vld [vmem:[%s1416 + $0x12a] sm:$0xff]
  %v1829 = vld [vmem:[%s1416 + $0x13a] sm:$0xff]
  %v1830 = vld [vmem:[%s1416 + $0x142] sm:$0xff]
  %v1831 = vld [vmem:[%s1416 + $0x152] sm:$0xff]
  %v1832 = vld [vmem:[%s1416 + $0x15a] sm:$0xff]
  %v1833 = vld [vmem:[%s1416 + $0x16a] sm:$0xff]
  %v1834 = vld [vmem:[%s1416 + $0x172] sm:$0xff]
  %v1835 = vld [vmem:[%s1416 + $0x1b2] sm:$0xff]
  %v1836 = vld [vmem:[%s1416 + $0x1ba] sm:$0xff]
  %v1837 = vld [vmem:[%s1416 + $0x1ca] sm:$0xff]
  %v1838 = vld [vmem:[%s1416 + $0x1d2] sm:$0xff]
  %v1839 = vld [vmem:[%s1416 + $0x1e2] sm:$0xff]
  %v1840 = vld [vmem:[%s1416 + $0x1ea] sm:$0xff]
  %v1841 = vld [vmem:[%s1416 + $0x1fa] sm:$0xff]
  %v1842 = vld [vmem:[%s1416 + $0x202] sm:$0xff]
  %v1843 = vld [vmem:[%s1416 + $0x212] sm:$0xff]
  %v1844 = vld [vmem:[%s1416 + $0x21a] sm:$0xff]
  %v1845 = vld [vmem:[%s1416 + $0x22a] sm:$0xff]
  %v1846 = vld [vmem:[%s1416 + $0x232] sm:$0xff]
  %v1847 = vld [vmem:[%s1416 + $0x242] sm:$0xff]
  %v1848 = vld [vmem:[%s1416 + $0x24a] sm:$0xff]
  %v1849 = vld [vmem:[%s1416 + $0x25a] sm:$0xff]
  %v1850 = vld [vmem:[%s1416 + $0x262] sm:$0xff]
  %v1851 = vld [vmem:[%s1416 + $0x272] sm:$0xff]
  %v1852 = vld [vmem:[%s1416 + $0x27a] sm:$0xff]
  %v1853 = vld [vmem:[%s1416 + $0x28a] sm:$0xff]
  %v1854 = vld [vmem:[%s1416 + $0x292] sm:$0xff]
  %v1855 = vld [vmem:[%s1416 + $0x2a2] sm:$0xff]
  %v1856 = vld [vmem:[%s1416 + $0x2aa] sm:$0xff]
  %v1857 = vld [vmem:[%s1416 + $0x2ba] sm:$0xff]
  %v1858 = vld [vmem:[%s1416 + $0x2c2] sm:$0xff]
  %v1859 = vld [vmem:[%s1416 + $0x2d2] sm:$0xff]
  %v1860 = vld [vmem:[%s1416 + $0x2da] sm:$0xff]
  %v1861 = vld [vmem:[%s1416 + $0x2ea] sm:$0xff]
  %v1862 = vld [vmem:[%s1416 + $0x2f2] sm:$0xff]
  %v1863 = vld [vmem:[%s1416 + $0x302] sm:$0xff]
  %v1864 = vld [vmem:[%s1416 + $0x30a] sm:$0xff]
  %v1865 = vld [vmem:[%s1416 + $0x31a] sm:$0xff]
  %v1866 = vld [vmem:[%s1416 + $0x322] sm:$0xff]
  %v1867 = vperm.slane %v257, 0
  %v1868 = vmul.f32 %v1803, %v1867
  %v1869 = vmul.f32 %v1804, %v1867
  %v1870 = vmul.f32 %v1805, %v1867
  %v1871 = vmul.f32 %v1806, %v1867
  %v1872 = vmul.f32 %v1807, %v1867
  %v1873 = vmul.f32 %v1808, %v1867
  %v1874 = vmul.f32 %v1809, %v1867
  %v1875 = vmul.f32 %v1810, %v1867
  %v1876 = vmul.f32 %v1811, %v1867
  %v1877 = vmul.f32 %v1812, %v1867
  %v1878 = vmul.f32 %v1813, %v1867
  %v1879 = vmul.f32 %v1814, %v1867
  %v1880 = vmul.f32 %v1815, %v1867
  %v1881 = vmul.f32 %v1816, %v1867
  %v1882 = vmul.f32 %v1817, %v1867
  %v1883 = vmul.f32 %v1818, %v1867
  %v1884 = vmul.f32 %v1819, %v1867
  %v1885 = vmul.f32 %v1820, %v1867
  %v1886 = vmul.f32 %v1821, %v1867
  %v1887 = vmul.f32 %v1822, %v1867
  %v1888 = vmul.f32 %v1823, %v1867
  %v1889 = vmul.f32 %v1824, %v1867
  %v1890 = vmul.f32 %v1825, %v1867
  %v1891 = vmul.f32 %v1826, %v1867
  %v1892 = vmul.f32 %v1827, %v1867
  %v1893 = vmul.f32 %v1828, %v1867
  %v1894 = vmul.f32 %v1829, %v1867
  %v1895 = vmul.f32 %v1830, %v1867
  %v1896 = vmul.f32 %v1831, %v1867
  %v1897 = vmul.f32 %v1832, %v1867
  %v1898 = vmul.f32 %v1833, %v1867
  %v1899 = vmul.f32 %v1834, %v1867
  %v1900 = vmul.f32 %v1835, %v1867
  %v1901 = vmul.f32 %v1836, %v1867
  %v1902 = vmul.f32 %v1837, %v1867
  %v1903 = vmul.f32 %v1838, %v1867
  %v1904 = vmul.f32 %v1839, %v1867
  %v1905 = vmul.f32 %v1840, %v1867
  %v1906 = vmul.f32 %v1841, %v1867
  %v1907 = vmul.f32 %v1842, %v1867
  %v1908 = vmul.f32 %v1843, %v1867
  %v1909 = vmul.f32 %v1844, %v1867
  %v1910 = vmul.f32 %v1845, %v1867
  %v1911 = vmul.f32 %v1846, %v1867
  %v1912 = vmul.f32 %v1847, %v1867
  %v1913 = vmul.f32 %v1848, %v1867
  %v1914 = vmul.f32 %v1849, %v1867
  %v1915 = vmul.f32 %v1850, %v1867
  %v1916 = vmul.f32 %v1851, %v1867
  %v1917 = vmul.f32 %v1852, %v1867
  %v1918 = vmul.f32 %v1853, %v1867
  %v1919 = vmul.f32 %v1854, %v1867
  %v1920 = vmul.f32 %v1855, %v1867
  %v1921 = vmul.f32 %v1856, %v1867
  %v1922 = vmul.f32 %v1857, %v1867
  %v1923 = vmul.f32 %v1858, %v1867
  %v1924 = vmul.f32 %v1859, %v1867
  %v1925 = vmul.f32 %v1860, %v1867
  %v1926 = vmul.f32 %v1861, %v1867
  %v1927 = vmul.f32 %v1862, %v1867
  %v1928 = vmul.f32 %v1863, %v1867
  %v1929 = vmul.f32 %v1864, %v1867
  %v1930 = vmul.f32 %v1865, %v1867
  %v1931 = vmul.f32 %v1866, %v1867
  %v1932 = vadd.f32 %v1739, %v1868
  %v1933 = vadd.f32 %v1740, %v1869
  %v1934 = vadd.f32 %v1741, %v1870
  %v1935 = vadd.f32 %v1742, %v1871
  %v1936 = vadd.f32 %v1743, %v1872
  %v1937 = vadd.f32 %v1744, %v1873
  %v1938 = vadd.f32 %v1745, %v1874
  %v1939 = vadd.f32 %v1746, %v1875
  %v1940 = vadd.f32 %v1747, %v1876
  %v1941 = vadd.f32 %v1748, %v1877
  %v1942 = vadd.f32 %v1749, %v1878
  %v1943 = vadd.f32 %v1750, %v1879
  %v1944 = vadd.f32 %v1751, %v1880
  %v1945 = vadd.f32 %v1752, %v1881
  %v1946 = vadd.f32 %v1753, %v1882
  %v1947 = vadd.f32 %v1754, %v1883
  %v1948 = vadd.f32 %v1755, %v1884
  %v1949 = vadd.f32 %v1756, %v1885
  %v1950 = vadd.f32 %v1757, %v1886
  %v1951 = vadd.f32 %v1758, %v1887
  %v1952 = vadd.f32 %v1759, %v1888
  %v1953 = vadd.f32 %v1760, %v1889
  %v1954 = vadd.f32 %v1761, %v1890
  %v1955 = vadd.f32 %v1762, %v1891
  %v1956 = vadd.f32 %v1763, %v1892
  %v1957 = vadd.f32 %v1764, %v1893
  %v1958 = vadd.f32 %v1765, %v1894
  %v1959 = vadd.f32 %v1766, %v1895
  %v1960 = vadd.f32 %v1767, %v1896
  %v1961 = vadd.f32 %v1768, %v1897
  %v1962 = vadd.f32 %v1769, %v1898
  %v1963 = vadd.f32 %v1770, %v1899
  %v1964 = vadd.f32 %v1771, %v1900
  %v1965 = vadd.f32 %v1772, %v1901
  %v1966 = vadd.f32 %v1773, %v1902
  %v1967 = vadd.f32 %v1774, %v1903
  %v1968 = vadd.f32 %v1775, %v1904
  %v1969 = vadd.f32 %v1776, %v1905
  %v1970 = vadd.f32 %v1777, %v1906
  %v1971 = vadd.f32 %v1778, %v1907
  %v1972 = vadd.f32 %v1779, %v1908
  %v1973 = vadd.f32 %v1780, %v1909
  %v1974 = vadd.f32 %v1781, %v1910
  %v1975 = vadd.f32 %v1782, %v1911
  %v1976 = vadd.f32 %v1783, %v1912
  %v1977 = vadd.f32 %v1784, %v1913
  %v1978 = vadd.f32 %v1785, %v1914
  %v1979 = vadd.f32 %v1786, %v1915
  %v1980 = vadd.f32 %v1787, %v1916
  %v1981 = vadd.f32 %v1788, %v1917
  %v1982 = vadd.f32 %v1789, %v1918
  %v1983 = vadd.f32 %v1790, %v1919
  %v1984 = vadd.f32 %v1791, %v1920
  %v1985 = vadd.f32 %v1792, %v1921
  %v1986 = vadd.f32 %v1793, %v1922
  %v1987 = vadd.f32 %v1794, %v1923
  %v1988 = vadd.f32 %v1795, %v1924
  %v1989 = vadd.f32 %v1796, %v1925
  %v1990 = vadd.f32 %v1797, %v1926
  %v1991 = vadd.f32 %v1798, %v1927
  %v1992 = vadd.f32 %v1799, %v1928
  %v1993 = vadd.f32 %v1800, %v1929
  %v1994 = vadd.f32 %v1801, %v1930
  %v1995 = vadd.f32 %v1802, %v1931
  %v1996 = vsel %vm17, %v1932, 0.0
  %v1997 = vsel %vm17, %v1933, 0.0
  %v1998 = vadd.f32 %v1996, %v1997
  %v1999 = vsel %vm17, %v1934, 0.0
  %v2000 = vadd.f32 %v1998, %v1999
  %v2001 = vsel %vm17, %v1935, 0.0
  %v2002 = vadd.f32 %v2000, %v2001
  %v2003 = vsel %vm17, %v1936, 0.0
  %v2004 = vadd.f32 %v2002, %v2003
  %v2005 = vsel %vm17, %v1937, 0.0
  %v2006 = vadd.f32 %v2004, %v2005
  %v2007 = vsel %vm17, %v1938, 0.0
  %v2008 = vadd.f32 %v2006, %v2007
  %v2009 = vsel %vm17, %v1939, 0.0
  %v2010 = vadd.f32 %v2008, %v2009
  %v2011 = vsel %vm17, %v1940, 0.0
  %v2012 = vadd.f32 %v2010, %v2011
  %v2013 = vsel %vm17, %v1941, 0.0
  %v2014 = vadd.f32 %v2012, %v2013
  %v2015 = vsel %vm17, %v1942, 0.0
  %v2016 = vadd.f32 %v2014, %v2015
  %v2017 = vsel %vm17, %v1943, 0.0
  %v2018 = vadd.f32 %v2016, %v2017
  %v2019 = vsel %vm17, %v1944, 0.0
  %v2020 = vadd.f32 %v2018, %v2019
  %v2021 = vsel %vm17, %v1945, 0.0
  %v2022 = vadd.f32 %v2020, %v2021
  %v2023 = vsel %vm17, %v1946, 0.0
  %v2024 = vadd.f32 %v2022, %v2023
  %v2025 = vsel %vm17, %v1947, 0.0
  %v2026 = vadd.f32 %v2024, %v2025
  %v2027 = vsel %vm17, %v1948, 0.0
  %v2028 = vadd.f32 %v2026, %v2027
  %v2029 = vsel %vm17, %v1949, 0.0
  %v2030 = vadd.f32 %v2028, %v2029
  %v2031 = vsel %vm17, %v1950, 0.0
  %v2032 = vadd.f32 %v2030, %v2031
  %v2033 = vsel %vm17, %v1951, 0.0
  %v2034 = vadd.f32 %v2032, %v2033
  %v2035 = vsel %vm17, %v1952, 0.0
  %v2036 = vadd.f32 %v2034, %v2035
  %v2037 = vsel %vm17, %v1953, 0.0
  %v2038 = vadd.f32 %v2036, %v2037
  %v2039 = vsel %vm17, %v1954, 0.0
  %v2040 = vadd.f32 %v2038, %v2039
  %v2041 = vsel %vm17, %v1955, 0.0
  %v2042 = vadd.f32 %v2040, %v2041
  %v2043 = vsel %vm17, %v1956, 0.0
  %v2044 = vadd.f32 %v2042, %v2043
  %v2045 = vsel %vm17, %v1957, 0.0
  %v2046 = vadd.f32 %v2044, %v2045
  %v2047 = vsel %vm17, %v1958, 0.0
  %v2048 = vadd.f32 %v2046, %v2047
  %v2049 = vsel %vm17, %v1959, 0.0
  %v2050 = vadd.f32 %v2048, %v2049
  %v2051 = vsel %vm17, %v1960, 0.0
  %v2052 = vadd.f32 %v2050, %v2051
  %v2053 = vsel %vm17, %v1961, 0.0
  %v2054 = vadd.f32 %v2052, %v2053
  %v2055 = vsel %vm17, %v1962, 0.0
  %v2056 = vadd.f32 %v2054, %v2055
  %v2057 = vsel %vm17, %v1963, 0.0
  %v2058 = vadd.f32 %v2056, %v2057
  %v2059 = vsel %vm17, %v1964, 0.0
  %v2060 = vadd.f32 %v2058, %v2059
  %v2061 = vsel %vm17, %v1965, 0.0
  %v2062 = vadd.f32 %v2060, %v2061
  %v2063 = vsel %vm17, %v1966, 0.0
  %v2064 = vadd.f32 %v2062, %v2063
  %v2065 = vsel %vm17, %v1967, 0.0
  %v2066 = vadd.f32 %v2064, %v2065
  %v2067 = vsel %vm17, %v1968, 0.0
  %v2068 = vadd.f32 %v2066, %v2067
  %v2069 = vsel %vm17, %v1969, 0.0
  %v2070 = vadd.f32 %v2068, %v2069
  %v2071 = vsel %vm17, %v1970, 0.0
  %v2072 = vadd.f32 %v2070, %v2071
  %v2073 = vsel %vm17, %v1971, 0.0
  %v2074 = vadd.f32 %v2072, %v2073
  %v2075 = vsel %vm17, %v1972, 0.0
  %v2076 = vadd.f32 %v2074, %v2075
  %v2077 = vsel %vm17, %v1973, 0.0
  %v2078 = vadd.f32 %v2076, %v2077
  %v2079 = vsel %vm17, %v1974, 0.0
  %v2080 = vadd.f32 %v2078, %v2079
  %v2081 = vsel %vm17, %v1975, 0.0
  %v2082 = vadd.f32 %v2080, %v2081
  %v2083 = vsel %vm17, %v1976, 0.0
  %v2084 = vadd.f32 %v2082, %v2083
  %v2085 = vsel %vm17, %v1977, 0.0
  %v2086 = vadd.f32 %v2084, %v2085
  %v2087 = vsel %vm17, %v1978, 0.0
  %v2088 = vadd.f32 %v2086, %v2087
  %v2089 = vsel %vm17, %v1979, 0.0
  %v2090 = vadd.f32 %v2088, %v2089
  %v2091 = vsel %vm17, %v1980, 0.0
  %v2092 = vadd.f32 %v2090, %v2091
  %v2093 = vsel %vm17, %v1981, 0.0
  %v2094 = vadd.f32 %v2092, %v2093
  %v2095 = vsel %vm17, %v1982, 0.0
  %v2096 = vadd.f32 %v2094, %v2095
  %v2097 = vsel %vm17, %v1983, 0.0
  %v2098 = vadd.f32 %v2096, %v2097
  %v2099 = vsel %vm17, %v1984, 0.0
  %v2100 = vadd.f32 %v2098, %v2099
  %v2101 = vsel %vm17, %v1985, 0.0
  %v2102 = vadd.f32 %v2100, %v2101
  %v2103 = vsel %vm17, %v1986, 0.0
  %v2104 = vadd.f32 %v2102, %v2103
  %v2105 = vsel %vm17, %v1987, 0.0
  %v2106 = vadd.f32 %v2104, %v2105
  %v2107 = vsel %vm17, %v1988, 0.0
  %v2108 = vadd.f32 %v2106, %v2107
  %v2109 = vsel %vm17, %v1989, 0.0
  %v2110 = vadd.f32 %v2108, %v2109
  %v2111 = vsel %vm17, %v1990, 0.0
  %v2112 = vadd.f32 %v2110, %v2111
  %v2113 = vsel %vm17, %v1991, 0.0
  %v2114 = vadd.f32 %v2112, %v2113
  %v2115 = vsel %vm17, %v1992, 0.0
  %v2116 = vadd.f32 %v2114, %v2115
  %v2117 = vsel %vm17, %v1993, 0.0
  %v2118 = vadd.f32 %v2116, %v2117
  %v2119 = vsel %vm17, %v1994, 0.0
  %v2120 = vadd.f32 %v2118, %v2119
  %v2121 = vsel %vm17, %v1995, 0.0
  %v2122 = vadd.f32 %v2120, %v2121
  %v2123 = vrot.slane %v2122, 4
  %v2124 = vadd.f32 %v2122, %v2123
  %v2125 = vrot.slane %v2124, 2
  %v2126 = vadd.f32 %v2124, %v2125
  %v2127 = vrot.slane %v2126, 1
  %v2128 = vadd.f32 %v2126, %v2127
  %v2129 = vmul.f32 %v1932, %v1932
  %v2130 = vmul.f32 %v1933, %v1933
  %v2131 = vmul.f32 %v1934, %v1934
  %v2132 = vmul.f32 %v1935, %v1935
  %v2133 = vmul.f32 %v1936, %v1936
  %v2134 = vmul.f32 %v1937, %v1937
  %v2135 = vmul.f32 %v1938, %v1938
  %v2136 = vmul.f32 %v1939, %v1939
  %v2137 = vmul.f32 %v1940, %v1940
  %v2138 = vmul.f32 %v1941, %v1941
  %v2139 = vmul.f32 %v1942, %v1942
  %v2140 = vmul.f32 %v1943, %v1943
  %v2141 = vmul.f32 %v1944, %v1944
  %v2142 = vmul.f32 %v1945, %v1945
  %v2143 = vmul.f32 %v1946, %v1946
  %v2144 = vmul.f32 %v1947, %v1947
  %v2145 = vmul.f32 %v1948, %v1948
  %v2146 = vmul.f32 %v1949, %v1949
  %v2147 = vmul.f32 %v1950, %v1950
  %v2148 = vmul.f32 %v1951, %v1951
  %v2149 = vmul.f32 %v1952, %v1952
  %v2150 = vmul.f32 %v1953, %v1953
  %v2151 = vmul.f32 %v1954, %v1954
  %v2152 = vmul.f32 %v1955, %v1955
  %v2153 = vmul.f32 %v1956, %v1956
  %v2154 = vmul.f32 %v1957, %v1957
  %v2155 = vmul.f32 %v1958, %v1958
  %v2156 = vmul.f32 %v1959, %v1959
  %v2157 = vmul.f32 %v1960, %v1960
  %v2158 = vmul.f32 %v1961, %v1961
  %v2159 = vmul.f32 %v1962, %v1962
  %v2160 = vmul.f32 %v1963, %v1963
  %v2161 = vmul.f32 %v1964, %v1964
  %v2162 = vmul.f32 %v1965, %v1965
  %v2163 = vmul.f32 %v1966, %v1966
  %v2164 = vmul.f32 %v1967, %v1967
  %v2165 = vmul.f32 %v1968, %v1968
  %v2166 = vmul.f32 %v1969, %v1969
  %v2167 = vmul.f32 %v1970, %v1970
  %v2168 = vmul.f32 %v1971, %v1971
  %v2169 = vmul.f32 %v1972, %v1972
  %v2170 = vmul.f32 %v1973, %v1973
  %v2171 = vmul.f32 %v1974, %v1974
  %v2172 = vmul.f32 %v1975, %v1975
  %v2173 = vmul.f32 %v1976, %v1976
  %v2174 = vmul.f32 %v1977, %v1977
  %v2175 = vmul.f32 %v1978, %v1978
  %v2176 = vmul.f32 %v1979, %v1979
  %v2177 = vmul.f32 %v1980, %v1980
  %v2178 = vmul.f32 %v1981, %v1981
  %v2179 = vmul.f32 %v1982, %v1982
  %v2180 = vmul.f32 %v1983, %v1983
  %v2181 = vmul.f32 %v1984, %v1984
  %v2182 = vmul.f32 %v1985, %v1985
  %v2183 = vmul.f32 %v1986, %v1986
  %v2184 = vmul.f32 %v1987, %v1987
  %v2185 = vmul.f32 %v1988, %v1988
  %v2186 = vmul.f32 %v1989, %v1989
  %v2187 = vmul.f32 %v1990, %v1990
  %v2188 = vmul.f32 %v1991, %v1991
  %v2189 = vmul.f32 %v1992, %v1992
  %v2190 = vmul.f32 %v1993, %v1993
  %v2191 = vmul.f32 %v1994, %v1994
  %v2192 = vmul.f32 %v1995, %v1995
  %v2193 = vsel %vm17, %v2129, 0.0
  %v2194 = vsel %vm17, %v2130, 0.0
  %v2195 = vadd.f32 %v2193, %v2194
  %v2196 = vsel %vm17, %v2131, 0.0
  %v2197 = vadd.f32 %v2195, %v2196
  %v2198 = vsel %vm17, %v2132, 0.0
  %v2199 = vadd.f32 %v2197, %v2198
  %v2200 = vsel %vm17, %v2133, 0.0
  %v2201 = vadd.f32 %v2199, %v2200
  %v2202 = vsel %vm17, %v2134, 0.0
  %v2203 = vadd.f32 %v2201, %v2202
  %v2204 = vsel %vm17, %v2135, 0.0
  %v2205 = vadd.f32 %v2203, %v2204
  %v2206 = vsel %vm17, %v2136, 0.0
  %v2207 = vadd.f32 %v2205, %v2206
  %v2208 = vsel %vm17, %v2137, 0.0
  %v2209 = vadd.f32 %v2207, %v2208
  %v2210 = vsel %vm17, %v2138, 0.0
  %v2211 = vadd.f32 %v2209, %v2210
  %v2212 = vsel %vm17, %v2139, 0.0
  %v2213 = vadd.f32 %v2211, %v2212
  %v2214 = vsel %vm17, %v2140, 0.0
  %v2215 = vadd.f32 %v2213, %v2214
  %v2216 = vsel %vm17, %v2141, 0.0
  %v2217 = vadd.f32 %v2215, %v2216
  %v2218 = vsel %vm17, %v2142, 0.0
  %v2219 = vadd.f32 %v2217, %v2218
  %v2220 = vsel %vm17, %v2143, 0.0
  %v2221 = vadd.f32 %v2219, %v2220
  %v2222 = vsel %vm17, %v2144, 0.0
  %v2223 = vadd.f32 %v2221, %v2222
  %v2224 = vsel %vm17, %v2145, 0.0
  %v2225 = vadd.f32 %v2223, %v2224
  %v2226 = vsel %vm17, %v2146, 0.0
  %v2227 = vadd.f32 %v2225, %v2226
  %v2228 = vsel %vm17, %v2147, 0.0
  %v2229 = vadd.f32 %v2227, %v2228
  %v2230 = vsel %vm17, %v2148, 0.0
  %v2231 = vadd.f32 %v2229, %v2230
  %v2232 = vsel %vm17, %v2149, 0.0
  %v2233 = vadd.f32 %v2231, %v2232
  %v2234 = vsel %vm17, %v2150, 0.0
  %v2235 = vadd.f32 %v2233, %v2234
  %v2236 = vsel %vm17, %v2151, 0.0
  %v2237 = vadd.f32 %v2235, %v2236
  %v2238 = vsel %vm17, %v2152, 0.0
  %v2239 = vadd.f32 %v2237, %v2238
  %v2240 = vsel %vm17, %v2153, 0.0
  %v2241 = vadd.f32 %v2239, %v2240
  %v2242 = vsel %vm17, %v2154, 0.0
  %v2243 = vadd.f32 %v2241, %v2242
  %v2244 = vsel %vm17, %v2155, 0.0
  %v2245 = vadd.f32 %v2243, %v2244
  %v2246 = vsel %vm17, %v2156, 0.0
  %v2247 = vadd.f32 %v2245, %v2246
  %v2248 = vsel %vm17, %v2157, 0.0
  %v2249 = vadd.f32 %v2247, %v2248
  %v2250 = vsel %vm17, %v2158, 0.0
  %v2251 = vadd.f32 %v2249, %v2250
  %v2252 = vsel %vm17, %v2159, 0.0
  %v2253 = vadd.f32 %v2251, %v2252
  %v2254 = vsel %vm17, %v2160, 0.0
  %v2255 = vadd.f32 %v2253, %v2254
  %v2256 = vsel %vm17, %v2161, 0.0
  %v2257 = vadd.f32 %v2255, %v2256
  %v2258 = vsel %vm17, %v2162, 0.0
  %v2259 = vadd.f32 %v2257, %v2258
  %v2260 = vsel %vm17, %v2163, 0.0
  %v2261 = vadd.f32 %v2259, %v2260
  %v2262 = vsel %vm17, %v2164, 0.0
  %v2263 = vadd.f32 %v2261, %v2262
  %v2264 = vsel %vm17, %v2165, 0.0
  %v2265 = vadd.f32 %v2263, %v2264
  %v2266 = vsel %vm17, %v2166, 0.0
  %v2267 = vadd.f32 %v2265, %v2266
  %v2268 = vsel %vm17, %v2167, 0.0
  %v2269 = vadd.f32 %v2267, %v2268
  %v2270 = vsel %vm17, %v2168, 0.0
  %v2271 = vadd.f32 %v2269, %v2270
  %v2272 = vsel %vm17, %v2169, 0.0
  %v2273 = vadd.f32 %v2271, %v2272
  %v2274 = vsel %vm17, %v2170, 0.0
  %v2275 = vadd.f32 %v2273, %v2274
  %v2276 = vsel %vm17, %v2171, 0.0
  %v2277 = vadd.f32 %v2275, %v2276
  %v2278 = vsel %vm17, %v2172, 0.0
  %v2279 = vadd.f32 %v2277, %v2278
  %v2280 = vsel %vm17, %v2173, 0.0
  %v2281 = vadd.f32 %v2279, %v2280
  %v2282 = vsel %vm17, %v2174, 0.0
  %v2283 = vadd.f32 %v2281, %v2282
  %v2284 = vsel %vm17, %v2175, 0.0
  %v2285 = vadd.f32 %v2283, %v2284
  %v2286 = vsel %vm17, %v2176, 0.0
  %v2287 = vadd.f32 %v2285, %v2286
  %v2288 = vsel %vm17, %v2177, 0.0
  %v2289 = vadd.f32 %v2287, %v2288
  %v2290 = vsel %vm17, %v2178, 0.0
  %v2291 = vadd.f32 %v2289, %v2290
  %v2292 = vsel %vm17, %v2179, 0.0
  %v2293 = vadd.f32 %v2291, %v2292
  %v2294 = vsel %vm17, %v2180, 0.0
  %v2295 = vadd.f32 %v2293, %v2294
  %v2296 = vsel %vm17, %v2181, 0.0
  %v2297 = vadd.f32 %v2295, %v2296
  %v2298 = vsel %vm17, %v2182, 0.0
  %v2299 = vadd.f32 %v2297, %v2298
  %v2300 = vsel %vm17, %v2183, 0.0
  %v2301 = vadd.f32 %v2299, %v2300
  %v2302 = vsel %vm17, %v2184, 0.0
  %v2303 = vadd.f32 %v2301, %v2302
  %v2304 = vsel %vm17, %v2185, 0.0
  %v2305 = vadd.f32 %v2303, %v2304
  %v2306 = vsel %vm17, %v2186, 0.0
  %v2307 = vadd.f32 %v2305, %v2306
  %v2308 = vsel %vm17, %v2187, 0.0
  %v2309 = vadd.f32 %v2307, %v2308
  %v2310 = vsel %vm17, %v2188, 0.0
  %v2311 = vadd.f32 %v2309, %v2310
  %v2312 = vsel %vm17, %v2189, 0.0
  %v2313 = vadd.f32 %v2311, %v2312
  %v2314 = vsel %vm17, %v2190, 0.0
  %v2315 = vadd.f32 %v2313, %v2314
  %v2316 = vsel %vm17, %v2191, 0.0
  %v2317 = vadd.f32 %v2315, %v2316
  %v2318 = vsel %vm17, %v2192, 0.0
  %v2319 = vadd.f32 %v2317, %v2318
  %v2320 = vrot.slane %v2319, 4
  %v2321 = vadd.f32 %v2319, %v2320
  %v2322 = vrot.slane %v2321, 2
  %v2323 = vadd.f32 %v2321, %v2322
  %v2324 = vrot.slane %v2323, 1
  %v2325 = vadd.f32 %v2323, %v2324
  %v2326 = vmul.f32 %v2128, 0.001953125
  %v2327 = vmul.f32 %v2325, 0.001953125
  %v2328 = vmul.f32 %v2326, %v2326
  %v2329 = vsub.f32 %v2327, %v2328
  %v2330 = vmax.f32 %v2329, 0.0
  %v2331 = vld [vmem:[%s2] sm:$0x1]
  %v2332 = vld [vmem:[%s3] sm:$0x1]
  %v2333 = vadd.f32 %v2330, 1e-05
  %v2334 = vrsqrt.pop %v2333
  %v2335 = vmul.f32 %v2334, %v2333
  %v2336 = vmul.f32 %v2335, %v2334
  %v2337 = vmul.f32 0.5, %v2336
  %v2338 = vsub.f32 1.5, %v2337
  %v2339 = vmul.f32 %v2334, %v2338
  %vm2340 = vweird.f32 %v2333
  %vm2341 = vweird.f32 %v2334
  %vm2342 = vmor %vm2340, %vm2341
  %v2343 = vsel %vm2342, %v2334, %v2339
  %v2344 = vmul.f32 %v2343, %v2331
  %v2345 = vmul.f32 %v2326, %v2344
  %v2346 = vsub.f32 %v2332, %v2345
  %v2347 = vperm.slane %v2344, 0
  %v2348 = vmul.f32 %v1932, %v2347
  %v2349 = vmul.f32 %v1933, %v2347
  %v2350 = vmul.f32 %v1934, %v2347
  %v2351 = vmul.f32 %v1935, %v2347
  %v2352 = vmul.f32 %v1936, %v2347
  %v2353 = vmul.f32 %v1937, %v2347
  %v2354 = vmul.f32 %v1938, %v2347
  %v2355 = vmul.f32 %v1939, %v2347
  %v2356 = vmul.f32 %v1940, %v2347
  %v2357 = vmul.f32 %v1941, %v2347
  %v2358 = vmul.f32 %v1942, %v2347
  %v2359 = vmul.f32 %v1943, %v2347
  %v2360 = vmul.f32 %v1944, %v2347
  %v2361 = vmul.f32 %v1945, %v2347
  %v2362 = vmul.f32 %v1946, %v2347
  %v2363 = vmul.f32 %v1947, %v2347
  %v2364 = vmul.f32 %v1948, %v2347
  %v2365 = vmul.f32 %v1949, %v2347
  %v2366 = vmul.f32 %v1950, %v2347
  %v2367 = vmul.f32 %v1951, %v2347
  %v2368 = vmul.f32 %v1952, %v2347
  %v2369 = vmul.f32 %v1953, %v2347
  %v2370 = vmul.f32 %v1954, %v2347
  %v2371 = vmul.f32 %v1955, %v2347
  %v2372 = vmul.f32 %v1956, %v2347
  %v2373 = vmul.f32 %v1957, %v2347
  %v2374 = vmul.f32 %v1958, %v2347
  %v2375 = vmul.f32 %v1959, %v2347
  %v2376 = vmul.f32 %v1960, %v2347
  %v2377 = vmul.f32 %v1961, %v2347
  %v2378 = vmul.f32 %v1962, %v2347
  %v2379 = vmul.f32 %v1963, %v2347
  %v2380 = vmul.f32 %v1964, %v2347
  %v2381 = vmul.f32 %v1965, %v2347
  %v2382 = vmul.f32 %v1966, %v2347
  %v2383 = vmul.f32 %v1967, %v2347
  %v2384 = vmul.f32 %v1968, %v2347
  %v2385 = vmul.f32 %v1969, %v2347
  %v2386 = vmul.f32 %v1970, %v2347
  %v2387 = vmul.f32 %v1971, %v2347
  %v2388 = vmul.f32 %v1972, %v2347
  %v2389 = vmul.f32 %v1973, %v2347
  %v2390 = vmul.f32 %v1974, %v2347
  %v2391 = vmul.f32 %v1975, %v2347
  %v2392 = vmul.f32 %v1976, %v2347
  %v2393 = vmul.f32 %v1977, %v2347
  %v2394 = vmul.f32 %v1978, %v2347
  %v2395 = vmul.f32 %v1979, %v2347
  %v2396 = vmul.f32 %v1980, %v2347
  %v2397 = vmul.f32 %v1981, %v2347
  %v2398 = vmul.f32 %v1982, %v2347
  %v2399 = vmul.f32 %v1983, %v2347
  %v2400 = vmul.f32 %v1984, %v2347
  %v2401 = vmul.f32 %v1985, %v2347
  %v2402 = vmul.f32 %v1986, %v2347
  %v2403 = vmul.f32 %v1987, %v2347
  %v2404 = vmul.f32 %v1988, %v2347
  %v2405 = vmul.f32 %v1989, %v2347
  %v2406 = vmul.f32 %v1990, %v2347
  %v2407 = vmul.f32 %v1991, %v2347
  %v2408 = vmul.f32 %v1992, %v2347
  %v2409 = vmul.f32 %v1993, %v2347
  %v2410 = vmul.f32 %v1994, %v2347
  %v2411 = vmul.f32 %v1995, %v2347
  %v2413 = vperm.slane %v2346, 0
  %v2415 = vadd.f32 %v2348, %v2413
  %v2416 = vadd.f32 %v2349, %v2413
  %v2417 = vadd.f32 %v2350, %v2413
  %v2418 = vadd.f32 %v2351, %v2413
  %v2419 = vadd.f32 %v2352, %v2413
  %v2420 = vadd.f32 %v2353, %v2413
  %v2421 = vadd.f32 %v2354, %v2413
  %v2422 = vadd.f32 %v2355, %v2413
  %v2423 = vadd.f32 %v2356, %v2413
  %v2424 = vadd.f32 %v2357, %v2413
  %v2425 = vadd.f32 %v2358, %v2413
  %v2426 = vadd.f32 %v2359, %v2413
  %v2427 = vadd.f32 %v2360, %v2413
  %v2428 = vadd.f32 %v2361, %v2413
  %v2429 = vadd.f32 %v2362, %v2413
  %v2430 = vadd.f32 %v2363, %v2413
  %v2431 = vadd.f32 %v2364, %v2413
  %v2432 = vadd.f32 %v2365, %v2413
  %v2433 = vadd.f32 %v2366, %v2413
  %v2434 = vadd.f32 %v2367, %v2413
  %v2435 = vadd.f32 %v2368, %v2413
  %v2436 = vadd.f32 %v2369, %v2413
  %v2437 = vadd.f32 %v2370, %v2413
  %v2438 = vadd.f32 %v2371, %v2413
  %v2439 = vadd.f32 %v2372, %v2413
  %v2440 = vadd.f32 %v2373, %v2413
  %v2441 = vadd.f32 %v2374, %v2413
  %v2442 = vadd.f32 %v2375, %v2413
  %v2443 = vadd.f32 %v2376, %v2413
  %v2444 = vadd.f32 %v2377, %v2413
  %v2445 = vadd.f32 %v2378, %v2413
  %v2446 = vadd.f32 %v2379, %v2413
  %v2447 = vadd.f32 %v2380, %v2413
  %v2448 = vadd.f32 %v2381, %v2413
  %v2449 = vadd.f32 %v2382, %v2413
  %v2450 = vadd.f32 %v2383, %v2413
  %v2451 = vadd.f32 %v2384, %v2413
  %v2452 = vadd.f32 %v2385, %v2413
  %v2453 = vadd.f32 %v2386, %v2413
  %v2454 = vadd.f32 %v2387, %v2413
  %v2455 = vadd.f32 %v2388, %v2413
  %v2456 = vadd.f32 %v2389, %v2413
  %v2457 = vadd.f32 %v2390, %v2413
  %v2458 = vadd.f32 %v2391, %v2413
  %v2459 = vadd.f32 %v2392, %v2413
  %v2460 = vadd.f32 %v2393, %v2413
  %v2461 = vadd.f32 %v2394, %v2413
  %v2462 = vadd.f32 %v2395, %v2413
  %v2463 = vadd.f32 %v2396, %v2413
  %v2464 = vadd.f32 %v2397, %v2413
  %v2465 = vadd.f32 %v2398, %v2413
  %v2466 = vadd.f32 %v2399, %v2413
  %v2467 = vadd.f32 %v2400, %v2413
  %v2468 = vadd.f32 %v2401, %v2413
  %v2469 = vadd.f32 %v2402, %v2413
  %v2470 = vadd.f32 %v2403, %v2413
  %v2471 = vadd.f32 %v2404, %v2413
  %v2472 = vadd.f32 %v2405, %v2413
  %v2473 = vadd.f32 %v2406, %v2413
  %v2474 = vadd.f32 %v2407, %v2413
  %v2475 = vadd.f32 %v2408, %v2413
  %v2476 = vadd.f32 %v2409, %v2413
  %v2477 = vadd.f32 %v2410, %v2413
  %v2478 = vadd.f32 %v2411, %v2413
  %v2479 = vmul.f32 %v2415, 0.5
  %v2480 = vmul.f32 %v2416, 0.5
  %v2481 = vmul.f32 %v2417, 0.5
  %v2482 = vmul.f32 %v2418, 0.5
  %v2483 = vmul.f32 %v2419, 0.5
  %v2484 = vmul.f32 %v2420, 0.5
  %v2485 = vmul.f32 %v2421, 0.5
  %v2486 = vmul.f32 %v2422, 0.5
  %v2487 = vmul.f32 %v2423, 0.5
  %v2488 = vmul.f32 %v2424, 0.5
  %v2489 = vmul.f32 %v2425, 0.5
  %v2490 = vmul.f32 %v2426, 0.5
  %v2491 = vmul.f32 %v2427, 0.5
  %v2492 = vmul.f32 %v2428, 0.5
  %v2493 = vmul.f32 %v2429, 0.5
  %v2494 = vmul.f32 %v2430, 0.5
  %v2495 = vmul.f32 %v2431, 0.5
  %v2496 = vmul.f32 %v2432, 0.5
  %v2497 = vmul.f32 %v2433, 0.5
  %v2498 = vmul.f32 %v2434, 0.5
  %v2499 = vmul.f32 %v2435, 0.5
  %v2500 = vmul.f32 %v2436, 0.5
  %v2501 = vmul.f32 %v2437, 0.5
  %v2502 = vmul.f32 %v2438, 0.5
  %v2503 = vmul.f32 %v2439, 0.5
  %v2504 = vmul.f32 %v2440, 0.5
  %v2505 = vmul.f32 %v2441, 0.5
  %v2506 = vmul.f32 %v2442, 0.5
  %v2507 = vmul.f32 %v2443, 0.5
  %v2508 = vmul.f32 %v2444, 0.5
  %v2509 = vmul.f32 %v2445, 0.5
  %v2510 = vmul.f32 %v2446, 0.5
  %v2511 = vmul.f32 %v2447, 0.5
  %v2512 = vmul.f32 %v2448, 0.5
  %v2513 = vmul.f32 %v2449, 0.5
  %v2514 = vmul.f32 %v2450, 0.5
  %v2515 = vmul.f32 %v2451, 0.5
  %v2516 = vmul.f32 %v2452, 0.5
  %v2517 = vmul.f32 %v2453, 0.5
  %v2518 = vmul.f32 %v2454, 0.5
  %v2519 = vmul.f32 %v2455, 0.5
  %v2520 = vmul.f32 %v2456, 0.5
  %v2521 = vmul.f32 %v2457, 0.5
  %v2522 = vmul.f32 %v2458, 0.5
  %v2523 = vmul.f32 %v2459, 0.5
  %v2524 = vmul.f32 %v2460, 0.5
  %v2525 = vmul.f32 %v2461, 0.5
  %v2526 = vmul.f32 %v2462, 0.5
  %v2527 = vmul.f32 %v2463, 0.5
  %v2528 = vmul.f32 %v2464, 0.5
  %v2529 = vmul.f32 %v2465, 0.5
  %v2530 = vmul.f32 %v2466, 0.5
  %v2531 = vmul.f32 %v2467, 0.5
  %v2532 = vmul.f32 %v2468, 0.5
  %v2533 = vmul.f32 %v2469, 0.5
  %v2534 = vmul.f32 %v2470, 0.5
  %v2535 = vmul.f32 %v2471, 0.5
  %v2536 = vmul.f32 %v2472, 0.5
  %v2537 = vmul.f32 %v2473, 0.5
  %v2538 = vmul.f32 %v2474, 0.5
  %v2539 = vmul.f32 %v2475, 0.5
  %v2540 = vmul.f32 %v2476, 0.5
  %v2541 = vmul.f32 %v2477, 0.5
  %v2542 = vmul.f32 %v2478, 0.5
  %v2543 = vtanh.pop %v2479
  %v2544 = vtanh.pop %v2480
  %v2545 = vtanh.pop %v2481
  %v2546 = vtanh.pop %v2482
  %v2547 = vtanh.pop %v2483
  %v2548 = vtanh.pop %v2484
  %v2549 = vtanh.pop %v2485
  %v2550 = vtanh.pop %v2486
  %v2551 = vtanh.pop %v2487
  %v2552 = vtanh.pop %v2488
  %v2553 = vtanh.pop %v2489
  %v2554 = vtanh.pop %v2490
  %v2555 = vtanh.pop %v2491
  %v2556 = vtanh.pop %v2492
  %v2557 = vtanh.pop %v2493
  %v2558 = vtanh.pop %v2494
  %v2559 = vtanh.pop %v2495
  %v2560 = vtanh.pop %v2496
  %v2561 = vtanh.pop %v2497
  %v2562 = vtanh.pop %v2498
  %v2563 = vtanh.pop %v2499
  %v2564 = vtanh.pop %v2500
  %v2565 = vtanh.pop %v2501
  %v2566 = vtanh.pop %v2502
  %v2567 = vtanh.pop %v2503
  %v2568 = vtanh.pop %v2504
  %v2569 = vtanh.pop %v2505
  %v2570 = vtanh.pop %v2506
  %v2571 = vtanh.pop %v2507
  %v2572 = vtanh.pop %v2508
  %v2573 = vtanh.pop %v2509
  %v2574 = vtanh.pop %v2510
  %v2575 = vtanh.pop %v2511
  %v2576 = vtanh.pop %v2512
  %v2577 = vtanh.pop %v2513
  %v2578 = vtanh.pop %v2514
  %v2579 = vtanh.pop %v2515
  %v2580 = vtanh.pop %v2516
  %v2581 = vtanh.pop %v2517
  %v2582 = vtanh.pop %v2518
  %v2583 = vtanh.pop %v2519
  %v2584 = vtanh.pop %v2520
  %v2585 = vtanh.pop %v2521
  %v2586 = vtanh.pop %v2522
  %v2587 = vtanh.pop %v2523
  %v2588 = vtanh.pop %v2524
  %v2589 = vtanh.pop %v2525
  %v2590 = vtanh.pop %v2526
  %v2591 = vtanh.pop %v2527
  %v2592 = vtanh.pop %v2528
  %v2593 = vtanh.pop %v2529
  %v2594 = vtanh.pop %v2530
  %v2595 = vtanh.pop %v2531
  %v2596 = vtanh.pop %v2532
  %v2597 = vtanh.pop %v2533
  %v2598 = vtanh.pop %v2534
  %v2599 = vtanh.pop %v2535
  %v2600 = vtanh.pop %v2536
  %v2601 = vtanh.pop %v2537
  %v2602 = vtanh.pop %v2538
  %v2603 = vtanh.pop %v2539
  %v2604 = vtanh.pop %v2540
  %v2605 = vtanh.pop %v2541
  %v2606 = vtanh.pop %v2542
  %v2607 = vadd.f32 %v2543, 1.0
  %v2608 = vadd.f32 %v2544, 1.0
  %v2609 = vadd.f32 %v2545, 1.0
  %v2610 = vadd.f32 %v2546, 1.0
  %v2611 = vadd.f32 %v2547, 1.0
  %v2612 = vadd.f32 %v2548, 1.0
  %v2613 = vadd.f32 %v2549, 1.0
  %v2614 = vadd.f32 %v2550, 1.0
  %v2615 = vadd.f32 %v2551, 1.0
  %v2616 = vadd.f32 %v2552, 1.0
  %v2617 = vadd.f32 %v2553, 1.0
  %v2618 = vadd.f32 %v2554, 1.0
  %v2619 = vadd.f32 %v2555, 1.0
  %v2620 = vadd.f32 %v2556, 1.0
  %v2621 = vadd.f32 %v2557, 1.0
  %v2622 = vadd.f32 %v2558, 1.0
  %v2623 = vadd.f32 %v2559, 1.0
  %v2624 = vadd.f32 %v2560, 1.0
  %v2625 = vadd.f32 %v2561, 1.0
  %v2626 = vadd.f32 %v2562, 1.0
  %v2627 = vadd.f32 %v2563, 1.0
  %v2628 = vadd.f32 %v2564, 1.0
  %v2629 = vadd.f32 %v2565, 1.0
  %v2630 = vadd.f32 %v2566, 1.0
  %v2631 = vadd.f32 %v2567, 1.0
  %v2632 = vadd.f32 %v2568, 1.0
  %v2633 = vadd.f32 %v2569, 1.0
  %v2634 = vadd.f32 %v2570, 1.0
  %v2635 = vadd.f32 %v2571, 1.0
  %v2636 = vadd.f32 %v2572, 1.0
  %v2637 = vadd.f32 %v2573, 1.0
  %v2638 = vadd.f32 %v2574, 1.0
  %v2639 = vadd.f32 %v2575, 1.0
  %v2640 = vadd.f32 %v2576, 1.0
  %v2641 = vadd.f32 %v2577, 1.0
  %v2642 = vadd.f32 %v2578, 1.0
  %v2643 = vadd.f32 %v2579, 1.0
  %v2644 = vadd.f32 %v2580, 1.0
  %v2645 = vadd.f32 %v2581, 1.0
  %v2646 = vadd.f32 %v2582, 1.0
  %v2647 = vadd.f32 %v2583, 1.0
  %v2648 = vadd.f32 %v2584, 1.0
  %v2649 = vadd.f32 %v2585, 1.0
  %v2650 = vadd.f32 %v2586, 1.0
  %v2651 = vadd.f32 %v2587, 1.0
  %v2652 = vadd.f32 %v2588, 1.0
  %v2653 = vadd.f32 %v2589, 1.0
  %v2654 = vadd.f32 %v2590, 1.0
  %v2655 = vadd.f32 %v2591, 1.0
  %v2656 = vadd.f32 %v2592, 1.0
  %v2657 = vadd.f32 %v2593, 1.0
  %v2658 = vadd.f32 %v2594, 1.0
  %v2659 = vadd.f32 %v2595, 1.0
  %v2660 = vadd.f32 %v2596, 1.0
  %v2661 = vadd.f32 %v2597, 1.0
  %v2662 = vadd.f32 %v2598, 1.0
  %v2663 = vadd.f32 %v2599, 1.0
  %v2664 = vadd.f32 %v2600, 1.0
  %v2665 = vadd.f32 %v2601, 1.0
  %v2666 = vadd.f32 %v2602, 1.0
  %v2667 = vadd.f32 %v2603, 1.0
  %v2668 = vadd.f32 %v2604, 1.0
  %v2669 = vadd.f32 %v2605, 1.0
  %v2670 = vadd.f32 %v2606, 1.0
  %v2671 = vmul.f32 %v2607, 0.5
  %v2672 = vmul.f32 %v2608, 0.5
  %v2673 = vmul.f32 %v2609, 0.5
  %v2674 = vmul.f32 %v2610, 0.5
  %v2675 = vmul.f32 %v2611, 0.5
  %v2676 = vmul.f32 %v2612, 0.5
  %v2677 = vmul.f32 %v2613, 0.5
  %v2678 = vmul.f32 %v2614, 0.5
  %v2679 = vmul.f32 %v2615, 0.5
  %v2680 = vmul.f32 %v2616, 0.5
  %v2681 = vmul.f32 %v2617, 0.5
  %v2682 = vmul.f32 %v2618, 0.5
  %v2683 = vmul.f32 %v2619, 0.5
  %v2684 = vmul.f32 %v2620, 0.5
  %v2685 = vmul.f32 %v2621, 0.5
  %v2686 = vmul.f32 %v2622, 0.5
  %v2687 = vmul.f32 %v2623, 0.5
  %v2688 = vmul.f32 %v2624, 0.5
  %v2689 = vmul.f32 %v2625, 0.5
  %v2690 = vmul.f32 %v2626, 0.5
  %v2691 = vmul.f32 %v2627, 0.5
  %v2692 = vmul.f32 %v2628, 0.5
  %v2693 = vmul.f32 %v2629, 0.5
  %v2694 = vmul.f32 %v2630, 0.5
  %v2695 = vmul.f32 %v2631, 0.5
  %v2696 = vmul.f32 %v2632, 0.5
  %v2697 = vmul.f32 %v2633, 0.5
  %v2698 = vmul.f32 %v2634, 0.5
  %v2699 = vmul.f32 %v2635, 0.5
  %v2700 = vmul.f32 %v2636, 0.5
  %v2701 = vmul.f32 %v2637, 0.5
  %v2702 = vmul.f32 %v2638, 0.5
  %v2703 = vmul.f32 %v2639, 0.5
  %v2704 = vmul.f32 %v2640, 0.5
  %v2705 = vmul.f32 %v2641, 0.5
  %v2706 = vmul.f32 %v2642, 0.5
  %v2707 = vmul.f32 %v2643, 0.5
  %v2708 = vmul.f32 %v2644, 0.5
  %v2709 = vmul.f32 %v2645, 0.5
  %v2710 = vmul.f32 %v2646, 0.5
  %v2711 = vmul.f32 %v2647, 0.5
  %v2712 = vmul.f32 %v2648, 0.5
  %v2713 = vmul.f32 %v2649, 0.5
  %v2714 = vmul.f32 %v2650, 0.5
  %v2715 = vmul.f32 %v2651, 0.5
  %v2716 = vmul.f32 %v2652, 0.5
  %v2717 = vmul.f32 %v2653, 0.5
  %v2718 = vmul.f32 %v2654, 0.5
  %v2719 = vmul.f32 %v2655, 0.5
  %v2720 = vmul.f32 %v2656, 0.5
  %v2721 = vmul.f32 %v2657, 0.5
  %v2722 = vmul.f32 %v2658, 0.5
  %v2723 = vmul.f32 %v2659, 0.5
  %v2724 = vmul.f32 %v2660, 0.5
  %v2725 = vmul.f32 %v2661, 0.5
  %v2726 = vmul.f32 %v2662, 0.5
  %v2727 = vmul.f32 %v2663, 0.5
  %v2728 = vmul.f32 %v2664, 0.5
  %v2729 = vmul.f32 %v2665, 0.5
  %v2730 = vmul.f32 %v2666, 0.5
  %v2731 = vmul.f32 %v2667, 0.5
  %v2732 = vmul.f32 %v2668, 0.5
  %v2733 = vmul.f32 %v2669, 0.5
  %v2734 = vmul.f32 %v2670, 0.5
  %v2735 = vmul.f32 %v2415, %v2671
  %v2736 = vmul.f32 %v2416, %v2672
  %v2737 = vmul.f32 %v2417, %v2673
  %v2738 = vmul.f32 %v2418, %v2674
  %v2739 = vmul.f32 %v2419, %v2675
  %v2740 = vmul.f32 %v2420, %v2676
  %v2741 = vmul.f32 %v2421, %v2677
  %v2742 = vmul.f32 %v2422, %v2678
  %v2743 = vmul.f32 %v2423, %v2679
  %v2744 = vmul.f32 %v2424, %v2680
  %v2745 = vmul.f32 %v2425, %v2681
  %v2746 = vmul.f32 %v2426, %v2682
  %v2747 = vmul.f32 %v2427, %v2683
  %v2748 = vmul.f32 %v2428, %v2684
  %v2749 = vmul.f32 %v2429, %v2685
  %v2750 = vmul.f32 %v2430, %v2686
  %v2751 = vmul.f32 %v2431, %v2687
  %v2752 = vmul.f32 %v2432, %v2688
  %v2753 = vmul.f32 %v2433, %v2689
  %v2754 = vmul.f32 %v2434, %v2690
  %v2755 = vmul.f32 %v2435, %v2691
  %v2756 = vmul.f32 %v2436, %v2692
  %v2757 = vmul.f32 %v2437, %v2693
  %v2758 = vmul.f32 %v2438, %v2694
  %v2759 = vmul.f32 %v2439, %v2695
  %v2760 = vmul.f32 %v2440, %v2696
  %v2761 = vmul.f32 %v2441, %v2697
  %v2762 = vmul.f32 %v2442, %v2698
  %v2763 = vmul.f32 %v2443, %v2699
  %v2764 = vmul.f32 %v2444, %v2700
  %v2765 = vmul.f32 %v2445, %v2701
  %v2766 = vmul.f32 %v2446, %v2702
  %v2767 = vmul.f32 %v2447, %v2703
  %v2768 = vmul.f32 %v2448, %v2704
  %v2769 = vmul.f32 %v2449, %v2705
  %v2770 = vmul.f32 %v2450, %v2706
  %v2771 = vmul.f32 %v2451, %v2707
  %v2772 = vmul.f32 %v2452, %v2708
  %v2773 = vmul.f32 %v2453, %v2709
  %v2774 = vmul.f32 %v2454, %v2710
  %v2775 = vmul.f32 %v2455, %v2711
  %v2776 = vmul.f32 %v2456, %v2712
  %v2777 = vmul.f32 %v2457, %v2713
  %v2778 = vmul.f32 %v2458, %v2714
  %v2779 = vmul.f32 %v2459, %v2715
  %v2780 = vmul.f32 %v2460, %v2716
  %v2781 = vmul.f32 %v2461, %v2717
  %v2782 = vmul.f32 %v2462, %v2718
  %v2783 = vmul.f32 %v2463, %v2719
  %v2784 = vmul.f32 %v2464, %v2720
  %v2785 = vmul.f32 %v2465, %v2721
  %v2786 = vmul.f32 %v2466, %v2722
  %v2787 = vmul.f32 %v2467, %v2723
  %v2788 = vmul.f32 %v2468, %v2724
  %v2789 = vmul.f32 %v2469, %v2725
  %v2790 = vmul.f32 %v2470, %v2726
  %v2791 = vmul.f32 %v2471, %v2727
  %v2792 = vmul.f32 %v2472, %v2728
  %v2793 = vmul.f32 %v2473, %v2729
  %v2794 = vmul.f32 %v2474, %v2730
  %v2795 = vmul.f32 %v2475, %v2731
  %v2796 = vmul.f32 %v2476, %v2732
  %v2797 = vmul.f32 %v2477, %v2733
  %v2798 = vmul.f32 %v2478, %v2734
  %2799 = vst.msk [vmem:[%s4] sm:$0xff] %vm17, %v2735
  %2800 = vst.msk [vmem:[%s4 + $0x8] sm:$0xff] %vm17, %v2736
  %2801 = vst.msk [vmem:[%s4 + $0x10] sm:$0xff] %vm17, %v2737
  %2802 = vst.msk [vmem:[%s4 + $0x18] sm:$0xff] %vm17, %v2738
  %2803 = vst.msk [vmem:[%s4 + $0x20] sm:$0xff] %vm17, %v2739
  %2804 = vst.msk [vmem:[%s4 + $0x28] sm:$0xff] %vm17, %v2740
  %2805 = vst.msk [vmem:[%s4 + $0x30] sm:$0xff] %vm17, %v2741
  %2806 = vst.msk [vmem:[%s4 + $0x38] sm:$0xff] %vm17, %v2742
  %2807 = vst.msk [vmem:[%s4 + $0x40] sm:$0xff] %vm17, %v2743
  %2808 = vst.msk [vmem:[%s4 + $0x48] sm:$0xff] %vm17, %v2744
  %2809 = vst.msk [vmem:[%s4 + $0x50] sm:$0xff] %vm17, %v2745
  %2810 = vst.msk [vmem:[%s4 + $0x58] sm:$0xff] %vm17, %v2746
  %2811 = vst.msk [vmem:[%s4 + $0x60] sm:$0xff] %vm17, %v2747
  %2812 = vst.msk [vmem:[%s4 + $0x68] sm:$0xff] %vm17, %v2748
  %2813 = vst.msk [vmem:[%s4 + $0x70] sm:$0xff] %vm17, %v2749
  %2814 = vst.msk [vmem:[%s4 + $0x78] sm:$0xff] %vm17, %v2750
  %2815 = vst.msk [vmem:[%s4 + $0x80] sm:$0xff] %vm17, %v2751
  %2816 = vst.msk [vmem:[%s4 + $0x88] sm:$0xff] %vm17, %v2752
  %2817 = vst.msk [vmem:[%s4 + $0x90] sm:$0xff] %vm17, %v2753
  %2818 = vst.msk [vmem:[%s4 + $0x98] sm:$0xff] %vm17, %v2754
  %2819 = vst.msk [vmem:[%s4 + $0xa0] sm:$0xff] %vm17, %v2755
  %2820 = vst.msk [vmem:[%s4 + $0xa8] sm:$0xff] %vm17, %v2756
  %2821 = vst.msk [vmem:[%s4 + $0xb0] sm:$0xff] %vm17, %v2757
  %2822 = vst.msk [vmem:[%s4 + $0xb8] sm:$0xff] %vm17, %v2758
  %2823 = vst.msk [vmem:[%s4 + $0xc0] sm:$0xff] %vm17, %v2759
  %2824 = vst.msk [vmem:[%s4 + $0xc8] sm:$0xff] %vm17, %v2760
  %2825 = vst.msk [vmem:[%s4 + $0xd0] sm:$0xff] %vm17, %v2761
  %2826 = vst.msk [vmem:[%s4 + $0xd8] sm:$0xff] %vm17, %v2762
  %2827 = vst.msk [vmem:[%s4 + $0xe0] sm:$0xff] %vm17, %v2763
  %2828 = vst.msk [vmem:[%s4 + $0xe8] sm:$0xff] %vm17, %v2764
  %2829 = vst.msk [vmem:[%s4 + $0xf0] sm:$0xff] %vm17, %v2765
  %2830 = vst.msk [vmem:[%s4 + $0xf8] sm:$0xff] %vm17, %v2766
  %2831 = vst.msk [vmem:[%s4 + $0x100] sm:$0xff] %vm17, %v2767
  %2832 = vst.msk [vmem:[%s4 + $0x108] sm:$0xff] %vm17, %v2768
  %2833 = vst.msk [vmem:[%s4 + $0x110] sm:$0xff] %vm17, %v2769
  %2834 = vst.msk [vmem:[%s4 + $0x118] sm:$0xff] %vm17, %v2770
  %2835 = vst.msk [vmem:[%s4 + $0x120] sm:$0xff] %vm17, %v2771
  %2836 = vst.msk [vmem:[%s4 + $0x128] sm:$0xff] %vm17, %v2772
  %2837 = vst.msk [vmem:[%s4 + $0x130] sm:$0xff] %vm17, %v2773
  %2838 = vst.msk [vmem:[%s4 + $0x138] sm:$0xff] %vm17, %v2774
  %2839 = vst.msk [vmem:[%s4 + $0x140] sm:$0xff] %vm17, %v2775
  %2840 = vst.msk [vmem:[%s4 + $0x148] sm:$0xff] %vm17, %v2776
  %2841 = vst.msk [vmem:[%s4 + $0x150] sm:$0xff] %vm17, %v2777
  %2842 = vst.msk [vmem:[%s4 + $0x158] sm:$0xff] %vm17, %v2778
  %2843 = vst.msk [vmem:[%s4 + $0x160] sm:$0xff] %vm17, %v2779
  %2844 = vst.msk [vmem:[%s4 + $0x168] sm:$0xff] %vm17, %v2780
  %2845 = vst.msk [vmem:[%s4 + $0x170] sm:$0xff] %vm17, %v2781
  %2846 = vst.msk [vmem:[%s4 + $0x178] sm:$0xff] %vm17, %v2782
  %2847 = vst.msk [vmem:[%s4 + $0x180] sm:$0xff] %vm17, %v2783
  %2848 = vst.msk [vmem:[%s4 + $0x188] sm:$0xff] %vm17, %v2784
  %2849 = vst.msk [vmem:[%s4 + $0x190] sm:$0xff] %vm17, %v2785
  %2850 = vst.msk [vmem:[%s4 + $0x198] sm:$0xff] %vm17, %v2786
  %2851 = vst.msk [vmem:[%s4 + $0x1a0] sm:$0xff] %vm17, %v2787
  %2852 = vst.msk [vmem:[%s4 + $0x1a8] sm:$0xff] %vm17, %v2788
  %2853 = vst.msk [vmem:[%s4 + $0x1b0] sm:$0xff] %vm17, %v2789
  %2854 = vst.msk [vmem:[%s4 + $0x1b8] sm:$0xff] %vm17, %v2790
  %2855 = vst.msk [vmem:[%s4 + $0x1c0] sm:$0xff] %vm17, %v2791
  %2856 = vst.msk [vmem:[%s4 + $0x1c8] sm:$0xff] %vm17, %v2792
  %2857 = vst.msk [vmem:[%s4 + $0x1d0] sm:$0xff] %vm17, %v2793
  %2858 = vst.msk [vmem:[%s4 + $0x1d8] sm:$0xff] %vm17, %v2794
  %2859 = vst.msk [vmem:[%s4 + $0x1e0] sm:$0xff] %vm17, %v2795
  %2860 = vst.msk [vmem:[%s4 + $0x1e8] sm:$0xff] %vm17, %v2796
  %2861 = vst.msk [vmem:[%s4 + $0x1f0] sm:$0xff] %vm17, %v2797
  %2862 = vst.msk [vmem:[%s4 + $0x1f8] sm:$0xff] %vm17, %v2798
  // Predicated region
  $region18: #{tpu_custom_call.1} parent=0 // pred_check
    _
  $region19: #{tpu_custom_call.1} parent=0 // pred_check_branch
    %2864 = sbr.rel (0) target = $region21
  $region20: #{tpu_custom_call.1} parent=0 // pred_region
    _
  $region21: #{tpu_custom_call.1} parent=0 // pred_fallthru
    _
  // Predicated region
  $region22: #{tpu_custom_call.1} parent=0 // pred_check
    _
  $region23: #{tpu_custom_call.1} parent=0 // pred_check_branch
    %2866 = sbr.rel (0) target = $region25
  $region24: #{tpu_custom_call.1} parent=0 // pred_region
    _
  $region25: #{tpu_custom_call.1} parent=0 // pred_fallthru
    _

</llo_original>
